<compile_context>
chip_gen: v6e
topology: v6e:2x2x1
jax: 0.10.0
libtpu: 0.0.40
codegen_flags: <defaults>
</compile_context>

<pallas_src>
from functools import partial

import jax
import jax.numpy as jnp
from jax.experimental import pallas as pl
from jax.experimental.pallas import tpu as pltpu


# ---------------------------------------------------------------------------
# Kernel
# ---------------------------------------------------------------------------
def _attn_kernel(x_ref, wqkv_ref, bqkv_ref, wo_ref, bo_ref, o_ref, *,
                 num_heads, scale):
    """One grid step == BB batch elements.  Everything lives in VMEM."""
    BB, T, E = x_ref.shape
    H = num_heads
    D = E // H
    cdt = wqkv_ref.dtype               # MXU operand dtype (bf16 or f32)

    # ---- fused QKV projection: one (BB*T, E) x (E, 3E) MXU matmul ----------
    # bf16 (or f32) operands, f32 accumulation, single (1, 3E) bias add.
    x2 = x_ref[...].reshape(BB * T, E).astype(cdt)
    qkv = jnp.dot(x2, wqkv_ref[...], preferred_element_type=jnp.float32)
    qkv = qkv + bqkv_ref[...]

    # slices at 0 / E / 2E are lane-aligned whenever E % 128 == 0.
    # Cast to the MXU operand dtype once (hoisted out of any per-batch work).
    q = (qkv[:, :E] * scale).astype(cdt)          # scale AFTER bias: q_proj(x)*scale
    k = qkv[:, E:2 * E].astype(cdt)
    v = qkv[:, 2 * E:].astype(cdt)

    # ---- attention: all BB*H (head, batch) pairs batched in ONE einsum -----
    # (BB*T, H, D) -> (H, BB*T, D) -> (H*BB, T, D): a single XLU transpose per
    # tensor (instead of BB of them) and long batched MXU passes, no sublane
    # concat.  Batch index = h*BB + b; undone consistently below.
    def to_heads(t):
        t = pltpu.einshape("thd->htd", t.reshape(BB * T, H, D))   # (H, BB*T, D)
        return t.reshape(H * BB, T, D)

    qh, kh, vh = to_heads(q), to_heads(k), to_heads(v)

    # NOTE: D (= E/H) only fills part of the MXU contraction dim; the batched
    # einsum keeps one long pass per (b, h) which amortizes fill/drain.
    s = jnp.einsum("bqd,bkd->bqk", qh, kh,
                   preferred_element_type=jnp.float32)            # (H*BB, T, T)

    # numerically stable softmax; statistics stay in f32 (VPU/EUP path).
    # EUP reciprocal + one Newton step ~= exact division (parity with torch).
    s = s - jnp.max(s, axis=-1, keepdims=True)
    p = jnp.exp(s)
    denom = jnp.sum(p, axis=-1, keepdims=True)
    r = pl.reciprocal(denom, approx=True)
    r = r * (2.0 - denom * r)
    p = p * r

    ctx = jnp.einsum("bqk,bkd->bqd", p.astype(cdt), vh,
                     preferred_element_type=jnp.float32)          # (H*BB, T, D)
    ctx = pltpu.einshape("htd->thd",
                         ctx.reshape(H, BB * T, D)).reshape(BB * T, E)

    # ---- output projection --------------------------------------------------
    out = jnp.dot(ctx.astype(cdt), wo_ref[...],
                  preferred_element_type=jnp.float32) + bo_ref[...]
    o_ref[...] = out.reshape(BB, T, E).astype(o_ref.dtype)


# ---------------------------------------------------------------------------
# Wrapper helpers
# ---------------------------------------------------------------------------
def _tpu_info():
    """Best-effort chip query; safe defaults when unavailable."""
    num_tc, mxu_rows, vmem_bytes = 1, 256, 128 << 20
    try:
        kind = jax.devices()[0].device_kind.lower()
        if "v5" in kind:
            mxu_rows = 128                       # 4x128^2 MXU: 128 rows fill it
        if "v7" in kind or "7x" in kind:
            num_tc, vmem_bytes = 2, 64 << 20     # 2 TC/chip, 64 MiB VMEM per TC
    except Exception:
        pass
    try:
        vmem_bytes = int(pltpu.get_tpu_info().vmem_capacity_bytes)
    except Exception:
        pass
    return num_tc, mxu_rows, vmem_bytes


def _pick_batch_block(B, T, H, *, num_tc, row_target, score_bytes_cap):
    """Batch elements per grid step.

    Prefer the smallest divisor of B giving >= row_target MXU rows per step,
    otherwise the largest whose (BB, H, T, T) f32 score tensors fit the cap.
    Only force multiple grid steps when the chip actually has >1 TensorCore;
    on single-TC chips the grid is a serial loop and splitting just shrinks
    the matmul M dimension."""
    divisors = [d for d in range(1, B + 1) if B % d == 0]
    fitting = [d for d in divisors if d * H * T * T * 4 <= score_bytes_cap] or [1]
    bb = next((d for d in fitting if d * T >= row_target), fitting[-1])
    if num_tc > 1 and B > 1:
        bb = min(bb, max(d for d in divisors if d <= max(1, B // num_tc)))
    return bb


def prepare_groupvit_params(params, *, matmul_dtype=jnp.bfloat16):
    """One-time weight prep (call once per model, NOT per forward call).

    Fuses q|k|v into a single (E, 3E) weight / (1, 3E) bias, pre-transposes
    torch (out, in) weights to (in, out), and casts weights to the MXU operand
    dtype (halves weight DMA + VMEM when bf16).  Biases stay f32 since they
    are added to the f32 accumulator."""
    def wt(name):
        return jnp.asarray(params[name]).T.astype(matmul_dtype)

    E = jnp.asarray(params["q_w"]).shape[0]
    w_qkv = jnp.concatenate([wt("q_w"), wt("k_w"), wt("v_w")], axis=1)
    b_qkv = jnp.concatenate(
        [jnp.asarray(params["q_b"]), jnp.asarray(params["k_b"]),
         jnp.asarray(params["v_b"])]).reshape(1, 3 * E).astype(jnp.float32)
    w_o = wt("o_w")
    b_o = jnp.asarray(params["o_b"]).reshape(1, E).astype(jnp.float32)
    return {"w_qkv": w_qkv, "b_qkv": b_qkv, "w_o": w_o, "b_o": b_o}


def groupvit_attention(x, params, *, num_heads, matmul_dtype=jnp.bfloat16):
    """x: (B, T, E).  params: output of prepare_groupvit_params (preferred),
    or raw torch-layout {q,k,v,o}_{w,b} (prep then happens per call)."""
    if "w_qkv" not in params:
        params = prepare_groupvit_params(params, matmul_dtype=matmul_dtype)
    w_qkv, b_qkv = params["w_qkv"], params["b_qkv"]
    w_o, b_o = params["w_o"], params["b_o"]

    B, T, E = x.shape
    head_dim = E // num_heads
    assert head_dim * num_heads == E
    scale = head_dim ** (-0.5)
    w_item = jnp.dtype(w_qkv.dtype).itemsize

    num_tc, mxu_rows, vmem_bytes = _tpu_info()
    # TODO(synk): for very large T (BB*H*T*T f32 scores near the VMEM budget,
    #             hit first on v7x's 64 MiB) switch to a flash-style KV-tiled
    #             inner loop instead of shrinking BB.
    BB = _pick_batch_block(B, T, num_heads, num_tc=num_tc,
                           row_target=mxu_rows,
                           score_bytes_cap=vmem_bytes // 16)

    # VMEM budget: weights/biases (conservatively 2 bufs), double-buffered
    # x/out blocks, f32 qkv + operand-dtype q/k/v, ALL BB*H score tensors
    # co-live (batched einsum), f32 ctx/out.  Cap at ~80% of physical VMEM so
    # compiler-internal scratch always has headroom (v7x has only 64 MiB).
    est = (2 * (4 * E * E * w_item + 4 * E * 4)        # W_qkv|W_o (+biases)
           + 2 * 2 * BB * T * E * x.dtype.itemsize     # x + out blocks, 2x
           + BB * T * 3 * E * (4 + w_item)             # qkv f32 + q/k/v operand
           + 3 * BB * num_heads * T * T * 4            # s / p / p-cast
           + 2 * BB * T * E * 4)                       # ctx / out f32
    vmem_limit = int(min(int(0.8 * vmem_bytes), max(32 << 20, 2 * est)))

    kernel = partial(_attn_kernel, num_heads=num_heads, scale=scale)

    def build(single_buffer_weights):
        # Weights/biases are grid-invariant (index_map always (0, 0)); a single
        # VMEM buffer suffices and halves their footprint.
        wkw = ({"pipeline_mode": pl.Buffered(1)} if single_buffer_weights else {})
        x_spec = pl.BlockSpec((BB, T, E), lambda i: (i, 0, 0))
        w_qkv_spec = pl.BlockSpec((E, 3 * E), lambda i: (0, 0), **wkw)
        b_qkv_spec = pl.BlockSpec((1, 3 * E), lambda i: (0, 0), **wkw)
        w_o_spec = pl.BlockSpec((E, E), lambda i: (0, 0), **wkw)
        b_o_spec = pl.BlockSpec((1, E), lambda i: (0, 0), **wkw)
        return pl.pallas_call(
            kernel,
            out_shape=jax.ShapeDtypeStruct((B, T, E), x.dtype),
            grid_spec=pltpu.PrefetchScalarGridSpec(
                num_scalar_prefetch=0,
                grid=(B // BB,),
                in_specs=[x_spec, w_qkv_spec, b_qkv_spec, w_o_spec, b_o_spec],
                out_specs=pl.BlockSpec((BB, T, E), lambda i: (i, 0, 0)),
            ),
            compiler_params=pltpu.CompilerParams(
                dimension_semantics=("parallel",),
                vmem_limit_bytes=vmem_limit),
        )

    try:
        return build(True)(x, w_qkv, b_qkv, w_o, b_o)
    except Exception:
        # Fall back to default double-buffering if Buffered(1) is rejected.
        return build(False)(x, w_qkv, b_qkv, w_o, b_o)


# ---------------------------------------------------------------------------
# Pure-JAX reference mirroring the PyTorch forward exactly
# ---------------------------------------------------------------------------
def _reference(x, params, *, num_heads):
    B, T, E = x.shape
    D = E // num_heads
    scale = D ** (-0.5)

    def lin(x_, w, b):
        return x_ @ jnp.asarray(w).T + jnp.asarray(b)

    with jax.default_matmul_precision("float32"):
        q = lin(x, params["q_w"], params["q_b"]) * scale
        k = lin(x, params["k_w"], params["k_b"])
        v = lin(x, params["v_w"], params["v_b"])

        def shape(t):   # (B, T, E) -> (B*H, T, D)
            return t.reshape(B, T, num_heads, D).transpose(0, 2, 1, 3).reshape(
                B * num_heads, T, D)

        q, k, v = shape(q), shape(k), shape(v)
        w = jnp.einsum("btd,bsd->bts", q, k)
        w = jax.nn.softmax(w, axis=-1)
        o = jnp.einsum("bts,bsd->btd", w, v)
        o = o.reshape(B, num_heads, T, D).transpose(0, 2, 1, 3).reshape(B, T, E)
        return lin(o, params["o_w"], params["o_b"])


if __name__ == "__main__":
    B, T, E, H = 2, 8, 32, 4

    key = jax.random.PRNGKey(0)
    keys = jax.random.split(key, 9)
    params = {
        "q_w": 0.1 * jax.random.normal(keys[0], (E, E), jnp.float32),
        "q_b": 0.1 * jax.random.normal(keys[1], (E,), jnp.float32),
        "k_w": 0.1 * jax.random.normal(keys[2], (E, E), jnp.float32),
        "k_b": 0.1 * jax.random.normal(keys[3], (E,), jnp.float32),
        "v_w": 0.1 * jax.random.normal(keys[4], (E, E), jnp.float32),
        "v_b": 0.1 * jax.random.normal(keys[5], (E,), jnp.float32),
        "o_w": 0.1 * jax.random.normal(keys[6], (E, E), jnp.float32),
        "o_b": 0.1 * jax.random.normal(keys[7], (E,), jnp.float32),
    }
    x = jax.random.normal(keys[8], (B, T, E), jnp.float32)
    ref = _reference(x, params, num_heads=H)

    # Weight fusion/transpose/cast happens ONCE per model (hoisted out of the
    # per-forward-call path).
    prep_f32 = prepare_groupvit_params(params, matmul_dtype=jnp.float32)
    prep_bf16 = prepare_groupvit_params(params, matmul_dtype=jnp.bfloat16)

    # f32 MXU-operand path (tight correctness check).
    out_f32 = jax.block_until_ready(
        groupvit_attention(x, prep_f32, num_heads=H))
    assert out_f32.shape == (B, T, E)
    assert jnp.allclose(out_f32, ref, atol=1e-2, rtol=1e-2), (
        float(jnp.max(jnp.abs(out_f32 - ref))))

    # bf16 MXU-operand / f32-accumulate path (production default).
    out_bf16 = jax.block_until_ready(
        groupvit_attention(x, prep_bf16, num_heads=H))
    assert jnp.allclose(out_bf16, ref, atol=5e-2, rtol=5e-2), (
        float(jnp.max(jnp.abs(out_bf16 - ref))))

    # Exercise the multi-batch-per-grid-step batched-attention path (B=4).
    x4 = jax.random.normal(keys[8], (4, T, E), jnp.float32)
    ref4 = _reference(x4, params, num_heads=H)
    out4 = jax.block_until_ready(groupvit_attention(x4, prep_bf16, num_heads=H))
    assert jnp.allclose(out4, ref4, atol=5e-2, rtol=5e-2), (
        float(jnp.max(jnp.abs(out4 - ref4))))

    print("KERNEL_OK")
</pallas_src>

<mosaic_0001>
module attributes {stable_mosaic.version = 11 : i64} {
  func.func @_attn_kernel(%arg0: i32, %arg1: memref<2x8x32xf32, #tpu.memory_space<vmem>>, %arg2: memref<32x96xf32, #tpu.memory_space<vmem>>, %arg3: memref<1x96xf32, #tpu.memory_space<vmem>>, %arg4: memref<32x32xf32, #tpu.memory_space<vmem>>, %arg5: memref<1x32xf32, #tpu.memory_space<vmem>>, %arg6: memref<2x8x32xf32, #tpu.memory_space<vmem>>) attributes {dimension_semantics = [#tpu.dimension_semantics<parallel>], iteration_bounds = array<i64: 1>, scalar_prefetch = 0 : i64, scratch_operands = 0 : i64, tpu.core_type = #tpu.core_type<tc>, window_params = [{transform_indices = @transform_0, window_bounds = array<i64: 2, 8, 32>}, {pipeline_mode = #tpu.pipeline_mode<synchronous>, transform_indices = @transform_1, window_bounds = array<i64: 32, 96>}, {pipeline_mode = #tpu.pipeline_mode<synchronous>, transform_indices = @transform_2, window_bounds = array<i64: 1, 96>}, {pipeline_mode = #tpu.pipeline_mode<synchronous>, transform_indices = @transform_3, window_bounds = array<i64: 32, 32>}, {pipeline_mode = #tpu.pipeline_mode<synchronous>, transform_indices = @transform_4, window_bounds = array<i64: 1, 32>}, {transform_indices = @transform_5, window_bounds = array<i64: 2, 8, 32>}]} {
    %c0 = arith.constant 0 : index
    %c0_0 = arith.constant 0 : index
    %c0_1 = arith.constant 0 : index
    %0 = vector.load %arg1[%c0, %c0_0, %c0_1] : memref<2x8x32xf32, #tpu.memory_space<vmem>>, vector<2x8x32xf32>
    %1 = vector.shape_cast %0 : vector<2x8x32xf32> to vector<16x32xf32>
    %c0_2 = arith.constant 0 : index
    %c0_3 = arith.constant 0 : index
    %2 = vector.load %arg2[%c0_2, %c0_3] : memref<32x96xf32, #tpu.memory_space<vmem>>, vector<32x96xf32>
    %cst = arith.constant dense<0.000000e+00> : vector<16x96xf32>
    %3 = tpu.matmul %1, %2, %cst {dimension_numbers = #tpu.dot_dimension_numbers<[1], [0], [0], [1], [0, 0, 1, 1], [], []>} : vector<16x32xf32>, vector<32x96xf32>, vector<16x96xf32> -> vector<16x96xf32>
    %c0_4 = arith.constant 0 : index
    %c0_5 = arith.constant 0 : index
    %4 = vector.load %arg3[%c0_4, %c0_5] : memref<1x96xf32, #tpu.memory_space<vmem>>, vector<1x96xf32>
    %5 = vector.broadcast %4 : vector<1x96xf32> to vector<16x96xf32>
    %6 = arith.addf %3, %5 : vector<16x96xf32>
    %7 = vector.extract_strided_slice %6 {offsets = [0, 0], sizes = [16, 32], strides = [1, 1]} : vector<16x96xf32> to vector<16x32xf32>
    %cst_6 = arith.constant 0.353553385 : f32
    %8 = vector.broadcast %cst_6 : f32 to vector<16x32xf32>
    %9 = arith.mulf %7, %8 : vector<16x32xf32>
    %10 = vector.extract_strided_slice %6 {offsets = [0, 32], sizes = [16, 32], strides = [1, 1]} : vector<16x96xf32> to vector<16x32xf32>
    %11 = vector.extract_strided_slice %6 {offsets = [0, 64], sizes = [16, 32], strides = [1, 1]} : vector<16x96xf32> to vector<16x32xf32>
    %12 = vector.shape_cast %9 : vector<16x32xf32> to vector<16x4x8xf32>
    %13 = tpu.transpose %12, [1, 0, 2] : vector<16x4x8xf32> -> vector<4x16x8xf32>
    %14 = vector.shape_cast %13 : vector<4x16x8xf32> to vector<8x8x8xf32>
    %15 = vector.shape_cast %10 : vector<16x32xf32> to vector<16x4x8xf32>
    %16 = tpu.transpose %15, [1, 0, 2] : vector<16x4x8xf32> -> vector<4x16x8xf32>
    %17 = vector.shape_cast %16 : vector<4x16x8xf32> to vector<8x8x8xf32>
    %18 = vector.shape_cast %11 : vector<16x32xf32> to vector<16x4x8xf32>
    %19 = tpu.transpose %18, [1, 0, 2] : vector<16x4x8xf32> -> vector<4x16x8xf32>
    %20 = vector.shape_cast %19 : vector<4x16x8xf32> to vector<8x8x8xf32>
    "tpu.trace_start"() <{level = 10 : i32, message = "bqd,bkd->bqk"}> : () -> ()
    %cst_7 = arith.constant dense<0.000000e+00> : vector<8x8x8xf32>
    %21 = tpu.matmul %14, %17, %cst_7 {dimension_numbers = #tpu.dot_dimension_numbers<[2], [2], [1], [1], [0, 0, 0, 1, 1, 1], [0], [0]>} : vector<8x8x8xf32>, vector<8x8x8xf32>, vector<8x8x8xf32> -> vector<8x8x8xf32>
    "tpu.trace_stop"() : () -> ()
    %cst_8 = arith.constant dense<0xFF800000> : vector<8x8xf32>
    %22 = vector.multi_reduction <maximumf>, %21, %cst_8 [2] : vector<8x8x8xf32> to vector<8x8xf32>
    %23 = vector.shape_cast %22 : vector<8x8xf32> to vector<8x8x1xf32>
    %24 = vector.broadcast %23 : vector<8x8x1xf32> to vector<8x8x8xf32>
    %25 = arith.subf %21, %24 : vector<8x8x8xf32>
    %26 = math.exp %25 : vector<8x8x8xf32>
    %cst_9 = arith.constant dense<0.000000e+00> : vector<8x8xf32>
    %27 = vector.multi_reduction <add>, %26, %cst_9 [2] : vector<8x8x8xf32> to vector<8x8xf32>
    %28 = vector.shape_cast %27 : vector<8x8xf32> to vector<8x8x1xf32>
    %29 = tpu.reciprocal %28 {approx = true} : vector<8x8x1xf32> -> vector<8x8x1xf32>
    %30 = arith.mulf %28, %29 : vector<8x8x1xf32>
    %cst_10 = arith.constant 2.000000e+00 : f32
    %31 = vector.broadcast %cst_10 : f32 to vector<8x8x1xf32>
    %32 = arith.subf %31, %30 : vector<8x8x1xf32>
    %33 = arith.mulf %29, %32 : vector<8x8x1xf32>
    %34 = vector.broadcast %33 : vector<8x8x1xf32> to vector<8x8x8xf32>
    %35 = arith.mulf %26, %34 : vector<8x8x8xf32>
    "tpu.trace_start"() <{level = 10 : i32, message = "bqk,bkd->bqd"}> : () -> ()
    %cst_11 = arith.constant dense<0.000000e+00> : vector<8x8x8xf32>
    %36 = tpu.matmul %35, %20, %cst_11 {dimension_numbers = #tpu.dot_dimension_numbers<[2], [1], [1], [2], [0, 0, 0, 1, 1, 2], [0], [0]>} : vector<8x8x8xf32>, vector<8x8x8xf32>, vector<8x8x8xf32> -> vector<8x8x8xf32>
    "tpu.trace_stop"() : () -> ()
    %37 = vector.shape_cast %36 : vector<8x8x8xf32> to vector<4x16x8xf32>
    %38 = tpu.transpose %37, [1, 0, 2] : vector<4x16x8xf32> -> vector<16x4x8xf32>
    %39 = vector.shape_cast %38 : vector<16x4x8xf32> to vector<16x32xf32>
    %c0_12 = arith.constant 0 : index
    %c0_13 = arith.constant 0 : index
    %40 = vector.load %arg4[%c0_12, %c0_13] : memref<32x32xf32, #tpu.memory_space<vmem>>, vector<32x32xf32>
    %cst_14 = arith.constant dense<0.000000e+00> : vector<16x32xf32>
    %41 = tpu.matmul %39, %40, %cst_14 {dimension_numbers = #tpu.dot_dimension_numbers<[1], [0], [0], [1], [0, 0, 1, 1], [], []>} : vector<16x32xf32>, vector<32x32xf32>, vector<16x32xf32> -> vector<16x32xf32>
    %c0_15 = arith.constant 0 : index
    %c0_16 = arith.constant 0 : index
    %42 = vector.load %arg5[%c0_15, %c0_16] : memref<1x32xf32, #tpu.memory_space<vmem>>, vector<1x32xf32>
    %43 = vector.broadcast %42 : vector<1x32xf32> to vector<16x32xf32>
    %44 = arith.addf %41, %43 : vector<16x32xf32>
    %45 = vector.shape_cast %44 : vector<16x32xf32> to vector<2x8x32xf32>
    %c0_17 = arith.constant 0 : index
    %c0_18 = arith.constant 0 : index
    %c0_19 = arith.constant 0 : index
    %46 = vector.load %arg6[%c0_17, %c0_18, %c0_19] : memref<2x8x32xf32, #tpu.memory_space<vmem>>, vector<2x8x32xf32>
    tpu.vector_store %arg6[%c0_17, %c0_18, %c0_19], %45 {strides = array<i32>} : memref<2x8x32xf32, #tpu.memory_space<vmem>>, vector<2x8x32xf32>,
    return
  }
  func.func @transform_0(%arg0: i32) -> (i32, i32, i32) {
    %c0_i32 = arith.constant 0 : i32
    %c0_i32_0 = arith.constant 0 : i32
    %c0_i32_1 = arith.constant 0 : i32
    return %arg0, %c0_i32, %c0_i32_0 : i32, i32, i32
  }
  func.func @transform_1(%arg0: i32) -> (i32, i32) {
    %c0_i32 = arith.constant 0 : i32
    %c0_i32_0 = arith.constant 0 : i32
    %c0_i32_1 = arith.constant 0 : i32
    return %c0_i32, %c0_i32_0 : i32, i32
  }
  func.func @transform_2(%arg0: i32) -> (i32, i32) {
    %c0_i32 = arith.constant 0 : i32
    %c0_i32_0 = arith.constant 0 : i32
    %c0_i32_1 = arith.constant 0 : i32
    return %c0_i32, %c0_i32_0 : i32, i32
  }
  func.func @transform_3(%arg0: i32) -> (i32, i32) {
    %c0_i32 = arith.constant 0 : i32
    %c0_i32_0 = arith.constant 0 : i32
    %c0_i32_1 = arith.constant 0 : i32
    return %c0_i32, %c0_i32_0 : i32, i32
  }
  func.func @transform_4(%arg0: i32) -> (i32, i32) {
    %c0_i32 = arith.constant 0 : i32
    %c0_i32_0 = arith.constant 0 : i32
    %c0_i32_1 = arith.constant 0 : i32
    return %c0_i32, %c0_i32_0 : i32, i32
  }
  func.func @transform_5(%arg0: i32) -> (i32, i32, i32) {
    %c0_i32 = arith.constant 0 : i32
    %c0_i32_0 = arith.constant 0 : i32
    %c0_i32_1 = arith.constant 0 : i32
    return %arg0, %c0_i32, %c0_i32_0 : i32, i32, i32
  }
}

module attributes {stable_mosaic.version = 11 : i64} {
  func.func @_attn_kernel(%arg0: i32, %arg1: memref<2x8x32xf32, #tpu.memory_space<vmem>>, %arg2: memref<32x96xf32, #tpu.memory_space<vmem>>, %arg3: memref<1x96xf32, #tpu.memory_space<vmem>>, %arg4: memref<32x32xf32, #tpu.memory_space<vmem>>, %arg5: memref<1x32xf32, #tpu.memory_space<vmem>>, %arg6: memref<2x8x32xf32, #tpu.memory_space<vmem>>) attributes {dimension_semantics = [#tpu.dimension_semantics<parallel>], iteration_bounds = array<i64: 1>, scalar_prefetch = 0 : i64, scratch_operands = 0 : i64, tpu.core_type = #tpu.core_type<tc>, window_params = [{transform_indices = @transform_0, window_bounds = array<i64: 2, 8, 32>}, {pipeline_mode = #tpu.pipeline_mode<synchronous>, transform_indices = @transform_1, window_bounds = array<i64: 32, 96>}, {pipeline_mode = #tpu.pipeline_mode<synchronous>, transform_indices = @transform_2, window_bounds = array<i64: 1, 96>}, {pipeline_mode = #tpu.pipeline_mode<synchronous>, transform_indices = @transform_3, window_bounds = array<i64: 32, 32>}, {pipeline_mode = #tpu.pipeline_mode<synchronous>, transform_indices = @transform_4, window_bounds = array<i64: 1, 32>}, {transform_indices = @transform_5, window_bounds = array<i64: 2, 8, 32>}]} {
    %c0 = arith.constant 0 : index
    %c0_0 = arith.constant 0 : index
    %c0_1 = arith.constant 0 : index
    %0 = vector.load %arg1[%c0, %c0_0, %c0_1] : memref<2x8x32xf32, #tpu.memory_space<vmem>>, vector<2x8x32xf32>
    %1 = vector.shape_cast %0 : vector<2x8x32xf32> to vector<16x32xf32>
    %c0_2 = arith.constant 0 : index
    %c0_3 = arith.constant 0 : index
    %2 = vector.load %arg2[%c0_2, %c0_3] : memref<32x96xf32, #tpu.memory_space<vmem>>, vector<32x96xf32>
    %cst = arith.constant dense<0.000000e+00> : vector<16x96xf32>
    %3 = tpu.matmul %1, %2, %cst {dimension_numbers = #tpu.dot_dimension_numbers<[1], [0], [0], [1], [0, 0, 1, 1], [], []>} : vector<16x32xf32>, vector<32x96xf32>, vector<16x96xf32> -> vector<16x96xf32>
    %c0_4 = arith.constant 0 : index
    %c0_5 = arith.constant 0 : index
    %4 = vector.load %arg3[%c0_4, %c0_5] : memref<1x96xf32, #tpu.memory_space<vmem>>, vector<1x96xf32>
    %5 = vector.broadcast %4 : vector<1x96xf32> to vector<16x96xf32>
    %6 = arith.addf %3, %5 : vector<16x96xf32>
    %7 = vector.extract_strided_slice %6 {offsets = [0, 0], sizes = [16, 32], strides = [1, 1]} : vector<16x96xf32> to vector<16x32xf32>
    %cst_6 = arith.constant 0.353553385 : f32
    %8 = vector.broadcast %cst_6 : f32 to vector<16x32xf32>
    %9 = arith.mulf %7, %8 : vector<16x32xf32>
    %10 = vector.extract_strided_slice %6 {offsets = [0, 32], sizes = [16, 32], strides = [1, 1]} : vector<16x96xf32> to vector<16x32xf32>
    %11 = vector.extract_strided_slice %6 {offsets = [0, 64], sizes = [16, 32], strides = [1, 1]} : vector<16x96xf32> to vector<16x32xf32>
    %12 = vector.shape_cast %9 : vector<16x32xf32> to vector<16x4x8xf32>
    %13 = tpu.transpose %12, [1, 0, 2] : vector<16x4x8xf32> -> vector<4x16x8xf32>
    %14 = vector.shape_cast %13 : vector<4x16x8xf32> to vector<8x8x8xf32>
    %15 = vector.shape_cast %10 : vector<16x32xf32> to vector<16x4x8xf32>
    %16 = tpu.transpose %15, [1, 0, 2] : vector<16x4x8xf32> -> vector<4x16x8xf32>
    %17 = vector.shape_cast %16 : vector<4x16x8xf32> to vector<8x8x8xf32>
    %18 = vector.shape_cast %11 : vector<16x32xf32> to vector<16x4x8xf32>
    %19 = tpu.transpose %18, [1, 0, 2] : vector<16x4x8xf32> -> vector<4x16x8xf32>
    %20 = vector.shape_cast %19 : vector<4x16x8xf32> to vector<8x8x8xf32>
    "tpu.trace_start"() <{level = 10 : i32, message = "bqd,bkd->bqk"}> : () -> ()
    %cst_7 = arith.constant dense<0.000000e+00> : vector<8x8x8xf32>
    %21 = tpu.matmul %14, %17, %cst_7 {dimension_numbers = #tpu.dot_dimension_numbers<[2], [2], [1], [1], [0, 0, 0, 1, 1, 1], [0], [0]>} : vector<8x8x8xf32>, vector<8x8x8xf32>, vector<8x8x8xf32> -> vector<8x8x8xf32>
    "tpu.trace_stop"() : () -> ()
    %cst_8 = arith.constant dense<0xFF800000> : vector<8x8xf32>
    %22 = vector.multi_reduction <maximumf>, %21, %cst_8 [2] : vector<8x8x8xf32> to vector<8x8xf32>
    %23 = vector.shape_cast %22 : vector<8x8xf32> to vector<8x8x1xf32>
    %24 = vector.broadcast %23 : vector<8x8x1xf32> to vector<8x8x8xf32>
    %25 = arith.subf %21, %24 : vector<8x8x8xf32>
    %26 = math.exp %25 : vector<8x8x8xf32>
    %cst_9 = arith.constant dense<0.000000e+00> : vector<8x8xf32>
    %27 = vector.multi_reduction <add>, %26, %cst_9 [2] : vector<8x8x8xf32> to vector<8x8xf32>
    %28 = vector.shape_cast %27 : vector<8x8xf32> to vector<8x8x1xf32>
    %29 = tpu.reciprocal %28 {approx = true} : vector<8x8x1xf32> -> vector<8x8x1xf32>
    %30 = arith.mulf %28, %29 : vector<8x8x1xf32>
    %cst_10 = arith.constant 2.000000e+00 : f32
    %31 = vector.broadcast %cst_10 : f32 to vector<8x8x1xf32>
    %32 = arith.subf %31, %30 : vector<8x8x1xf32>
    %33 = arith.mulf %29, %32 : vector<8x8x1xf32>
    %34 = vector.broadcast %33 : vector<8x8x1xf32> to vector<8x8x8xf32>
    %35 = arith.mulf %26, %34 : vector<8x8x8xf32>
    "tpu.trace_start"() <{level = 10 : i32, message = "bqk,bkd->bqd"}> : () -> ()
    %cst_11 = arith.constant dense<0.000000e+00> : vector<8x8x8xf32>
    %36 = tpu.matmul %35, %20, %cst_11 {dimension_numbers = #tpu.dot_dimension_numbers<[2], [1], [1], [2], [0, 0, 0, 1, 1, 2], [0], [0]>} : vector<8x8x8xf32>, vector<8x8x8xf32>, vector<8x8x8xf32> -> vector<8x8x8xf32>
    "tpu.trace_stop"() : () -> ()
    %37 = vector.shape_cast %36 : vector<8x8x8xf32> to vector<4x16x8xf32>
    %38 = tpu.transpose %37, [1, 0, 2] : vector<4x16x8xf32> -> vector<16x4x8xf32>
    %39 = vector.shape_cast %38 : vector<16x4x8xf32> to vector<16x32xf32>
    %c0_12 = arith.constant 0 : index
    %c0_13 = arith.constant 0 : index
    %40 = vector.load %arg4[%c0_12, %c0_13] : memref<32x32xf32, #tpu.memory_space<vmem>>, vector<32x32xf32>
    %cst_14 = arith.constant dense<0.000000e+00> : vector<16x32xf32>
    %41 = tpu.matmul %39, %40, %cst_14 {dimension_numbers = #tpu.dot_dimension_numbers<[1], [0], [0], [1], [0, 0, 1, 1], [], []>} : vector<16x32xf32>, vector<32x32xf32>, vector<16x32xf32> -> vector<16x32xf32>
    %c0_15 = arith.constant 0 : index
    %c0_16 = arith.constant 0 : index
    %42 = vector.load %arg5[%c0_15, %c0_16] : memref<1x32xf32, #tpu.memory_space<vmem>>, vector<1x32xf32>
    %43 = vector.broadcast %42 : vector<1x32xf32> to vector<16x32xf32>
    %44 = arith.addf %41, %43 : vector<16x32xf32>
    %45 = vector.shape_cast %44 : vector<16x32xf32> to vector<2x8x32xf32>
    %c0_17 = arith.constant 0 : index
    %c0_18 = arith.constant 0 : index
    %c0_19 = arith.constant 0 : index
    %46 = vector.load %arg6[%c0_17, %c0_18, %c0_19] : memref<2x8x32xf32, #tpu.memory_space<vmem>>, vector<2x8x32xf32>
    tpu.vector_store %arg6[%c0_17, %c0_18, %c0_19], %45 {strides = array<i32>} : memref<2x8x32xf32, #tpu.memory_space<vmem>>, vector<2x8x32xf32>,
    return
  }
  func.func @transform_0(%arg0: i32) -> (i32, i32, i32) {
    %c0_i32 = arith.constant 0 : i32
    %c0_i32_0 = arith.constant 0 : i32
    %c0_i32_1 = arith.constant 0 : i32
    return %arg0, %c0_i32, %c0_i32_0 : i32, i32, i32
  }
  func.func @transform_1(%arg0: i32) -> (i32, i32) {
    %c0_i32 = arith.constant 0 : i32
    %c0_i32_0 = arith.constant 0 : i32
    %c0_i32_1 = arith.constant 0 : i32
    return %c0_i32, %c0_i32_0 : i32, i32
  }
  func.func @transform_2(%arg0: i32) -> (i32, i32) {
    %c0_i32 = arith.constant 0 : i32
    %c0_i32_0 = arith.constant 0 : i32
    %c0_i32_1 = arith.constant 0 : i32
    return %c0_i32, %c0_i32_0 : i32, i32
  }
  func.func @transform_3(%arg0: i32) -> (i32, i32) {
    %c0_i32 = arith.constant 0 : i32
    %c0_i32_0 = arith.constant 0 : i32
    %c0_i32_1 = arith.constant 0 : i32
    return %c0_i32, %c0_i32_0 : i32, i32
  }
  func.func @transform_4(%arg0: i32) -> (i32, i32) {
    %c0_i32 = arith.constant 0 : i32
    %c0_i32_0 = arith.constant 0 : i32
    %c0_i32_1 = arith.constant 0 : i32
    return %c0_i32, %c0_i32_0 : i32, i32
  }
  func.func @transform_5(%arg0: i32) -> (i32, i32, i32) {
    %c0_i32 = arith.constant 0 : i32
    %c0_i32_0 = arith.constant 0 : i32
    %c0_i32_1 = arith.constant 0 : i32
    return %arg0, %c0_i32, %c0_i32_0 : i32, i32, i32
  }
}

</mosaic_0001>

<llo_original>
// kernel: tpu_custom_call.1
$region0: #{tpu_custom_call.1}
  #allocation0 [shape = 'u32[]', space=smem, size = 0x4, offset = 0x4, fixed_abs, tag = 'smem constant byte address 0x4 - core index']
  #allocation1 [shape = 'u32[144,128]{1,0:T(1,128)}', space=vmem, size = 0x12000, scoped, tag = 'internal scratch']
  %s0 = inlined_call_operand.hbm [shape: f32[2,8,32], index: 0, kind: input, shape index: {}]
  %s1 = inlined_call_operand.hbm [shape: f32[32,96], index: 1, kind: input, shape index: {}]
  %s2 = inlined_call_operand.vmem [shape: f32[1,96], index: 2, kind: input, shape index: {}]
  %s3 = inlined_call_operand.hbm [shape: f32[32,32], index: 3, kind: input, shape index: {}]
  %s4 = inlined_call_operand.vmem [shape: f32[1,32], index: 4, kind: input, shape index: {}]
  %s5 = inlined_call_operand.hbm [shape: f32[2,8,32], index: 5, kind: output, shape index: {}]
  %s6 = sld [smem:[#allocation0]]
  $region42: #{tpu_custom_call.1} parent=0
    _
  %s8 = ssub.s32 1, %s6
  %s9 = scalar_select 0, %s8, %s6
  $region1: #{tpu_custom_call.1} parent=0
    #allocation2 [shape = 'u8[8192]{0}', space=vmem, size = 0x2000, scoped, tag = 'input window, operand 0, single buffered']
    #allocation3 [shape = 's32[1]{0}', space=sflag, size = 0x4, scoped, tag = 'scoped memory for tpu_custom_call.1']
    #allocation4 [shape = 's32[1]{0}', space=sflag, size = 0x4, scoped, tag = 'scoped memory for tpu_custom_call.1']
    #allocation5 [shape = 'u8[16384]{0}', space=vmem, size = 0x4000, scoped, tag = 'input window, operand 1, single buffered']
    #allocation6 [shape = 's32[1]{0}', space=sflag, size = 0x4, scoped, tag = 'scoped memory for tpu_custom_call.1']
    #allocation7 [shape = 'u8[16384]{0}', space=vmem, size = 0x4000, scoped, tag = 'input window, operand 3, single buffered']
    #allocation8 [shape = 'u8[8192]{0}', space=vmem, size = 0x2000, scoped, tag = 'output window, operand 0, single buffered']
    %10 = vsyncpa [#allocation3], 0
    %11 = vsyncpa [#allocation6], 0
    %12 = vsyncpa [#allocation4], 0
    // Predicated region
    $region2: #{tpu_custom_call.1} parent=1 // pred_check
      _
    $region3: #{tpu_custom_call.1} parent=1 // pred_check_branch
      %14 = sbr.rel (0) target = $region5
    $region4: #{tpu_custom_call.1} parent=1 // pred_region
      %s16 = ssub.s32 256, 256
      %17 = vsyncadd [#allocation3], %s16
      %s18 = sshll.u32 [#allocation2], 4
      %s19 = int_to_ptr.vmem [resolvable:$true] %s18
      %24 = dma.hbm_to_vmem [thread:$0]  %s0, 256, %s19, [#allocation3], 128, 128, 8
    $region5: #{tpu_custom_call.1} parent=1 // pred_fallthru
      _
    // Predicated region
    $region6: #{tpu_custom_call.1} parent=1 // pred_check
      _
    $region7: #{tpu_custom_call.1} parent=1 // pred_check_branch
      %26 = sbr.rel (0) target = $region9
    $region8: #{tpu_custom_call.1} parent=1 // pred_region
      %s28 = ssub.s32 512, 512
      %29 = vsyncadd [#allocation6], %s28
      %s30 = sshll.u32 [#allocation5], 4
      %s31 = int_to_ptr.vmem [resolvable:$true] %s30
      %36 = dma.hbm_to_vmem [thread:$0]  %s1, 512, %s31, [#allocation6], 128, 128, 8
    $region9: #{tpu_custom_call.1} parent=1 // pred_fallthru
      _
    // Predicated region
    $region10: #{tpu_custom_call.1} parent=1 // pred_check
      _
    $region11: #{tpu_custom_call.1} parent=1 // pred_check_branch
      %38 = sbr.rel (0) target = $region13
    $region12: #{tpu_custom_call.1} parent=1 // pred_region
      _
    $region13: #{tpu_custom_call.1} parent=1 // pred_fallthru
      _
    // Predicated region
    $region14: #{tpu_custom_call.1} parent=1 // pred_check
      _
    $region15: #{tpu_custom_call.1} parent=1 // pred_check_branch
      %40 = sbr.rel (0) target = $region17
    $region16: #{tpu_custom_call.1} parent=1 // pred_region
      %s42 = ssub.s32 512, 512
      %43 = vsyncadd [#allocation6], %s42
      %s44 = sshll.u32 [#allocation7], 4
      %s45 = int_to_ptr.vmem [resolvable:$true] %s44
      %50 = dma.hbm_to_vmem [thread:$0]  %s3, 512, %s45, [#allocation6], 128, 128, 8
    $region17: #{tpu_custom_call.1} parent=1 // pred_fallthru
      _
    // Predicated region
    $region18: #{tpu_custom_call.1} parent=1 // pred_check
      _
    $region19: #{tpu_custom_call.1} parent=1 // pred_check_branch
      %52 = sbr.rel (0) target = $region21
    $region20: #{tpu_custom_call.1} parent=1 // pred_region
      _
    $region21: #{tpu_custom_call.1} parent=1 // pred_fallthru
      _
    // Predicated region
    $region22: #{tpu_custom_call.1} parent=1 // pred_check
      _
    $region23: #{tpu_custom_call.1} parent=1 // pred_check_branch
      %54 = sbr.rel (0) target = $region25
    $region24: #{tpu_custom_call.1} parent=1 // pred_region
      %55 = dma.done [#allocation3], 256
    $region25: #{tpu_custom_call.1} parent=1 // pred_fallthru
      _
    // Predicated region
    $region26: #{tpu_custom_call.1} parent=1 // pred_check
      _
    $region27: #{tpu_custom_call.1} parent=1 // pred_check_branch
      %57 = sbr.rel (0) target = $region29
    $region28: #{tpu_custom_call.1} parent=1 // pred_region
      %58 = dma.done [#allocation6], 512
    $region29: #{tpu_custom_call.1} parent=1 // pred_fallthru
      _
    // Predicated region
    $region30: #{tpu_custom_call.1} parent=1 // pred_check
      _
    $region31: #{tpu_custom_call.1} parent=1 // pred_check_branch
      %60 = sbr.rel (0) target = $region33
    $region32: #{tpu_custom_call.1} parent=1 // pred_region
      %61 = dma.done [#allocation6], 512
    $region33: #{tpu_custom_call.1} parent=1 // pred_fallthru
      _
    %v62 = vld [vmem:[#allocation2] sm:$0xff]
    %v63 = vld [vmem:[#allocation2 + $0x8] sm:$0xff]
    %v64 = vld [vmem:[#allocation5] sm:$0xff]
    %v65 = vld [vmem:[#allocation5 + $0x8] sm:$0xff]
    %v66 = vld [vmem:[#allocation5 + $0x10] sm:$0xff]
    %v67 = vld [vmem:[#allocation5 + $0x18] sm:$0xff]
    %v68 = vld [vmem:[%s2] sm:$0x1]
    %v70 = vlaneseq
    %v71 = vshrl.u32 %v70, 7
    %v72 = vsub.s32 0, %v71
    %v73 = vrot.slane %v68, %v72
    %vm75 = vcmask 261120
    %v77 = vsel %vm75, %v62, 0
    %v80 = vsel %vm75, %v63, 0
    %82 = vmatprep.subr.mxu0 0.0
    %83 = vmatpush1.msra.mxu0 0.0
    %84 = vmatprep.subr.mxu0 0.0
    %85 = vmatpush1.msra.mxu0 0.0
    %86 = vmatprep.subr.mxu0 0.0
    %87 = vmatpush1.msra.mxu0 0.0
    %88 = vmatprep.subr.mxu0 0.0
    %89 = vmatpush1.msra.mxu0 0.0
    %90 = vmatprep.subr.mxu0 0.0
    %91 = vmatpush1.msra.mxu0 0.0
    %92 = vmatprep.subr.mxu0 0.0
    %93 = vmatpush1.msra.mxu0 0.0
    %94 = vmatprep.subr.mxu0 0.0
    %95 = vmatpush1.msra.mxu0 0.0
    %96 = vmatprep.subr.mxu0 0.0
    %97 = vmatpush1.msra.mxu0 0.0
    %98 = vmatprep.subr.mxu0 0.0
    %99 = vmatpush1.msra.mxu0 0.0
    %100 = vmatprep.subr.mxu0 0.0
    %101 = vmatpush1.msra.mxu0 0.0
    %102 = vmatprep.subr.mxu0 0.0
    %103 = vmatpush1.msra.mxu0 0.0
    %104 = vmatprep.subr.mxu0 0.0
    %105 = vmatpush1.msra.mxu0 0.0
    %106 = vmatprep.subr.mxu0 0.0
    %107 = vmatpush1.msra.mxu0 %v67
    %108 = vmatprep.subr.mxu0 0.0
    %109 = vmatpush1.msra.mxu0 %v66
    %110 = vmatprep.subr.mxu0 0.0
    %111 = vmatpush1.msra.mxu0 %v65
    %112 = vmatprep.subr.mxu0 0.0
    %113 = vmatpush1.msra.mxu0 %v64
    %114 = vmatprep.subr.mxu0 0.0
    %115 = vmatpush2.msra.mxu0 0.0
    %116 = vmatprep.subr.mxu0 0.0
    %117 = vmatpush2.msra.mxu0 0.0
    %118 = vmatprep.subr.mxu0 0.0
    %119 = vmatpush2.msra.mxu0 0.0
    %120 = vmatprep.subr.mxu0 0.0
    %121 = vmatpush2.msra.mxu0 0.0
    %122 = vmatprep.subr.mxu0 0.0
    %123 = vmatpush2.msra.mxu0 0.0
    %124 = vmatprep.subr.mxu0 0.0
    %125 = vmatpush2.msra.mxu0 0.0
    %126 = vmatprep.subr.mxu0 0.0
    %127 = vmatpush2.msra.mxu0 0.0
    %128 = vmatprep.subr.mxu0 0.0
    %129 = vmatpush2.msra.mxu0 0.0
    %130 = vmatprep.subr.mxu0 0.0
    %131 = vmatpush2.msra.mxu0 0.0
    %132 = vmatprep.subr.mxu0 0.0
    %133 = vmatpush2.msra.mxu0 0.0
    %134 = vmatprep.subr.mxu0 0.0
    %135 = vmatpush2.msra.mxu0 0.0
    %136 = vmatprep.subr.mxu0 0.0
    %137 = vmatpush2.msra.mxu0 0.0
    %138 = vmatprep.subr.mxu0 0.0
    %139 = vmatpush2.msra.mxu0 0.0
    %140 = vmatprep.subr.mxu0 0.0
    %141 = vmatpush2.msra.mxu0 0.0
    %142 = vmatprep.subr.mxu0 0.0
    %143 = vmatpush2.msra.mxu0 0.0
    %144 = vmatprep.subr.mxu0 0.0
    %145 = vmatpush2.msra.mxu0 0.0
    %146 = vmatprep.mubr.f32.mxu0 0.0
    %147 = vmatmul.mubr.f32.gmra.mxu0 %v77
    %v148 = vpop.f32.mrf.mxu0
    %v149 = vadd.f32 %v73, %v148
    %v150 = vpop.f32.mrf.mxu0
    %151 = vmatprep.mubr.f32.mxu0 0.0
    %152 = vmatmul.mubr.f32.gmra.mxu0 %v80
    %v153 = vpop.f32.mrf.mxu0
    %v154 = vadd.f32 %v73, %v153
    %v155 = vpop.f32.mrf.mxu0
    %156 = vdwg.mxu0
    %v157 = vmul.f32 %v149, 0.35355338
    %v158 = vmul.f32 %v154, 0.35355338
    %161 = vrot.lane.b32.xlu0 %v157, 120
    %v162 = vpop.permute.xlu0 %161
    %163 = vrot.lane.b32.xlu0 %v158, 120
    %v164 = vpop.permute.xlu0 %163
    %167 = vrot.lane.b32.xlu0 %v157, 112
    %v168 = vpop.permute.xlu0 %167
    %169 = vrot.lane.b32.xlu0 %v158, 112
    %v170 = vpop.permute.xlu0 %169
    %173 = vrot.lane.b32.xlu0 %v157, 104
    %v174 = vpop.permute.xlu0 %173
    %175 = vrot.lane.b32.xlu0 %v158, 104
    %v176 = vpop.permute.xlu0 %175
    %v179 = vcombine.low %v157, %v168
    %v180 = vcombine.high %v157, %v168
    %v182 = vunpack.c.l.s4 1983009808
    %v183 = vunpack.c.0.s8 %v182
    %v184 = vlaneseq
    %v185 = vshrl.u32 %v184, 7
    %v186 = vsub.s32 %v183, %v185
    %v187 = vrot.slane %v179, %v186
    %v189 = vunpack.c.l.s4 1983009808
    %v190 = vunpack.c.0.s8 %v189
    %v191 = vlaneseq
    %v192 = vshrl.u32 %v191, 7
    %v193 = vsub.s32 %v190, %v192
    %v194 = vrot.slane %v180, %v193
    %v195 = vcombine.low %v162, %v174
    %v196 = vcombine.high %v162, %v174
    %v198 = vunpack.c.l.s4 1983009808
    %v199 = vunpack.c.0.s8 %v198
    %v200 = vlaneseq
    %v201 = vshrl.u32 %v200, 7
    %v202 = vsub.s32 %v199, %v201
    %v203 = vrot.slane %v195, %v202
    %v205 = vunpack.c.l.s4 1983009808
    %v206 = vunpack.c.0.s8 %v205
    %v207 = vlaneseq
    %v208 = vshrl.u32 %v207, 7
    %v209 = vsub.s32 %v206, %v208
    %v210 = vrot.slane %v196, %v209
    %v211 = vcombine.low %v187, %v203
    %v212 = vcombine.high %v187, %v203
    %v214 = vunpack.c.l.s4 1934713408
    %v215 = vunpack.c.0.s8 %v214
    %v216 = vlaneseq
    %v217 = vshrl.u32 %v216, 7
    %v218 = vsub.s32 %v215, %v217
    %v219 = vrot.slane %v211, %v218
    %v221 = vunpack.c.l.s4 1934713408
    %v222 = vunpack.c.0.s8 %v221
    %v223 = vlaneseq
    %v224 = vshrl.u32 %v223, 7
    %v225 = vsub.s32 %v222, %v224
    %v226 = vrot.slane %v212, %v225
    %v227 = vcombine.low %v194, %v210
    %v228 = vcombine.high %v194, %v210
    %v230 = vunpack.c.l.s4 1934713408
    %v231 = vunpack.c.0.s8 %v230
    %v232 = vlaneseq
    %v233 = vshrl.u32 %v232, 7
    %v234 = vsub.s32 %v231, %v233
    %v235 = vrot.slane %v227, %v234
    %v237 = vunpack.c.l.s4 1934713408
    %v238 = vunpack.c.0.s8 %v237
    %v239 = vlaneseq
    %v240 = vshrl.u32 %v239, 7
    %v241 = vsub.s32 %v238, %v240
    %v242 = vrot.slane %v228, %v241
    %v243 = vcombine.high %v219, 0.0
    %v244 = vcombine.high %v226, 0.0
    %v245 = vcombine.high %v235, 0.0
    %v246 = vcombine.high %v242, 0.0
    %v247 = vcombine.low %v158, %v170
    %v248 = vcombine.high %v158, %v170
    %v250 = vunpack.c.l.s4 1983009808
    %v251 = vunpack.c.0.s8 %v250
    %v252 = vlaneseq
    %v253 = vshrl.u32 %v252, 7
    %v254 = vsub.s32 %v251, %v253
    %v255 = vrot.slane %v247, %v254
    %v257 = vunpack.c.l.s4 1983009808
    %v258 = vunpack.c.0.s8 %v257
    %v259 = vlaneseq
    %v260 = vshrl.u32 %v259, 7
    %v261 = vsub.s32 %v258, %v260
    %v262 = vrot.slane %v248, %v261
    %v263 = vcombine.low %v164, %v176
    %v264 = vcombine.high %v164, %v176
    %v266 = vunpack.c.l.s4 1983009808
    %v267 = vunpack.c.0.s8 %v266
    %v268 = vlaneseq
    %v269 = vshrl.u32 %v268, 7
    %v270 = vsub.s32 %v267, %v269
    %v271 = vrot.slane %v263, %v270
    %v273 = vunpack.c.l.s4 1983009808
    %v274 = vunpack.c.0.s8 %v273
    %v275 = vlaneseq
    %v276 = vshrl.u32 %v275, 7
    %v277 = vsub.s32 %v274, %v276
    %v278 = vrot.slane %v264, %v277
    %v279 = vcombine.low %v255, %v271
    %v280 = vcombine.high %v255, %v271
    %v282 = vunpack.c.l.s4 1934713408
    %v283 = vunpack.c.0.s8 %v282
    %v284 = vlaneseq
    %v285 = vshrl.u32 %v284, 7
    %v286 = vsub.s32 %v283, %v285
    %v287 = vrot.slane %v279, %v286
    %v289 = vunpack.c.l.s4 1934713408
    %v290 = vunpack.c.0.s8 %v289
    %v291 = vlaneseq
    %v292 = vshrl.u32 %v291, 7
    %v293 = vsub.s32 %v290, %v292
    %v294 = vrot.slane %v280, %v293
    %v295 = vcombine.low %v262, %v278
    %v296 = vcombine.high %v262, %v278
    %v298 = vunpack.c.l.s4 1934713408
    %v299 = vunpack.c.0.s8 %v298
    %v300 = vlaneseq
    %v301 = vshrl.u32 %v300, 7
    %v302 = vsub.s32 %v299, %v301
    %v303 = vrot.slane %v295, %v302
    %v305 = vunpack.c.l.s4 1934713408
    %v306 = vunpack.c.0.s8 %v305
    %v307 = vlaneseq
    %v308 = vshrl.u32 %v307, 7
    %v309 = vsub.s32 %v306, %v308
    %v310 = vrot.slane %v296, %v309
    %v311 = vcombine.high %v287, 0.0
    %v312 = vcombine.high %v294, 0.0
    %v313 = vcombine.high %v303, 0.0
    %v314 = vcombine.high %v310, 0.0
    %v315 = vcombine.low %v219, %v226
    %v317 = vunpack.c.l.s4 1983009808
    %v318 = vunpack.c.0.s8 %v317
    %v319 = vlaneseq
    %v320 = vshrl.u32 %v319, 7
    %v321 = vsub.s32 %v318, %v320
    %v322 = vrot.slane %v315, %v321
    %v323 = vcombine.low %v243, %v244
    %v325 = vunpack.c.l.s4 1983009808
    %v326 = vunpack.c.0.s8 %v325
    %v327 = vlaneseq
    %v328 = vshrl.u32 %v327, 7
    %v329 = vsub.s32 %v326, %v328
    %v330 = vrot.slane %v323, %v329
    %v331 = vcombine.low %v235, %v242
    %v333 = vunpack.c.l.s4 1983009808
    %v334 = vunpack.c.0.s8 %v333
    %v335 = vlaneseq
    %v336 = vshrl.u32 %v335, 7
    %v337 = vsub.s32 %v334, %v336
    %v338 = vrot.slane %v331, %v337
    %v339 = vcombine.low %v245, %v246
    %v341 = vunpack.c.l.s4 1983009808
    %v342 = vunpack.c.0.s8 %v341
    %v343 = vlaneseq
    %v344 = vshrl.u32 %v343, 7
    %v345 = vsub.s32 %v342, %v344
    %v346 = vrot.slane %v339, %v345
    %v347 = vcombine.low %v322, %v330
    %v348 = vcombine.high %v322, %v330
    %v350 = vunpack.c.l.s4 1934713408
    %v351 = vunpack.c.0.s8 %v350
    %v352 = vlaneseq
    %v353 = vshrl.u32 %v352, 7
    %v354 = vsub.s32 %v351, %v353
    %v355 = vrot.slane %v347, %v354
    %v357 = vunpack.c.l.s4 1934713408
    %v358 = vunpack.c.0.s8 %v357
    %v359 = vlaneseq
    %v360 = vshrl.u32 %v359, 7
    %v361 = vsub.s32 %v358, %v360
    %v362 = vrot.slane %v348, %v361
    %v363 = vcombine.low %v338, %v346
    %v364 = vcombine.high %v338, %v346
    %v366 = vunpack.c.l.s4 1934713408
    %v367 = vunpack.c.0.s8 %v366
    %v368 = vlaneseq
    %v369 = vshrl.u32 %v368, 7
    %v370 = vsub.s32 %v367, %v369
    %v371 = vrot.slane %v363, %v370
    %v373 = vunpack.c.l.s4 1934713408
    %v374 = vunpack.c.0.s8 %v373
    %v375 = vlaneseq
    %v376 = vshrl.u32 %v375, 7
    %v377 = vsub.s32 %v374, %v376
    %v378 = vrot.slane %v364, %v377
    %v379 = vcombine.low %v355, %v371
    %v380 = vcombine.high %v355, %v371
    %v381 = vcombine.low %v362, %v378
    %v382 = vcombine.high %v362, %v378
    %v383 = vcombine.low %v287, %v294
    %v385 = vunpack.c.l.s4 1983009808
    %v386 = vunpack.c.0.s8 %v385
    %v387 = vlaneseq
    %v388 = vshrl.u32 %v387, 7
    %v389 = vsub.s32 %v386, %v388
    %v390 = vrot.slane %v383, %v389
    %v391 = vcombine.low %v311, %v312
    %v393 = vunpack.c.l.s4 1983009808
    %v394 = vunpack.c.0.s8 %v393
    %v395 = vlaneseq
    %v396 = vshrl.u32 %v395, 7
    %v397 = vsub.s32 %v394, %v396
    %v398 = vrot.slane %v391, %v397
    %v399 = vcombine.low %v303, %v310
    %v401 = vunpack.c.l.s4 1983009808
    %v402 = vunpack.c.0.s8 %v401
    %v403 = vlaneseq
    %v404 = vshrl.u32 %v403, 7
    %v405 = vsub.s32 %v402, %v404
    %v406 = vrot.slane %v399, %v405
    %v407 = vcombine.low %v313, %v314
    %v409 = vunpack.c.l.s4 1983009808
    %v410 = vunpack.c.0.s8 %v409
    %v411 = vlaneseq
    %v412 = vshrl.u32 %v411, 7
    %v413 = vsub.s32 %v410, %v412
    %v414 = vrot.slane %v407, %v413
    %v415 = vcombine.low %v390, %v398
    %v416 = vcombine.high %v390, %v398
    %v418 = vunpack.c.l.s4 1934713408
    %v419 = vunpack.c.0.s8 %v418
    %v420 = vlaneseq
    %v421 = vshrl.u32 %v420, 7
    %v422 = vsub.s32 %v419, %v421
    %v423 = vrot.slane %v415, %v422
    %v425 = vunpack.c.l.s4 1934713408
    %v426 = vunpack.c.0.s8 %v425
    %v427 = vlaneseq
    %v428 = vshrl.u32 %v427, 7
    %v429 = vsub.s32 %v426, %v428
    %v430 = vrot.slane %v416, %v429
    %v431 = vcombine.low %v406, %v414
    %v432 = vcombine.high %v406, %v414
    %v434 = vunpack.c.l.s4 1934713408
    %v435 = vunpack.c.0.s8 %v434
    %v436 = vlaneseq
    %v437 = vshrl.u32 %v436, 7
    %v438 = vsub.s32 %v435, %v437
    %v439 = vrot.slane %v431, %v438
    %v441 = vunpack.c.l.s4 1934713408
    %v442 = vunpack.c.0.s8 %v441
    %v443 = vlaneseq
    %v444 = vshrl.u32 %v443, 7
    %v445 = vsub.s32 %v442, %v444
    %v446 = vrot.slane %v432, %v445
    %v447 = vcombine.low %v423, %v439
    %v448 = vcombine.high %v423, %v439
    %v449 = vcombine.low %v430, %v446
    %v450 = vcombine.high %v430, %v446
    %453 = vrot.lane.b32.xlu0 %v149, 120
    %v454 = vpop.permute.xlu0 %453
    %455 = vrot.lane.b32.xlu0 %v154, 120
    %v456 = vpop.permute.xlu0 %455
    %457 = vrot.lane.b32.xlu0 %v149, 112
    %v458 = vpop.permute.xlu0 %457
    %459 = vrot.lane.b32.xlu0 %v154, 112
    %v460 = vpop.permute.xlu0 %459
    %461 = vrot.lane.b32.xlu0 %v149, 104
    %v462 = vpop.permute.xlu0 %461
    %463 = vrot.lane.b32.xlu0 %v154, 104
    %v464 = vpop.permute.xlu0 %463
    %465 = vrot.lane.b32.xlu0 %v149, 96
    %v466 = vpop.permute.xlu0 %465
    %467 = vrot.lane.b32.xlu0 %v154, 96
    %v468 = vpop.permute.xlu0 %467
    %469 = vrot.lane.b32.xlu0 %v454, 96
    %v470 = vpop.permute.xlu0 %469
    %471 = vrot.lane.b32.xlu0 %v456, 96
    %v472 = vpop.permute.xlu0 %471
    %473 = vrot.lane.b32.xlu0 %v458, 96
    %v474 = vpop.permute.xlu0 %473
    %475 = vrot.lane.b32.xlu0 %v460, 96
    %v476 = vpop.permute.xlu0 %475
    %477 = vrot.lane.b32.xlu0 %v462, 96
    %v478 = vpop.permute.xlu0 %477
    %479 = vrot.lane.b32.xlu0 %v464, 96
    %v480 = vpop.permute.xlu0 %479
    %v489 = vcombine.low %v466, %v474
    %v490 = vcombine.high %v466, %v474
    %v492 = vunpack.c.l.s4 1983009808
    %v493 = vunpack.c.0.s8 %v492
    %v494 = vlaneseq
    %v495 = vshrl.u32 %v494, 7
    %v496 = vsub.s32 %v493, %v495
    %v497 = vrot.slane %v489, %v496
    %v499 = vunpack.c.l.s4 1983009808
    %v500 = vunpack.c.0.s8 %v499
    %v501 = vlaneseq
    %v502 = vshrl.u32 %v501, 7
    %v503 = vsub.s32 %v500, %v502
    %v504 = vrot.slane %v490, %v503
    %v505 = vcombine.low %v470, %v478
    %v506 = vcombine.high %v470, %v478
    %v508 = vunpack.c.l.s4 1983009808
    %v509 = vunpack.c.0.s8 %v508
    %v510 = vlaneseq
    %v511 = vshrl.u32 %v510, 7
    %v512 = vsub.s32 %v509, %v511
    %v513 = vrot.slane %v505, %v512
    %v515 = vunpack.c.l.s4 1983009808
    %v516 = vunpack.c.0.s8 %v515
    %v517 = vlaneseq
    %v518 = vshrl.u32 %v517, 7
    %v519 = vsub.s32 %v516, %v518
    %v520 = vrot.slane %v506, %v519
    %v521 = vcombine.low %v497, %v513
    %v522 = vcombine.high %v497, %v513
    %v524 = vunpack.c.l.s4 1934713408
    %v525 = vunpack.c.0.s8 %v524
    %v526 = vlaneseq
    %v527 = vshrl.u32 %v526, 7
    %v528 = vsub.s32 %v525, %v527
    %v529 = vrot.slane %v521, %v528
    %v531 = vunpack.c.l.s4 1934713408
    %v532 = vunpack.c.0.s8 %v531
    %v533 = vlaneseq
    %v534 = vshrl.u32 %v533, 7
    %v535 = vsub.s32 %v532, %v534
    %v536 = vrot.slane %v522, %v535
    %v537 = vcombine.low %v504, %v520
    %v538 = vcombine.high %v504, %v520
    %v540 = vunpack.c.l.s4 1934713408
    %v541 = vunpack.c.0.s8 %v540
    %v542 = vlaneseq
    %v543 = vshrl.u32 %v542, 7
    %v544 = vsub.s32 %v541, %v543
    %v545 = vrot.slane %v537, %v544
    %v547 = vunpack.c.l.s4 1934713408
    %v548 = vunpack.c.0.s8 %v547
    %v549 = vlaneseq
    %v550 = vshrl.u32 %v549, 7
    %v551 = vsub.s32 %v548, %v550
    %v552 = vrot.slane %v538, %v551
    %v553 = vcombine.high %v529, 0.0
    %v554 = vcombine.high %v536, 0.0
    %v555 = vcombine.high %v545, 0.0
    %v556 = vcombine.high %v552, 0.0
    %v557 = vcombine.low %v468, %v476
    %v558 = vcombine.high %v468, %v476
    %v560 = vunpack.c.l.s4 1983009808
    %v561 = vunpack.c.0.s8 %v560
    %v562 = vlaneseq
    %v563 = vshrl.u32 %v562, 7
    %v564 = vsub.s32 %v561, %v563
    %v565 = vrot.slane %v557, %v564
    %v567 = vunpack.c.l.s4 1983009808
    %v568 = vunpack.c.0.s8 %v567
    %v569 = vlaneseq
    %v570 = vshrl.u32 %v569, 7
    %v571 = vsub.s32 %v568, %v570
    %v572 = vrot.slane %v558, %v571
    %v573 = vcombine.low %v472, %v480
    %v574 = vcombine.high %v472, %v480
    %v576 = vunpack.c.l.s4 1983009808
    %v577 = vunpack.c.0.s8 %v576
    %v578 = vlaneseq
    %v579 = vshrl.u32 %v578, 7
    %v580 = vsub.s32 %v577, %v579
    %v581 = vrot.slane %v573, %v580
    %v583 = vunpack.c.l.s4 1983009808
    %v584 = vunpack.c.0.s8 %v583
    %v585 = vlaneseq
    %v586 = vshrl.u32 %v585, 7
    %v587 = vsub.s32 %v584, %v586
    %v588 = vrot.slane %v574, %v587
    %v589 = vcombine.low %v565, %v581
    %v590 = vcombine.high %v565, %v581
    %v592 = vunpack.c.l.s4 1934713408
    %v593 = vunpack.c.0.s8 %v592
    %v594 = vlaneseq
    %v595 = vshrl.u32 %v594, 7
    %v596 = vsub.s32 %v593, %v595
    %v597 = vrot.slane %v589, %v596
    %v599 = vunpack.c.l.s4 1934713408
    %v600 = vunpack.c.0.s8 %v599
    %v601 = vlaneseq
    %v602 = vshrl.u32 %v601, 7
    %v603 = vsub.s32 %v600, %v602
    %v604 = vrot.slane %v590, %v603
    %v605 = vcombine.low %v572, %v588
    %v606 = vcombine.high %v572, %v588
    %v608 = vunpack.c.l.s4 1934713408
    %v609 = vunpack.c.0.s8 %v608
    %v610 = vlaneseq
    %v611 = vshrl.u32 %v610, 7
    %v612 = vsub.s32 %v609, %v611
    %v613 = vrot.slane %v605, %v612
    %v615 = vunpack.c.l.s4 1934713408
    %v616 = vunpack.c.0.s8 %v615
    %v617 = vlaneseq
    %v618 = vshrl.u32 %v617, 7
    %v619 = vsub.s32 %v616, %v618
    %v620 = vrot.slane %v606, %v619
    %v621 = vcombine.high %v597, 0.0
    %v622 = vcombine.high %v604, 0.0
    %v623 = vcombine.high %v613, 0.0
    %v624 = vcombine.high %v620, 0.0
    %v625 = vcombine.low %v529, %v536
    %v627 = vunpack.c.l.s4 1983009808
    %v628 = vunpack.c.0.s8 %v627
    %v629 = vlaneseq
    %v630 = vshrl.u32 %v629, 7
    %v631 = vsub.s32 %v628, %v630
    %v632 = vrot.slane %v625, %v631
    %v633 = vcombine.low %v553, %v554
    %v635 = vunpack.c.l.s4 1983009808
    %v636 = vunpack.c.0.s8 %v635
    %v637 = vlaneseq
    %v638 = vshrl.u32 %v637, 7
    %v639 = vsub.s32 %v636, %v638
    %v640 = vrot.slane %v633, %v639
    %v641 = vcombine.low %v545, %v552
    %v643 = vunpack.c.l.s4 1983009808
    %v644 = vunpack.c.0.s8 %v643
    %v645 = vlaneseq
    %v646 = vshrl.u32 %v645, 7
    %v647 = vsub.s32 %v644, %v646
    %v648 = vrot.slane %v641, %v647
    %v649 = vcombine.low %v555, %v556
    %v651 = vunpack.c.l.s4 1983009808
    %v652 = vunpack.c.0.s8 %v651
    %v653 = vlaneseq
    %v654 = vshrl.u32 %v653, 7
    %v655 = vsub.s32 %v652, %v654
    %v656 = vrot.slane %v649, %v655
    %v657 = vcombine.low %v632, %v640
    %v658 = vcombine.high %v632, %v640
    %v660 = vunpack.c.l.s4 1934713408
    %v661 = vunpack.c.0.s8 %v660
    %v662 = vlaneseq
    %v663 = vshrl.u32 %v662, 7
    %v664 = vsub.s32 %v661, %v663
    %v665 = vrot.slane %v657, %v664
    %v667 = vunpack.c.l.s4 1934713408
    %v668 = vunpack.c.0.s8 %v667
    %v669 = vlaneseq
    %v670 = vshrl.u32 %v669, 7
    %v671 = vsub.s32 %v668, %v670
    %v672 = vrot.slane %v658, %v671
    %v673 = vcombine.low %v648, %v656
    %v674 = vcombine.high %v648, %v656
    %v676 = vunpack.c.l.s4 1934713408
    %v677 = vunpack.c.0.s8 %v676
    %v678 = vlaneseq
    %v679 = vshrl.u32 %v678, 7
    %v680 = vsub.s32 %v677, %v679
    %v681 = vrot.slane %v673, %v680
    %v683 = vunpack.c.l.s4 1934713408
    %v684 = vunpack.c.0.s8 %v683
    %v685 = vlaneseq
    %v686 = vshrl.u32 %v685, 7
    %v687 = vsub.s32 %v684, %v686
    %v688 = vrot.slane %v674, %v687
    %v689 = vcombine.low %v665, %v681
    %v690 = vcombine.high %v665, %v681
    %v691 = vcombine.low %v672, %v688
    %v692 = vcombine.high %v672, %v688
    %v693 = vcombine.low %v597, %v604
    %v695 = vunpack.c.l.s4 1983009808
    %v696 = vunpack.c.0.s8 %v695
    %v697 = vlaneseq
    %v698 = vshrl.u32 %v697, 7
    %v699 = vsub.s32 %v696, %v698
    %v700 = vrot.slane %v693, %v699
    %v701 = vcombine.low %v621, %v622
    %v703 = vunpack.c.l.s4 1983009808
    %v704 = vunpack.c.0.s8 %v703
    %v705 = vlaneseq
    %v706 = vshrl.u32 %v705, 7
    %v707 = vsub.s32 %v704, %v706
    %v708 = vrot.slane %v701, %v707
    %v709 = vcombine.low %v613, %v620
    %v711 = vunpack.c.l.s4 1983009808
    %v712 = vunpack.c.0.s8 %v711
    %v713 = vlaneseq
    %v714 = vshrl.u32 %v713, 7
    %v715 = vsub.s32 %v712, %v714
    %v716 = vrot.slane %v709, %v715
    %v717 = vcombine.low %v623, %v624
    %v719 = vunpack.c.l.s4 1983009808
    %v720 = vunpack.c.0.s8 %v719
    %v721 = vlaneseq
    %v722 = vshrl.u32 %v721, 7
    %v723 = vsub.s32 %v720, %v722
    %v724 = vrot.slane %v717, %v723
    %v725 = vcombine.low %v700, %v708
    %v726 = vcombine.high %v700, %v708
    %v728 = vunpack.c.l.s4 1934713408
    %v729 = vunpack.c.0.s8 %v728
    %v730 = vlaneseq
    %v731 = vshrl.u32 %v730, 7
    %v732 = vsub.s32 %v729, %v731
    %v733 = vrot.slane %v725, %v732
    %v735 = vunpack.c.l.s4 1934713408
    %v736 = vunpack.c.0.s8 %v735
    %v737 = vlaneseq
    %v738 = vshrl.u32 %v737, 7
    %v739 = vsub.s32 %v736, %v738
    %v740 = vrot.slane %v726, %v739
    %v741 = vcombine.low %v716, %v724
    %v742 = vcombine.high %v716, %v724
    %v744 = vunpack.c.l.s4 1934713408
    %v745 = vunpack.c.0.s8 %v744
    %v746 = vlaneseq
    %v747 = vshrl.u32 %v746, 7
    %v748 = vsub.s32 %v745, %v747
    %v749 = vrot.slane %v741, %v748
    %v751 = vunpack.c.l.s4 1934713408
    %v752 = vunpack.c.0.s8 %v751
    %v753 = vlaneseq
    %v754 = vshrl.u32 %v753, 7
    %v755 = vsub.s32 %v752, %v754
    %v756 = vrot.slane %v742, %v755
    %v757 = vcombine.low %v733, %v749
    %v758 = vcombine.high %v733, %v749
    %v759 = vcombine.low %v740, %v756
    %v760 = vcombine.high %v740, %v756
    %761 = vrot.lane.b32.xlu0 %v149, 64
    %v762 = vpop.permute.xlu0 %761
    %763 = vrot.lane.b32.xlu0 %v154, 64
    %v764 = vpop.permute.xlu0 %763
    %765 = vrot.lane.b32.xlu0 %v454, 64
    %v766 = vpop.permute.xlu0 %765
    %767 = vrot.lane.b32.xlu0 %v456, 64
    %v768 = vpop.permute.xlu0 %767
    %769 = vrot.lane.b32.xlu0 %v458, 64
    %v770 = vpop.permute.xlu0 %769
    %771 = vrot.lane.b32.xlu0 %v460, 64
    %v772 = vpop.permute.xlu0 %771
    %773 = vrot.lane.b32.xlu0 %v462, 64
    %v774 = vpop.permute.xlu0 %773
    %775 = vrot.lane.b32.xlu0 %v464, 64
    %v776 = vpop.permute.xlu0 %775
    %v785 = vcombine.low %v762, %v770
    %v786 = vcombine.high %v762, %v770
    %v788 = vunpack.c.l.s4 1983009808
    %v789 = vunpack.c.0.s8 %v788
    %v790 = vlaneseq
    %v791 = vshrl.u32 %v790, 7
    %v792 = vsub.s32 %v789, %v791
    %v793 = vrot.slane %v785, %v792
    %v795 = vunpack.c.l.s4 1983009808
    %v796 = vunpack.c.0.s8 %v795
    %v797 = vlaneseq
    %v798 = vshrl.u32 %v797, 7
    %v799 = vsub.s32 %v796, %v798
    %v800 = vrot.slane %v786, %v799
    %v801 = vcombine.low %v766, %v774
    %v802 = vcombine.high %v766, %v774
    %v804 = vunpack.c.l.s4 1983009808
    %v805 = vunpack.c.0.s8 %v804
    %v806 = vlaneseq
    %v807 = vshrl.u32 %v806, 7
    %v808 = vsub.s32 %v805, %v807
    %v809 = vrot.slane %v801, %v808
    %v811 = vunpack.c.l.s4 1983009808
    %v812 = vunpack.c.0.s8 %v811
    %v813 = vlaneseq
    %v814 = vshrl.u32 %v813, 7
    %v815 = vsub.s32 %v812, %v814
    %v816 = vrot.slane %v802, %v815
    %v817 = vcombine.low %v793, %v809
    %v818 = vcombine.high %v793, %v809
    %v820 = vunpack.c.l.s4 1934713408
    %v821 = vunpack.c.0.s8 %v820
    %v822 = vlaneseq
    %v823 = vshrl.u32 %v822, 7
    %v824 = vsub.s32 %v821, %v823
    %v825 = vrot.slane %v817, %v824
    %v827 = vunpack.c.l.s4 1934713408
    %v828 = vunpack.c.0.s8 %v827
    %v829 = vlaneseq
    %v830 = vshrl.u32 %v829, 7
    %v831 = vsub.s32 %v828, %v830
    %v832 = vrot.slane %v818, %v831
    %v833 = vcombine.low %v800, %v816
    %v834 = vcombine.high %v800, %v816
    %v836 = vunpack.c.l.s4 1934713408
    %v837 = vunpack.c.0.s8 %v836
    %v838 = vlaneseq
    %v839 = vshrl.u32 %v838, 7
    %v840 = vsub.s32 %v837, %v839
    %v841 = vrot.slane %v833, %v840
    %v843 = vunpack.c.l.s4 1934713408
    %v844 = vunpack.c.0.s8 %v843
    %v845 = vlaneseq
    %v846 = vshrl.u32 %v845, 7
    %v847 = vsub.s32 %v844, %v846
    %v848 = vrot.slane %v834, %v847
    %v849 = vcombine.high %v825, 0.0
    %v850 = vcombine.high %v832, 0.0
    %v851 = vcombine.high %v841, 0.0
    %v852 = vcombine.high %v848, 0.0
    %v853 = vcombine.low %v764, %v772
    %v854 = vcombine.high %v764, %v772
    %v856 = vunpack.c.l.s4 1983009808
    %v857 = vunpack.c.0.s8 %v856
    %v858 = vlaneseq
    %v859 = vshrl.u32 %v858, 7
    %v860 = vsub.s32 %v857, %v859
    %v861 = vrot.slane %v853, %v860
    %v863 = vunpack.c.l.s4 1983009808
    %v864 = vunpack.c.0.s8 %v863
    %v865 = vlaneseq
    %v866 = vshrl.u32 %v865, 7
    %v867 = vsub.s32 %v864, %v866
    %v868 = vrot.slane %v854, %v867
    %v869 = vcombine.low %v768, %v776
    %v870 = vcombine.high %v768, %v776
    %v872 = vunpack.c.l.s4 1983009808
    %v873 = vunpack.c.0.s8 %v872
    %v874 = vlaneseq
    %v875 = vshrl.u32 %v874, 7
    %v876 = vsub.s32 %v873, %v875
    %v877 = vrot.slane %v869, %v876
    %v879 = vunpack.c.l.s4 1983009808
    %v880 = vunpack.c.0.s8 %v879
    %v881 = vlaneseq
    %v882 = vshrl.u32 %v881, 7
    %v883 = vsub.s32 %v880, %v882
    %v884 = vrot.slane %v870, %v883
    %v885 = vcombine.low %v861, %v877
    %v886 = vcombine.high %v861, %v877
    %v888 = vunpack.c.l.s4 1934713408
    %v889 = vunpack.c.0.s8 %v888
    %v890 = vlaneseq
    %v891 = vshrl.u32 %v890, 7
    %v892 = vsub.s32 %v889, %v891
    %v893 = vrot.slane %v885, %v892
    %v895 = vunpack.c.l.s4 1934713408
    %v896 = vunpack.c.0.s8 %v895
    %v897 = vlaneseq
    %v898 = vshrl.u32 %v897, 7
    %v899 = vsub.s32 %v896, %v898
    %v900 = vrot.slane %v886, %v899
    %v901 = vcombine.low %v868, %v884
    %v902 = vcombine.high %v868, %v884
    %v904 = vunpack.c.l.s4 1934713408
    %v905 = vunpack.c.0.s8 %v904
    %v906 = vlaneseq
    %v907 = vshrl.u32 %v906, 7
    %v908 = vsub.s32 %v905, %v907
    %v909 = vrot.slane %v901, %v908
    %v911 = vunpack.c.l.s4 1934713408
    %v912 = vunpack.c.0.s8 %v911
    %v913 = vlaneseq
    %v914 = vshrl.u32 %v913, 7
    %v915 = vsub.s32 %v912, %v914
    %v916 = vrot.slane %v902, %v915
    %v917 = vcombine.high %v893, 0.0
    %v918 = vcombine.high %v900, 0.0
    %v919 = vcombine.high %v909, 0.0
    %v920 = vcombine.high %v916, 0.0
    %v921 = vcombine.low %v825, %v832
    %v923 = vunpack.c.l.s4 1983009808
    %v924 = vunpack.c.0.s8 %v923
    %v925 = vlaneseq
    %v926 = vshrl.u32 %v925, 7
    %v927 = vsub.s32 %v924, %v926
    %v928 = vrot.slane %v921, %v927
    %v929 = vcombine.low %v849, %v850
    %v931 = vunpack.c.l.s4 1983009808
    %v932 = vunpack.c.0.s8 %v931
    %v933 = vlaneseq
    %v934 = vshrl.u32 %v933, 7
    %v935 = vsub.s32 %v932, %v934
    %v936 = vrot.slane %v929, %v935
    %v937 = vcombine.low %v841, %v848
    %v939 = vunpack.c.l.s4 1983009808
    %v940 = vunpack.c.0.s8 %v939
    %v941 = vlaneseq
    %v942 = vshrl.u32 %v941, 7
    %v943 = vsub.s32 %v940, %v942
    %v944 = vrot.slane %v937, %v943
    %v945 = vcombine.low %v851, %v852
    %v947 = vunpack.c.l.s4 1983009808
    %v948 = vunpack.c.0.s8 %v947
    %v949 = vlaneseq
    %v950 = vshrl.u32 %v949, 7
    %v951 = vsub.s32 %v948, %v950
    %v952 = vrot.slane %v945, %v951
    %v953 = vcombine.low %v928, %v936
    %v954 = vcombine.high %v928, %v936
    %v956 = vunpack.c.l.s4 1934713408
    %v957 = vunpack.c.0.s8 %v956
    %v958 = vlaneseq
    %v959 = vshrl.u32 %v958, 7
    %v960 = vsub.s32 %v957, %v959
    %v961 = vrot.slane %v953, %v960
    %v963 = vunpack.c.l.s4 1934713408
    %v964 = vunpack.c.0.s8 %v963
    %v965 = vlaneseq
    %v966 = vshrl.u32 %v965, 7
    %v967 = vsub.s32 %v964, %v966
    %v968 = vrot.slane %v954, %v967
    %v969 = vcombine.low %v944, %v952
    %v970 = vcombine.high %v944, %v952
    %v972 = vunpack.c.l.s4 1934713408
    %v973 = vunpack.c.0.s8 %v972
    %v974 = vlaneseq
    %v975 = vshrl.u32 %v974, 7
    %v976 = vsub.s32 %v973, %v975
    %v977 = vrot.slane %v969, %v976
    %v979 = vunpack.c.l.s4 1934713408
    %v980 = vunpack.c.0.s8 %v979
    %v981 = vlaneseq
    %v982 = vshrl.u32 %v981, 7
    %v983 = vsub.s32 %v980, %v982
    %v984 = vrot.slane %v970, %v983
    %v985 = vcombine.low %v961, %v977
    %v986 = vcombine.high %v961, %v977
    %v987 = vcombine.low %v968, %v984
    %v988 = vcombine.high %v968, %v984
    %v989 = vcombine.low %v893, %v900
    %v991 = vunpack.c.l.s4 1983009808
    %v992 = vunpack.c.0.s8 %v991
    %v993 = vlaneseq
    %v994 = vshrl.u32 %v993, 7
    %v995 = vsub.s32 %v992, %v994
    %v996 = vrot.slane %v989, %v995
    %v997 = vcombine.low %v917, %v918
    %v999 = vunpack.c.l.s4 1983009808
    %v1000 = vunpack.c.0.s8 %v999
    %v1001 = vlaneseq
    %v1002 = vshrl.u32 %v1001, 7
    %v1003 = vsub.s32 %v1000, %v1002
    %v1004 = vrot.slane %v997, %v1003
    %v1005 = vcombine.low %v909, %v916
    %v1007 = vunpack.c.l.s4 1983009808
    %v1008 = vunpack.c.0.s8 %v1007
    %v1009 = vlaneseq
    %v1010 = vshrl.u32 %v1009, 7
    %v1011 = vsub.s32 %v1008, %v1010
    %v1012 = vrot.slane %v1005, %v1011
    %v1013 = vcombine.low %v919, %v920
    %v1015 = vunpack.c.l.s4 1983009808
    %v1016 = vunpack.c.0.s8 %v1015
    %v1017 = vlaneseq
    %v1018 = vshrl.u32 %v1017, 7
    %v1019 = vsub.s32 %v1016, %v1018
    %v1020 = vrot.slane %v1013, %v1019
    %v1021 = vcombine.low %v996, %v1004
    %v1022 = vcombine.high %v996, %v1004
    %v1024 = vunpack.c.l.s4 1934713408
    %v1025 = vunpack.c.0.s8 %v1024
    %v1026 = vlaneseq
    %v1027 = vshrl.u32 %v1026, 7
    %v1028 = vsub.s32 %v1025, %v1027
    %v1029 = vrot.slane %v1021, %v1028
    %v1031 = vunpack.c.l.s4 1934713408
    %v1032 = vunpack.c.0.s8 %v1031
    %v1033 = vlaneseq
    %v1034 = vshrl.u32 %v1033, 7
    %v1035 = vsub.s32 %v1032, %v1034
    %v1036 = vrot.slane %v1022, %v1035
    %v1037 = vcombine.low %v1012, %v1020
    %v1038 = vcombine.high %v1012, %v1020
    %v1040 = vunpack.c.l.s4 1934713408
    %v1041 = vunpack.c.0.s8 %v1040
    %v1042 = vlaneseq
    %v1043 = vshrl.u32 %v1042, 7
    %v1044 = vsub.s32 %v1041, %v1043
    %v1045 = vrot.slane %v1037, %v1044
    %v1047 = vunpack.c.l.s4 1934713408
    %v1048 = vunpack.c.0.s8 %v1047
    %v1049 = vlaneseq
    %v1050 = vshrl.u32 %v1049, 7
    %v1051 = vsub.s32 %v1048, %v1050
    %v1052 = vrot.slane %v1038, %v1051
    %v1053 = vcombine.low %v1029, %v1045
    %v1054 = vcombine.high %v1029, %v1045
    %v1055 = vcombine.low %v1036, %v1052
    %v1056 = vcombine.high %v1036, %v1052
    %vm1057 = vcmask 64512
    %v1059 = vsel %vm1057, %v379, 0
    %v1062 = vsel %vm1057, %v689, 0
    %1064 = vmatprep.subr.mxu0 0.0
    %1065 = vmatpush1.xpose.msra.mxu0 0.0
    %1066 = vmatprep.subr.mxu0 0.0
    %1067 = vmatpush1.xpose.msra.mxu0 0.0
    %1068 = vmatprep.subr.mxu0 0.0
    %1069 = vmatpush1.xpose.msra.mxu0 0.0
    %1070 = vmatprep.subr.mxu0 0.0
    %1071 = vmatpush1.xpose.msra.mxu0 0.0
    %1072 = vmatprep.subr.mxu0 0.0
    %1073 = vmatpush1.xpose.msra.mxu0 0.0
    %1074 = vmatprep.subr.mxu0 0.0
    %1075 = vmatpush1.xpose.msra.mxu0 0.0
    %1076 = vmatprep.subr.mxu0 0.0
    %1077 = vmatpush1.xpose.msra.mxu0 0.0
    %1078 = vmatprep.subr.mxu0 0.0
    %1079 = vmatpush1.xpose.msra.mxu0 0.0
    %1080 = vmatprep.subr.mxu0 0.0
    %1081 = vmatpush1.xpose.msra.mxu0 0.0
    %1082 = vmatprep.subr.mxu0 0.0
    %1083 = vmatpush1.xpose.msra.mxu0 0.0
    %1084 = vmatprep.subr.mxu0 0.0
    %1085 = vmatpush1.xpose.msra.mxu0 0.0
    %1086 = vmatprep.subr.mxu0 0.0
    %1087 = vmatpush1.xpose.msra.mxu0 0.0
    %1088 = vmatprep.subr.mxu0 0.0
    %1089 = vmatpush1.xpose.msra.mxu0 0.0
    %1090 = vmatprep.subr.mxu0 0.0
    %1091 = vmatpush1.xpose.msra.mxu0 0.0
    %1092 = vmatprep.subr.mxu0 0.0
    %1093 = vmatpush1.xpose.msra.mxu0 0.0
    %1094 = vmatprep.subr.mxu0 0.0
    %1095 = vmatpush1.xpose.msra.mxu0 %v1062
    %1096 = vmatprep.subr.mxu0 0.0
    %1097 = vmatpush2.xpose.msra.mxu0 0.0
    %1098 = vmatprep.subr.mxu0 0.0
    %1099 = vmatpush2.xpose.msra.mxu0 0.0
    %1100 = vmatprep.subr.mxu0 0.0
    %1101 = vmatpush2.xpose.msra.mxu0 0.0
    %1102 = vmatprep.subr.mxu0 0.0
    %1103 = vmatpush2.xpose.msra.mxu0 0.0
    %1104 = vmatprep.subr.mxu0 0.0
    %1105 = vmatpush2.xpose.msra.mxu0 0.0
    %1106 = vmatprep.subr.mxu0 0.0
    %1107 = vmatpush2.xpose.msra.mxu0 0.0
    %1108 = vmatprep.subr.mxu0 0.0
    %1109 = vmatpush2.xpose.msra.mxu0 0.0
    %1110 = vmatprep.subr.mxu0 0.0
    %1111 = vmatpush2.xpose.msra.mxu0 0.0
    %1112 = vmatprep.subr.mxu0 0.0
    %1113 = vmatpush2.xpose.msra.mxu0 0.0
    %1114 = vmatprep.subr.mxu0 0.0
    %1115 = vmatpush2.xpose.msra.mxu0 0.0
    %1116 = vmatprep.subr.mxu0 0.0
    %1117 = vmatpush2.xpose.msra.mxu0 0.0
    %1118 = vmatprep.subr.mxu0 0.0
    %1119 = vmatpush2.xpose.msra.mxu0 0.0
    %1120 = vmatprep.subr.mxu0 0.0
    %1121 = vmatpush2.xpose.msra.mxu0 0.0
    %1122 = vmatprep.subr.mxu0 0.0
    %1123 = vmatpush2.xpose.msra.mxu0 0.0
    %1124 = vmatprep.subr.mxu0 0.0
    %1125 = vmatpush2.xpose.msra.mxu0 0.0
    %1126 = vmatprep.subr.mxu0 0.0
    %1127 = vmatpush2.xpose.msra.mxu0 0.0
    %1128 = vmatprep.mubr.f32.mxu0 0.0
    %1129 = vmatmul.mubr.f32.gmra.mxu0 %v1059
    %v1130 = vpop.f32.mrf.mxu0
    %v1131 = vadd.f32 0.0, %v1130
    %v1132 = vpop.f32.mrf.mxu0
    %1133 = vdwg.mxu0
    %v1135 = vsel %vm1057, %v447, 0
    %v1138 = vsel %vm1057, %v757, 0
    %1140 = vmatprep.subr.mxu0 0.0
    %1141 = vmatpush1.xpose.msra.mxu0 0.0
    %1142 = vmatprep.subr.mxu0 0.0
    %1143 = vmatpush1.xpose.msra.mxu0 0.0
    %1144 = vmatprep.subr.mxu0 0.0
    %1145 = vmatpush1.xpose.msra.mxu0 0.0
    %1146 = vmatprep.subr.mxu0 0.0
    %1147 = vmatpush1.xpose.msra.mxu0 0.0
    %1148 = vmatprep.subr.mxu0 0.0
    %1149 = vmatpush1.xpose.msra.mxu0 0.0
    %1150 = vmatprep.subr.mxu0 0.0
    %1151 = vmatpush1.xpose.msra.mxu0 0.0
    %1152 = vmatprep.subr.mxu0 0.0
    %1153 = vmatpush1.xpose.msra.mxu0 0.0
    %1154 = vmatprep.subr.mxu0 0.0
    %1155 = vmatpush1.xpose.msra.mxu0 0.0
    %1156 = vmatprep.subr.mxu0 0.0
    %1157 = vmatpush1.xpose.msra.mxu0 0.0
    %1158 = vmatprep.subr.mxu0 0.0
    %1159 = vmatpush1.xpose.msra.mxu0 0.0
    %1160 = vmatprep.subr.mxu0 0.0
    %1161 = vmatpush1.xpose.msra.mxu0 0.0
    %1162 = vmatprep.subr.mxu0 0.0
    %1163 = vmatpush1.xpose.msra.mxu0 0.0
    %1164 = vmatprep.subr.mxu0 0.0
    %1165 = vmatpush1.xpose.msra.mxu0 0.0
    %1166 = vmatprep.subr.mxu0 0.0
    %1167 = vmatpush1.xpose.msra.mxu0 0.0
    %1168 = vmatprep.subr.mxu0 0.0
    %1169 = vmatpush1.xpose.msra.mxu0 0.0
    %1170 = vmatprep.subr.mxu0 0.0
    %1171 = vmatpush1.xpose.msra.mxu0 %v1138
    %1172 = vmatprep.subr.mxu0 0.0
    %1173 = vmatpush2.xpose.msra.mxu0 0.0
    %1174 = vmatprep.subr.mxu0 0.0
    %1175 = vmatpush2.xpose.msra.mxu0 0.0
    %1176 = vmatprep.subr.mxu0 0.0
    %1177 = vmatpush2.xpose.msra.mxu0 0.0
    %1178 = vmatprep.subr.mxu0 0.0
    %1179 = vmatpush2.xpose.msra.mxu0 0.0
    %1180 = vmatprep.subr.mxu0 0.0
    %1181 = vmatpush2.xpose.msra.mxu0 0.0
    %1182 = vmatprep.subr.mxu0 0.0
    %1183 = vmatpush2.xpose.msra.mxu0 0.0
    %1184 = vmatprep.subr.mxu0 0.0
    %1185 = vmatpush2.xpose.msra.mxu0 0.0
    %1186 = vmatprep.subr.mxu0 0.0
    %1187 = vmatpush2.xpose.msra.mxu0 0.0
    %1188 = vmatprep.subr.mxu0 0.0
    %1189 = vmatpush2.xpose.msra.mxu0 0.0
    %1190 = vmatprep.subr.mxu0 0.0
    %1191 = vmatpush2.xpose.msra.mxu0 0.0
    %1192 = vmatprep.subr.mxu0 0.0
    %1193 = vmatpush2.xpose.msra.mxu0 0.0
    %1194 = vmatprep.subr.mxu0 0.0
    %1195 = vmatpush2.xpose.msra.mxu0 0.0
    %1196 = vmatprep.subr.mxu0 0.0
    %1197 = vmatpush2.xpose.msra.mxu0 0.0
    %1198 = vmatprep.subr.mxu0 0.0
    %1199 = vmatpush2.xpose.msra.mxu0 0.0
    %1200 = vmatprep.subr.mxu0 0.0
    %1201 = vmatpush2.xpose.msra.mxu0 0.0
    %1202 = vmatprep.subr.mxu0 0.0
    %1203 = vmatpush2.xpose.msra.mxu0 0.0
    %1204 = vmatprep.mubr.f32.mxu0 0.0
    %1205 = vmatmul.mubr.f32.gmra.mxu0 %v1135
    %v1206 = vpop.f32.mrf.mxu0
    %v1207 = vadd.f32 0.0, %v1206
    %v1208 = vpop.f32.mrf.mxu0
    %1209 = vdwg.mxu0
    %v1211 = vsel %vm1057, %v380, 0
    %v1214 = vsel %vm1057, %v690, 0
    %1216 = vmatprep.subr.mxu0 0.0
    %1217 = vmatpush1.xpose.msra.mxu0 0.0
    %1218 = vmatprep.subr.mxu0 0.0
    %1219 = vmatpush1.xpose.msra.mxu0 0.0
    %1220 = vmatprep.subr.mxu0 0.0
    %1221 = vmatpush1.xpose.msra.mxu0 0.0
    %1222 = vmatprep.subr.mxu0 0.0
    %1223 = vmatpush1.xpose.msra.mxu0 0.0
    %1224 = vmatprep.subr.mxu0 0.0
    %1225 = vmatpush1.xpose.msra.mxu0 0.0
    %1226 = vmatprep.subr.mxu0 0.0
    %1227 = vmatpush1.xpose.msra.mxu0 0.0
    %1228 = vmatprep.subr.mxu0 0.0
    %1229 = vmatpush1.xpose.msra.mxu0 0.0
    %1230 = vmatprep.subr.mxu0 0.0
    %1231 = vmatpush1.xpose.msra.mxu0 0.0
    %1232 = vmatprep.subr.mxu0 0.0
    %1233 = vmatpush1.xpose.msra.mxu0 0.0
    %1234 = vmatprep.subr.mxu0 0.0
    %1235 = vmatpush1.xpose.msra.mxu0 0.0
    %1236 = vmatprep.subr.mxu0 0.0
    %1237 = vmatpush1.xpose.msra.mxu0 0.0
    %1238 = vmatprep.subr.mxu0 0.0
    %1239 = vmatpush1.xpose.msra.mxu0 0.0
    %1240 = vmatprep.subr.mxu0 0.0
    %1241 = vmatpush1.xpose.msra.mxu0 0.0
    %1242 = vmatprep.subr.mxu0 0.0
    %1243 = vmatpush1.xpose.msra.mxu0 0.0
    %1244 = vmatprep.subr.mxu0 0.0
    %1245 = vmatpush1.xpose.msra.mxu0 0.0
    %1246 = vmatprep.subr.mxu0 0.0
    %1247 = vmatpush1.xpose.msra.mxu0 %v1214
    %1248 = vmatprep.subr.mxu0 0.0
    %1249 = vmatpush2.xpose.msra.mxu0 0.0
    %1250 = vmatprep.subr.mxu0 0.0
    %1251 = vmatpush2.xpose.msra.mxu0 0.0
    %1252 = vmatprep.subr.mxu0 0.0
    %1253 = vmatpush2.xpose.msra.mxu0 0.0
    %1254 = vmatprep.subr.mxu0 0.0
    %1255 = vmatpush2.xpose.msra.mxu0 0.0
    %1256 = vmatprep.subr.mxu0 0.0
    %1257 = vmatpush2.xpose.msra.mxu0 0.0
    %1258 = vmatprep.subr.mxu0 0.0
    %1259 = vmatpush2.xpose.msra.mxu0 0.0
    %1260 = vmatprep.subr.mxu0 0.0
    %1261 = vmatpush2.xpose.msra.mxu0 0.0
    %1262 = vmatprep.subr.mxu0 0.0
    %1263 = vmatpush2.xpose.msra.mxu0 0.0
    %1264 = vmatprep.subr.mxu0 0.0
    %1265 = vmatpush2.xpose.msra.mxu0 0.0
    %1266 = vmatprep.subr.mxu0 0.0
    %1267 = vmatpush2.xpose.msra.mxu0 0.0
    %1268 = vmatprep.subr.mxu0 0.0
    %1269 = vmatpush2.xpose.msra.mxu0 0.0
    %1270 = vmatprep.subr.mxu0 0.0
    %1271 = vmatpush2.xpose.msra.mxu0 0.0
    %1272 = vmatprep.subr.mxu0 0.0
    %1273 = vmatpush2.xpose.msra.mxu0 0.0
    %1274 = vmatprep.subr.mxu0 0.0
    %1275 = vmatpush2.xpose.msra.mxu0 0.0
    %1276 = vmatprep.subr.mxu0 0.0
    %1277 = vmatpush2.xpose.msra.mxu0 0.0
    %1278 = vmatprep.subr.mxu0 0.0
    %1279 = vmatpush2.xpose.msra.mxu0 0.0
    %1280 = vmatprep.mubr.f32.mxu0 0.0
    %1281 = vmatmul.mubr.f32.gmra.mxu0 %v1211
    %v1282 = vpop.f32.mrf.mxu0
    %v1283 = vadd.f32 0.0, %v1282
    %v1284 = vpop.f32.mrf.mxu0
    %1285 = vdwg.mxu0
    %v1287 = vsel %vm1057, %v448, 0
    %v1290 = vsel %vm1057, %v758, 0
    %1292 = vmatprep.subr.mxu0 0.0
    %1293 = vmatpush1.xpose.msra.mxu0 0.0
    %1294 = vmatprep.subr.mxu0 0.0
    %1295 = vmatpush1.xpose.msra.mxu0 0.0
    %1296 = vmatprep.subr.mxu0 0.0
    %1297 = vmatpush1.xpose.msra.mxu0 0.0
    %1298 = vmatprep.subr.mxu0 0.0
    %1299 = vmatpush1.xpose.msra.mxu0 0.0
    %1300 = vmatprep.subr.mxu0 0.0
    %1301 = vmatpush1.xpose.msra.mxu0 0.0
    %1302 = vmatprep.subr.mxu0 0.0
    %1303 = vmatpush1.xpose.msra.mxu0 0.0
    %1304 = vmatprep.subr.mxu0 0.0
    %1305 = vmatpush1.xpose.msra.mxu0 0.0
    %1306 = vmatprep.subr.mxu0 0.0
    %1307 = vmatpush1.xpose.msra.mxu0 0.0
    %1308 = vmatprep.subr.mxu0 0.0
    %1309 = vmatpush1.xpose.msra.mxu0 0.0
    %1310 = vmatprep.subr.mxu0 0.0
    %1311 = vmatpush1.xpose.msra.mxu0 0.0
    %1312 = vmatprep.subr.mxu0 0.0
    %1313 = vmatpush1.xpose.msra.mxu0 0.0
    %1314 = vmatprep.subr.mxu0 0.0
    %1315 = vmatpush1.xpose.msra.mxu0 0.0
    %1316 = vmatprep.subr.mxu0 0.0
    %1317 = vmatpush1.xpose.msra.mxu0 0.0
    %1318 = vmatprep.subr.mxu0 0.0
    %1319 = vmatpush1.xpose.msra.mxu0 0.0
    %1320 = vmatprep.subr.mxu0 0.0
    %1321 = vmatpush1.xpose.msra.mxu0 0.0
    %1322 = vmatprep.subr.mxu0 0.0
    %1323 = vmatpush1.xpose.msra.mxu0 %v1290
    %1324 = vmatprep.subr.mxu0 0.0
    %1325 = vmatpush2.xpose.msra.mxu0 0.0
    %1326 = vmatprep.subr.mxu0 0.0
    %1327 = vmatpush2.xpose.msra.mxu0 0.0
    %1328 = vmatprep.subr.mxu0 0.0
    %1329 = vmatpush2.xpose.msra.mxu0 0.0
    %1330 = vmatprep.subr.mxu0 0.0
    %1331 = vmatpush2.xpose.msra.mxu0 0.0
    %1332 = vmatprep.subr.mxu0 0.0
    %1333 = vmatpush2.xpose.msra.mxu0 0.0
    %1334 = vmatprep.subr.mxu0 0.0
    %1335 = vmatpush2.xpose.msra.mxu0 0.0
    %1336 = vmatprep.subr.mxu0 0.0
    %1337 = vmatpush2.xpose.msra.mxu0 0.0
    %1338 = vmatprep.subr.mxu0 0.0
    %1339 = vmatpush2.xpose.msra.mxu0 0.0
    %1340 = vmatprep.subr.mxu0 0.0
    %1341 = vmatpush2.xpose.msra.mxu0 0.0
    %1342 = vmatprep.subr.mxu0 0.0
    %1343 = vmatpush2.xpose.msra.mxu0 0.0
    %1344 = vmatprep.subr.mxu0 0.0
    %1345 = vmatpush2.xpose.msra.mxu0 0.0
    %1346 = vmatprep.subr.mxu0 0.0
    %1347 = vmatpush2.xpose.msra.mxu0 0.0
    %1348 = vmatprep.subr.mxu0 0.0
    %1349 = vmatpush2.xpose.msra.mxu0 0.0
    %1350 = vmatprep.subr.mxu0 0.0
    %1351 = vmatpush2.xpose.msra.mxu0 0.0
    %1352 = vmatprep.subr.mxu0 0.0
    %1353 = vmatpush2.xpose.msra.mxu0 0.0
    %1354 = vmatprep.subr.mxu0 0.0
    %1355 = vmatpush2.xpose.msra.mxu0 0.0
    %1356 = vmatprep.mubr.f32.mxu0 0.0
    %1357 = vmatmul.mubr.f32.gmra.mxu0 %v1287
    %v1358 = vpop.f32.mrf.mxu0
    %v1359 = vadd.f32 0.0, %v1358
    %v1360 = vpop.f32.mrf.mxu0
    %1361 = vdwg.mxu0
    %v1363 = vsel %vm1057, %v381, 0
    %v1366 = vsel %vm1057, %v691, 0
    %1368 = vmatprep.subr.mxu0 0.0
    %1369 = vmatpush1.xpose.msra.mxu0 0.0
    %1370 = vmatprep.subr.mxu0 0.0
    %1371 = vmatpush1.xpose.msra.mxu0 0.0
    %1372 = vmatprep.subr.mxu0 0.0
    %1373 = vmatpush1.xpose.msra.mxu0 0.0
    %1374 = vmatprep.subr.mxu0 0.0
    %1375 = vmatpush1.xpose.msra.mxu0 0.0
    %1376 = vmatprep.subr.mxu0 0.0
    %1377 = vmatpush1.xpose.msra.mxu0 0.0
    %1378 = vmatprep.subr.mxu0 0.0
    %1379 = vmatpush1.xpose.msra.mxu0 0.0
    %1380 = vmatprep.subr.mxu0 0.0
    %1381 = vmatpush1.xpose.msra.mxu0 0.0
    %1382 = vmatprep.subr.mxu0 0.0
    %1383 = vmatpush1.xpose.msra.mxu0 0.0
    %1384 = vmatprep.subr.mxu0 0.0
    %1385 = vmatpush1.xpose.msra.mxu0 0.0
    %1386 = vmatprep.subr.mxu0 0.0
    %1387 = vmatpush1.xpose.msra.mxu0 0.0
    %1388 = vmatprep.subr.mxu0 0.0
    %1389 = vmatpush1.xpose.msra.mxu0 0.0
    %1390 = vmatprep.subr.mxu0 0.0
    %1391 = vmatpush1.xpose.msra.mxu0 0.0
    %1392 = vmatprep.subr.mxu0 0.0
    %1393 = vmatpush1.xpose.msra.mxu0 0.0
    %1394 = vmatprep.subr.mxu0 0.0
    %1395 = vmatpush1.xpose.msra.mxu0 0.0
    %1396 = vmatprep.subr.mxu0 0.0
    %1397 = vmatpush1.xpose.msra.mxu0 0.0
    %1398 = vmatprep.subr.mxu0 0.0
    %1399 = vmatpush1.xpose.msra.mxu0 %v1366
    %1400 = vmatprep.subr.mxu0 0.0
    %1401 = vmatpush2.xpose.msra.mxu0 0.0
    %1402 = vmatprep.subr.mxu0 0.0
    %1403 = vmatpush2.xpose.msra.mxu0 0.0
    %1404 = vmatprep.subr.mxu0 0.0
    %1405 = vmatpush2.xpose.msra.mxu0 0.0
    %1406 = vmatprep.subr.mxu0 0.0
    %1407 = vmatpush2.xpose.msra.mxu0 0.0
    %1408 = vmatprep.subr.mxu0 0.0
    %1409 = vmatpush2.xpose.msra.mxu0 0.0
    %1410 = vmatprep.subr.mxu0 0.0
    %1411 = vmatpush2.xpose.msra.mxu0 0.0
    %1412 = vmatprep.subr.mxu0 0.0
    %1413 = vmatpush2.xpose.msra.mxu0 0.0
    %1414 = vmatprep.subr.mxu0 0.0
    %1415 = vmatpush2.xpose.msra.mxu0 0.0
    %1416 = vmatprep.subr.mxu0 0.0
    %1417 = vmatpush2.xpose.msra.mxu0 0.0
    %1418 = vmatprep.subr.mxu0 0.0
    %1419 = vmatpush2.xpose.msra.mxu0 0.0
    %1420 = vmatprep.subr.mxu0 0.0
    %1421 = vmatpush2.xpose.msra.mxu0 0.0
    %1422 = vmatprep.subr.mxu0 0.0
    %1423 = vmatpush2.xpose.msra.mxu0 0.0
    %1424 = vmatprep.subr.mxu0 0.0
    %1425 = vmatpush2.xpose.msra.mxu0 0.0
    %1426 = vmatprep.subr.mxu0 0.0
    %1427 = vmatpush2.xpose.msra.mxu0 0.0
    %1428 = vmatprep.subr.mxu0 0.0
    %1429 = vmatpush2.xpose.msra.mxu0 0.0
    %1430 = vmatprep.subr.mxu0 0.0
    %1431 = vmatpush2.xpose.msra.mxu0 0.0
    %1432 = vmatprep.mubr.f32.mxu0 0.0
    %1433 = vmatmul.mubr.f32.gmra.mxu0 %v1363
    %v1434 = vpop.f32.mrf.mxu0
    %v1435 = vadd.f32 0.0, %v1434
    %v1436 = vpop.f32.mrf.mxu0
    %1437 = vdwg.mxu0
    %v1439 = vsel %vm1057, %v449, 0
    %v1442 = vsel %vm1057, %v759, 0
    %1444 = vmatprep.subr.mxu0 0.0
    %1445 = vmatpush1.xpose.msra.mxu0 0.0
    %1446 = vmatprep.subr.mxu0 0.0
    %1447 = vmatpush1.xpose.msra.mxu0 0.0
    %1448 = vmatprep.subr.mxu0 0.0
    %1449 = vmatpush1.xpose.msra.mxu0 0.0
    %1450 = vmatprep.subr.mxu0 0.0
    %1451 = vmatpush1.xpose.msra.mxu0 0.0
    %1452 = vmatprep.subr.mxu0 0.0
    %1453 = vmatpush1.xpose.msra.mxu0 0.0
    %1454 = vmatprep.subr.mxu0 0.0
    %1455 = vmatpush1.xpose.msra.mxu0 0.0
    %1456 = vmatprep.subr.mxu0 0.0
    %1457 = vmatpush1.xpose.msra.mxu0 0.0
    %1458 = vmatprep.subr.mxu0 0.0
    %1459 = vmatpush1.xpose.msra.mxu0 0.0
    %1460 = vmatprep.subr.mxu0 0.0
    %1461 = vmatpush1.xpose.msra.mxu0 0.0
    %1462 = vmatprep.subr.mxu0 0.0
    %1463 = vmatpush1.xpose.msra.mxu0 0.0
    %1464 = vmatprep.subr.mxu0 0.0
    %1465 = vmatpush1.xpose.msra.mxu0 0.0
    %1466 = vmatprep.subr.mxu0 0.0
    %1467 = vmatpush1.xpose.msra.mxu0 0.0
    %1468 = vmatprep.subr.mxu0 0.0
    %1469 = vmatpush1.xpose.msra.mxu0 0.0
    %1470 = vmatprep.subr.mxu0 0.0
    %1471 = vmatpush1.xpose.msra.mxu0 0.0
    %1472 = vmatprep.subr.mxu0 0.0
    %1473 = vmatpush1.xpose.msra.mxu0 0.0
    %1474 = vmatprep.subr.mxu0 0.0
    %1475 = vmatpush1.xpose.msra.mxu0 %v1442
    %1476 = vmatprep.subr.mxu0 0.0
    %1477 = vmatpush2.xpose.msra.mxu0 0.0
    %1478 = vmatprep.subr.mxu0 0.0
    %1479 = vmatpush2.xpose.msra.mxu0 0.0
    %1480 = vmatprep.subr.mxu0 0.0
    %1481 = vmatpush2.xpose.msra.mxu0 0.0
    %1482 = vmatprep.subr.mxu0 0.0
    %1483 = vmatpush2.xpose.msra.mxu0 0.0
    %1484 = vmatprep.subr.mxu0 0.0
    %1485 = vmatpush2.xpose.msra.mxu0 0.0
    %1486 = vmatprep.subr.mxu0 0.0
    %1487 = vmatpush2.xpose.msra.mxu0 0.0
    %1488 = vmatprep.subr.mxu0 0.0
    %1489 = vmatpush2.xpose.msra.mxu0 0.0
    %1490 = vmatprep.subr.mxu0 0.0
    %1491 = vmatpush2.xpose.msra.mxu0 0.0
    %1492 = vmatprep.subr.mxu0 0.0
    %1493 = vmatpush2.xpose.msra.mxu0 0.0
    %1494 = vmatprep.subr.mxu0 0.0
    %1495 = vmatpush2.xpose.msra.mxu0 0.0
    %1496 = vmatprep.subr.mxu0 0.0
    %1497 = vmatpush2.xpose.msra.mxu0 0.0
    %1498 = vmatprep.subr.mxu0 0.0
    %1499 = vmatpush2.xpose.msra.mxu0 0.0
    %1500 = vmatprep.subr.mxu0 0.0
    %1501 = vmatpush2.xpose.msra.mxu0 0.0
    %1502 = vmatprep.subr.mxu0 0.0
    %1503 = vmatpush2.xpose.msra.mxu0 0.0
    %1504 = vmatprep.subr.mxu0 0.0
    %1505 = vmatpush2.xpose.msra.mxu0 0.0
    %1506 = vmatprep.subr.mxu0 0.0
    %1507 = vmatpush2.xpose.msra.mxu0 0.0
    %1508 = vmatprep.mubr.f32.mxu0 0.0
    %1509 = vmatmul.mubr.f32.gmra.mxu0 %v1439
    %v1510 = vpop.f32.mrf.mxu0
    %v1511 = vadd.f32 0.0, %v1510
    %v1512 = vpop.f32.mrf.mxu0
    %1513 = vdwg.mxu0
    %v1515 = vsel %vm1057, %v382, 0
    %v1518 = vsel %vm1057, %v692, 0
    %1520 = vmatprep.subr.mxu0 0.0
    %1521 = vmatpush1.xpose.msra.mxu0 0.0
    %1522 = vmatprep.subr.mxu0 0.0
    %1523 = vmatpush1.xpose.msra.mxu0 0.0
    %1524 = vmatprep.subr.mxu0 0.0
    %1525 = vmatpush1.xpose.msra.mxu0 0.0
    %1526 = vmatprep.subr.mxu0 0.0
    %1527 = vmatpush1.xpose.msra.mxu0 0.0
    %1528 = vmatprep.subr.mxu0 0.0
    %1529 = vmatpush1.xpose.msra.mxu0 0.0
    %1530 = vmatprep.subr.mxu0 0.0
    %1531 = vmatpush1.xpose.msra.mxu0 0.0
    %1532 = vmatprep.subr.mxu0 0.0
    %1533 = vmatpush1.xpose.msra.mxu0 0.0
    %1534 = vmatprep.subr.mxu0 0.0
    %1535 = vmatpush1.xpose.msra.mxu0 0.0
    %1536 = vmatprep.subr.mxu0 0.0
    %1537 = vmatpush1.xpose.msra.mxu0 0.0
    %1538 = vmatprep.subr.mxu0 0.0
    %1539 = vmatpush1.xpose.msra.mxu0 0.0
    %1540 = vmatprep.subr.mxu0 0.0
    %1541 = vmatpush1.xpose.msra.mxu0 0.0
    %1542 = vmatprep.subr.mxu0 0.0
    %1543 = vmatpush1.xpose.msra.mxu0 0.0
    %1544 = vmatprep.subr.mxu0 0.0
    %1545 = vmatpush1.xpose.msra.mxu0 0.0
    %1546 = vmatprep.subr.mxu0 0.0
    %1547 = vmatpush1.xpose.msra.mxu0 0.0
    %1548 = vmatprep.subr.mxu0 0.0
    %1549 = vmatpush1.xpose.msra.mxu0 0.0
    %1550 = vmatprep.subr.mxu0 0.0
    %1551 = vmatpush1.xpose.msra.mxu0 %v1518
    %1552 = vmatprep.subr.mxu0 0.0
    %1553 = vmatpush2.xpose.msra.mxu0 0.0
    %1554 = vmatprep.subr.mxu0 0.0
    %1555 = vmatpush2.xpose.msra.mxu0 0.0
    %1556 = vmatprep.subr.mxu0 0.0
    %1557 = vmatpush2.xpose.msra.mxu0 0.0
    %1558 = vmatprep.subr.mxu0 0.0
    %1559 = vmatpush2.xpose.msra.mxu0 0.0
    %1560 = vmatprep.subr.mxu0 0.0
    %1561 = vmatpush2.xpose.msra.mxu0 0.0
    %1562 = vmatprep.subr.mxu0 0.0
    %1563 = vmatpush2.xpose.msra.mxu0 0.0
    %1564 = vmatprep.subr.mxu0 0.0
    %1565 = vmatpush2.xpose.msra.mxu0 0.0
    %1566 = vmatprep.subr.mxu0 0.0
    %1567 = vmatpush2.xpose.msra.mxu0 0.0
    %1568 = vmatprep.subr.mxu0 0.0
    %1569 = vmatpush2.xpose.msra.mxu0 0.0
    %1570 = vmatprep.subr.mxu0 0.0
    %1571 = vmatpush2.xpose.msra.mxu0 0.0
    %1572 = vmatprep.subr.mxu0 0.0
    %1573 = vmatpush2.xpose.msra.mxu0 0.0
    %1574 = vmatprep.subr.mxu0 0.0
    %1575 = vmatpush2.xpose.msra.mxu0 0.0
    %1576 = vmatprep.subr.mxu0 0.0
    %1577 = vmatpush2.xpose.msra.mxu0 0.0
    %1578 = vmatprep.subr.mxu0 0.0
    %1579 = vmatpush2.xpose.msra.mxu0 0.0
    %1580 = vmatprep.subr.mxu0 0.0
    %1581 = vmatpush2.xpose.msra.mxu0 0.0
    %1582 = vmatprep.subr.mxu0 0.0
    %1583 = vmatpush2.xpose.msra.mxu0 0.0
    %1584 = vmatprep.mubr.f32.mxu0 0.0
    %1585 = vmatmul.mubr.f32.gmra.mxu0 %v1515
    %v1586 = vpop.f32.mrf.mxu0
    %v1587 = vadd.f32 0.0, %v1586
    %v1588 = vpop.f32.mrf.mxu0
    %1589 = vdwg.mxu0
    %v1591 = vsel %vm1057, %v450, 0
    %v1594 = vsel %vm1057, %v760, 0
    %1596 = vmatprep.subr.mxu0 0.0
    %1597 = vmatpush1.xpose.msra.mxu0 0.0
    %1598 = vmatprep.subr.mxu0 0.0
    %1599 = vmatpush1.xpose.msra.mxu0 0.0
    %1600 = vmatprep.subr.mxu0 0.0
    %1601 = vmatpush1.xpose.msra.mxu0 0.0
    %1602 = vmatprep.subr.mxu0 0.0
    %1603 = vmatpush1.xpose.msra.mxu0 0.0
    %1604 = vmatprep.subr.mxu0 0.0
    %1605 = vmatpush1.xpose.msra.mxu0 0.0
    %1606 = vmatprep.subr.mxu0 0.0
    %1607 = vmatpush1.xpose.msra.mxu0 0.0
    %1608 = vmatprep.subr.mxu0 0.0
    %1609 = vmatpush1.xpose.msra.mxu0 0.0
    %1610 = vmatprep.subr.mxu0 0.0
    %1611 = vmatpush1.xpose.msra.mxu0 0.0
    %1612 = vmatprep.subr.mxu0 0.0
    %1613 = vmatpush1.xpose.msra.mxu0 0.0
    %1614 = vmatprep.subr.mxu0 0.0
    %1615 = vmatpush1.xpose.msra.mxu0 0.0
    %1616 = vmatprep.subr.mxu0 0.0
    %1617 = vmatpush1.xpose.msra.mxu0 0.0
    %1618 = vmatprep.subr.mxu0 0.0
    %1619 = vmatpush1.xpose.msra.mxu0 0.0
    %1620 = vmatprep.subr.mxu0 0.0
    %1621 = vmatpush1.xpose.msra.mxu0 0.0
    %1622 = vmatprep.subr.mxu0 0.0
    %1623 = vmatpush1.xpose.msra.mxu0 0.0
    %1624 = vmatprep.subr.mxu0 0.0
    %1625 = vmatpush1.xpose.msra.mxu0 0.0
    %1626 = vmatprep.subr.mxu0 0.0
    %1627 = vmatpush1.xpose.msra.mxu0 %v1594
    %1628 = vmatprep.subr.mxu0 0.0
    %1629 = vmatpush2.xpose.msra.mxu0 0.0
    %1630 = vmatprep.subr.mxu0 0.0
    %1631 = vmatpush2.xpose.msra.mxu0 0.0
    %1632 = vmatprep.subr.mxu0 0.0
    %1633 = vmatpush2.xpose.msra.mxu0 0.0
    %1634 = vmatprep.subr.mxu0 0.0
    %1635 = vmatpush2.xpose.msra.mxu0 0.0
    %1636 = vmatprep.subr.mxu0 0.0
    %1637 = vmatpush2.xpose.msra.mxu0 0.0
    %1638 = vmatprep.subr.mxu0 0.0
    %1639 = vmatpush2.xpose.msra.mxu0 0.0
    %1640 = vmatprep.subr.mxu0 0.0
    %1641 = vmatpush2.xpose.msra.mxu0 0.0
    %1642 = vmatprep.subr.mxu0 0.0
    %1643 = vmatpush2.xpose.msra.mxu0 0.0
    %1644 = vmatprep.subr.mxu0 0.0
    %1645 = vmatpush2.xpose.msra.mxu0 0.0
    %1646 = vmatprep.subr.mxu0 0.0
    %1647 = vmatpush2.xpose.msra.mxu0 0.0
    %1648 = vmatprep.subr.mxu0 0.0
    %1649 = vmatpush2.xpose.msra.mxu0 0.0
    %1650 = vmatprep.subr.mxu0 0.0
    %1651 = vmatpush2.xpose.msra.mxu0 0.0
    %1652 = vmatprep.subr.mxu0 0.0
    %1653 = vmatpush2.xpose.msra.mxu0 0.0
    %1654 = vmatprep.subr.mxu0 0.0
    %1655 = vmatpush2.xpose.msra.mxu0 0.0
    %1656 = vmatprep.subr.mxu0 0.0
    %1657 = vmatpush2.xpose.msra.mxu0 0.0
    %1658 = vmatprep.subr.mxu0 0.0
    %1659 = vmatpush2.xpose.msra.mxu0 0.0
    %1660 = vmatprep.mubr.f32.mxu0 0.0
    %1661 = vmatmul.mubr.f32.gmra.mxu0 %v1591
    %v1662 = vpop.f32.mrf.mxu0
    %v1663 = vadd.f32 0.0, %v1662
    %v1664 = vpop.f32.mrf.mxu0
    %1665 = vdwg.mxu0
    %v1666 = vsel %vm1057, %v1131, -inf
    %1667 = vmax.xlane.f32.xlu0 %v1666
    %v1668 = vpop.xlane.xlu0 %1667
    %v1669 = vsel %vm1057, %v1207, -inf
    %1670 = vmax.xlane.f32.xlu0 %v1669
    %v1671 = vpop.xlane.xlu0 %1670
    %v1672 = vsel %vm1057, %v1283, -inf
    %1673 = vmax.xlane.f32.xlu0 %v1672
    %v1674 = vpop.xlane.xlu0 %1673
    %v1675 = vsel %vm1057, %v1359, -inf
    %1676 = vmax.xlane.f32.xlu0 %v1675
    %v1677 = vpop.xlane.xlu0 %1676
    %v1678 = vsel %vm1057, %v1435, -inf
    %1679 = vmax.xlane.f32.xlu0 %v1678
    %v1680 = vpop.xlane.xlu0 %1679
    %v1681 = vsel %vm1057, %v1511, -inf
    %1682 = vmax.xlane.f32.xlu0 %v1681
    %v1683 = vpop.xlane.xlu0 %1682
    %v1684 = vsel %vm1057, %v1587, -inf
    %1685 = vmax.xlane.f32.xlu0 %v1684
    %v1686 = vpop.xlane.xlu0 %1685
    %v1687 = vsel %vm1057, %v1663, -inf
    %1688 = vmax.xlane.f32.xlu0 %v1687
    %v1689 = vpop.xlane.xlu0 %1688
    %v1690 = vsub.f32 %v1131, %v1668
    %v1691 = vsub.f32 %v1207, %v1671
    %v1692 = vsub.f32 %v1283, %v1674
    %v1693 = vsub.f32 %v1359, %v1677
    %v1694 = vsub.f32 %v1435, %v1680
    %v1695 = vsub.f32 %v1511, %v1683
    %v1696 = vsub.f32 %v1587, %v1686
    %v1697 = vsub.f32 %v1663, %v1689
    %v1698 = vmul.f32 %v1690, 1.442695
    %v1699 = vpow.pop %v1698
    %v1700 = vmul.f32 %v1691, 1.442695
    %v1701 = vpow.pop %v1700
    %v1702 = vmul.f32 %v1692, 1.442695
    %v1703 = vpow.pop %v1702
    %v1704 = vmul.f32 %v1693, 1.442695
    %v1705 = vpow.pop %v1704
    %v1706 = vmul.f32 %v1694, 1.442695
    %v1707 = vpow.pop %v1706
    %v1708 = vmul.f32 %v1695, 1.442695
    %v1709 = vpow.pop %v1708
    %v1710 = vmul.f32 %v1696, 1.442695
    %v1711 = vpow.pop %v1710
    %v1712 = vmul.f32 %v1697, 1.442695
    %v1713 = vpow.pop %v1712
    %v1714 = vsel %vm1057, %v1699, 0.0
    %1715 = vadd.xlane.f32.xlu0 %v1714
    %v1716 = vpop.xlane.xlu0 %1715
    %v1717 = vsel %vm1057, %v1701, 0.0
    %1718 = vadd.xlane.f32.xlu0 %v1717
    %v1719 = vpop.xlane.xlu0 %1718
    %v1720 = vsel %vm1057, %v1703, 0.0
    %1721 = vadd.xlane.f32.xlu0 %v1720
    %v1722 = vpop.xlane.xlu0 %1721
    %v1723 = vsel %vm1057, %v1705, 0.0
    %1724 = vadd.xlane.f32.xlu0 %v1723
    %v1725 = vpop.xlane.xlu0 %1724
    %v1726 = vsel %vm1057, %v1707, 0.0
    %1727 = vadd.xlane.f32.xlu0 %v1726
    %v1728 = vpop.xlane.xlu0 %1727
    %v1729 = vsel %vm1057, %v1709, 0.0
    %1730 = vadd.xlane.f32.xlu0 %v1729
    %v1731 = vpop.xlane.xlu0 %1730
    %v1732 = vsel %vm1057, %v1711, 0.0
    %1733 = vadd.xlane.f32.xlu0 %v1732
    %v1734 = vpop.xlane.xlu0 %1733
    %v1735 = vsel %vm1057, %v1713, 0.0
    %1736 = vadd.xlane.f32.xlu0 %v1735
    %v1737 = vpop.xlane.xlu0 %1736
    %v1738 = vrcp.pop %v1716
    %v1739 = vrcp.pop %v1719
    %v1740 = vrcp.pop %v1722
    %v1741 = vrcp.pop %v1725
    %v1742 = vrcp.pop %v1728
    %v1743 = vrcp.pop %v1731
    %v1744 = vrcp.pop %v1734
    %v1745 = vrcp.pop %v1737
    %v1746 = vmul.f32 %v1716, %v1738
    %v1747 = vmul.f32 %v1719, %v1739
    %v1748 = vmul.f32 %v1722, %v1740
    %v1749 = vmul.f32 %v1725, %v1741
    %v1750 = vmul.f32 %v1728, %v1742
    %v1751 = vmul.f32 %v1731, %v1743
    %v1752 = vmul.f32 %v1734, %v1744
    %v1753 = vmul.f32 %v1737, %v1745
    %v1754 = vsub.f32 2.0, %v1746
    %v1755 = vsub.f32 2.0, %v1747
    %v1756 = vsub.f32 2.0, %v1748
    %v1757 = vsub.f32 2.0, %v1749
    %v1758 = vsub.f32 2.0, %v1750
    %v1759 = vsub.f32 2.0, %v1751
    %v1760 = vsub.f32 2.0, %v1752
    %v1761 = vsub.f32 2.0, %v1753
    %v1762 = vmul.f32 %v1738, %v1754
    %v1763 = vmul.f32 %v1739, %v1755
    %v1764 = vmul.f32 %v1740, %v1756
    %v1765 = vmul.f32 %v1741, %v1757
    %v1766 = vmul.f32 %v1742, %v1758
    %v1767 = vmul.f32 %v1743, %v1759
    %v1768 = vmul.f32 %v1744, %v1760
    %v1769 = vmul.f32 %v1745, %v1761
    %v1770 = vmul.f32 %v1699, %v1762
    %v1771 = vmul.f32 %v1701, %v1763
    %v1772 = vmul.f32 %v1703, %v1764
    %v1773 = vmul.f32 %v1705, %v1765
    %v1774 = vmul.f32 %v1707, %v1766
    %v1775 = vmul.f32 %v1709, %v1767
    %v1776 = vmul.f32 %v1711, %v1768
    %v1777 = vmul.f32 %v1713, %v1769
    %v1779 = vsel %vm1057, %v1770, 0
    %1781 = vmatprep.subr.mxu0 0.0
    %1782 = vmatpush1.msra.mxu0 0.0
    %1783 = vmatprep.subr.mxu0 0.0
    %1784 = vmatpush1.msra.mxu0 0.0
    %1785 = vmatprep.subr.mxu0 0.0
    %1786 = vmatpush1.msra.mxu0 0.0
    %1787 = vmatprep.subr.mxu0 0.0
    %1788 = vmatpush1.msra.mxu0 0.0
    %1789 = vmatprep.subr.mxu0 0.0
    %1790 = vmatpush1.msra.mxu0 0.0
    %1791 = vmatprep.subr.mxu0 0.0
    %1792 = vmatpush1.msra.mxu0 0.0
    %1793 = vmatprep.subr.mxu0 0.0
    %1794 = vmatpush1.msra.mxu0 0.0
    %1795 = vmatprep.subr.mxu0 0.0
    %1796 = vmatpush1.msra.mxu0 0.0
    %1797 = vmatprep.subr.mxu0 0.0
    %1798 = vmatpush1.msra.mxu0 0.0
    %1799 = vmatprep.subr.mxu0 0.0
    %1800 = vmatpush1.msra.mxu0 0.0
    %1801 = vmatprep.subr.mxu0 0.0
    %1802 = vmatpush1.msra.mxu0 0.0
    %1803 = vmatprep.subr.mxu0 0.0
    %1804 = vmatpush1.msra.mxu0 0.0
    %1805 = vmatprep.subr.mxu0 0.0
    %1806 = vmatpush1.msra.mxu0 0.0
    %1807 = vmatprep.subr.mxu0 0.0
    %1808 = vmatpush1.msra.mxu0 0.0
    %1809 = vmatprep.subr.mxu0 0.0
    %1810 = vmatpush1.msra.mxu0 0.0
    %1811 = vmatprep.subr.mxu0 0.0
    %1812 = vmatpush1.msra.mxu0 %v985
    %1813 = vmatprep.subr.mxu0 0.0
    %1814 = vmatpush2.msra.mxu0 0.0
    %1815 = vmatprep.subr.mxu0 0.0
    %1816 = vmatpush2.msra.mxu0 0.0
    %1817 = vmatprep.subr.mxu0 0.0
    %1818 = vmatpush2.msra.mxu0 0.0
    %1819 = vmatprep.subr.mxu0 0.0
    %1820 = vmatpush2.msra.mxu0 0.0
    %1821 = vmatprep.subr.mxu0 0.0
    %1822 = vmatpush2.msra.mxu0 0.0
    %1823 = vmatprep.subr.mxu0 0.0
    %1824 = vmatpush2.msra.mxu0 0.0
    %1825 = vmatprep.subr.mxu0 0.0
    %1826 = vmatpush2.msra.mxu0 0.0
    %1827 = vmatprep.subr.mxu0 0.0
    %1828 = vmatpush2.msra.mxu0 0.0
    %1829 = vmatprep.subr.mxu0 0.0
    %1830 = vmatpush2.msra.mxu0 0.0
    %1831 = vmatprep.subr.mxu0 0.0
    %1832 = vmatpush2.msra.mxu0 0.0
    %1833 = vmatprep.subr.mxu0 0.0
    %1834 = vmatpush2.msra.mxu0 0.0
    %1835 = vmatprep.subr.mxu0 0.0
    %1836 = vmatpush2.msra.mxu0 0.0
    %1837 = vmatprep.subr.mxu0 0.0
    %1838 = vmatpush2.msra.mxu0 0.0
    %1839 = vmatprep.subr.mxu0 0.0
    %1840 = vmatpush2.msra.mxu0 0.0
    %1841 = vmatprep.subr.mxu0 0.0
    %1842 = vmatpush2.msra.mxu0 0.0
    %1843 = vmatprep.subr.mxu0 0.0
    %1844 = vmatpush2.msra.mxu0 0.0
    %1845 = vmatprep.mubr.f32.mxu0 0.0
    %1846 = vmatmul.mubr.f32.gmra.mxu0 %v1779
    %v1847 = vpop.f32.mrf.mxu0
    %v1848 = vadd.f32 0.0, %v1847
    %v1849 = vpop.f32.mrf.mxu0
    %1850 = vdwg.mxu0
    %v1852 = vsel %vm1057, %v1771, 0
    %1854 = vmatprep.subr.mxu0 0.0
    %1855 = vmatpush1.msra.mxu0 0.0
    %1856 = vmatprep.subr.mxu0 0.0
    %1857 = vmatpush1.msra.mxu0 0.0
    %1858 = vmatprep.subr.mxu0 0.0
    %1859 = vmatpush1.msra.mxu0 0.0
    %1860 = vmatprep.subr.mxu0 0.0
    %1861 = vmatpush1.msra.mxu0 0.0
    %1862 = vmatprep.subr.mxu0 0.0
    %1863 = vmatpush1.msra.mxu0 0.0
    %1864 = vmatprep.subr.mxu0 0.0
    %1865 = vmatpush1.msra.mxu0 0.0
    %1866 = vmatprep.subr.mxu0 0.0
    %1867 = vmatpush1.msra.mxu0 0.0
    %1868 = vmatprep.subr.mxu0 0.0
    %1869 = vmatpush1.msra.mxu0 0.0
    %1870 = vmatprep.subr.mxu0 0.0
    %1871 = vmatpush1.msra.mxu0 0.0
    %1872 = vmatprep.subr.mxu0 0.0
    %1873 = vmatpush1.msra.mxu0 0.0
    %1874 = vmatprep.subr.mxu0 0.0
    %1875 = vmatpush1.msra.mxu0 0.0
    %1876 = vmatprep.subr.mxu0 0.0
    %1877 = vmatpush1.msra.mxu0 0.0
    %1878 = vmatprep.subr.mxu0 0.0
    %1879 = vmatpush1.msra.mxu0 0.0
    %1880 = vmatprep.subr.mxu0 0.0
    %1881 = vmatpush1.msra.mxu0 0.0
    %1882 = vmatprep.subr.mxu0 0.0
    %1883 = vmatpush1.msra.mxu0 0.0
    %1884 = vmatprep.subr.mxu0 0.0
    %1885 = vmatpush1.msra.mxu0 %v1053
    %1886 = vmatprep.subr.mxu0 0.0
    %1887 = vmatpush2.msra.mxu0 0.0
    %1888 = vmatprep.subr.mxu0 0.0
    %1889 = vmatpush2.msra.mxu0 0.0
    %1890 = vmatprep.subr.mxu0 0.0
    %1891 = vmatpush2.msra.mxu0 0.0
    %1892 = vmatprep.subr.mxu0 0.0
    %1893 = vmatpush2.msra.mxu0 0.0
    %1894 = vmatprep.subr.mxu0 0.0
    %1895 = vmatpush2.msra.mxu0 0.0
    %1896 = vmatprep.subr.mxu0 0.0
    %1897 = vmatpush2.msra.mxu0 0.0
    %1898 = vmatprep.subr.mxu0 0.0
    %1899 = vmatpush2.msra.mxu0 0.0
    %1900 = vmatprep.subr.mxu0 0.0
    %1901 = vmatpush2.msra.mxu0 0.0
    %1902 = vmatprep.subr.mxu0 0.0
    %1903 = vmatpush2.msra.mxu0 0.0
    %1904 = vmatprep.subr.mxu0 0.0
    %1905 = vmatpush2.msra.mxu0 0.0
    %1906 = vmatprep.subr.mxu0 0.0
    %1907 = vmatpush2.msra.mxu0 0.0
    %1908 = vmatprep.subr.mxu0 0.0
    %1909 = vmatpush2.msra.mxu0 0.0
    %1910 = vmatprep.subr.mxu0 0.0
    %1911 = vmatpush2.msra.mxu0 0.0
    %1912 = vmatprep.subr.mxu0 0.0
    %1913 = vmatpush2.msra.mxu0 0.0
    %1914 = vmatprep.subr.mxu0 0.0
    %1915 = vmatpush2.msra.mxu0 0.0
    %1916 = vmatprep.subr.mxu0 0.0
    %1917 = vmatpush2.msra.mxu0 0.0
    %1918 = vmatprep.mubr.f32.mxu0 0.0
    %1919 = vmatmul.mubr.f32.gmra.mxu0 %v1852
    %v1920 = vpop.f32.mrf.mxu0
    %v1921 = vadd.f32 0.0, %v1920
    %v1922 = vpop.f32.mrf.mxu0
    %1923 = vdwg.mxu0
    %v1925 = vsel %vm1057, %v1772, 0
    %1927 = vmatprep.subr.mxu0 0.0
    %1928 = vmatpush1.msra.mxu0 0.0
    %1929 = vmatprep.subr.mxu0 0.0
    %1930 = vmatpush1.msra.mxu0 0.0
    %1931 = vmatprep.subr.mxu0 0.0
    %1932 = vmatpush1.msra.mxu0 0.0
    %1933 = vmatprep.subr.mxu0 0.0
    %1934 = vmatpush1.msra.mxu0 0.0
    %1935 = vmatprep.subr.mxu0 0.0
    %1936 = vmatpush1.msra.mxu0 0.0
    %1937 = vmatprep.subr.mxu0 0.0
    %1938 = vmatpush1.msra.mxu0 0.0
    %1939 = vmatprep.subr.mxu0 0.0
    %1940 = vmatpush1.msra.mxu0 0.0
    %1941 = vmatprep.subr.mxu0 0.0
    %1942 = vmatpush1.msra.mxu0 0.0
    %1943 = vmatprep.subr.mxu0 0.0
    %1944 = vmatpush1.msra.mxu0 0.0
    %1945 = vmatprep.subr.mxu0 0.0
    %1946 = vmatpush1.msra.mxu0 0.0
    %1947 = vmatprep.subr.mxu0 0.0
    %1948 = vmatpush1.msra.mxu0 0.0
    %1949 = vmatprep.subr.mxu0 0.0
    %1950 = vmatpush1.msra.mxu0 0.0
    %1951 = vmatprep.subr.mxu0 0.0
    %1952 = vmatpush1.msra.mxu0 0.0
    %1953 = vmatprep.subr.mxu0 0.0
    %1954 = vmatpush1.msra.mxu0 0.0
    %1955 = vmatprep.subr.mxu0 0.0
    %1956 = vmatpush1.msra.mxu0 0.0
    %1957 = vmatprep.subr.mxu0 0.0
    %1958 = vmatpush1.msra.mxu0 %v986
    %1959 = vmatprep.subr.mxu0 0.0
    %1960 = vmatpush2.msra.mxu0 0.0
    %1961 = vmatprep.subr.mxu0 0.0
    %1962 = vmatpush2.msra.mxu0 0.0
    %1963 = vmatprep.subr.mxu0 0.0
    %1964 = vmatpush2.msra.mxu0 0.0
    %1965 = vmatprep.subr.mxu0 0.0
    %1966 = vmatpush2.msra.mxu0 0.0
    %1967 = vmatprep.subr.mxu0 0.0
    %1968 = vmatpush2.msra.mxu0 0.0
    %1969 = vmatprep.subr.mxu0 0.0
    %1970 = vmatpush2.msra.mxu0 0.0
    %1971 = vmatprep.subr.mxu0 0.0
    %1972 = vmatpush2.msra.mxu0 0.0
    %1973 = vmatprep.subr.mxu0 0.0
    %1974 = vmatpush2.msra.mxu0 0.0
    %1975 = vmatprep.subr.mxu0 0.0
    %1976 = vmatpush2.msra.mxu0 0.0
    %1977 = vmatprep.subr.mxu0 0.0
    %1978 = vmatpush2.msra.mxu0 0.0
    %1979 = vmatprep.subr.mxu0 0.0
    %1980 = vmatpush2.msra.mxu0 0.0
    %1981 = vmatprep.subr.mxu0 0.0
    %1982 = vmatpush2.msra.mxu0 0.0
    %1983 = vmatprep.subr.mxu0 0.0
    %1984 = vmatpush2.msra.mxu0 0.0
    %1985 = vmatprep.subr.mxu0 0.0
    %1986 = vmatpush2.msra.mxu0 0.0
    %1987 = vmatprep.subr.mxu0 0.0
    %1988 = vmatpush2.msra.mxu0 0.0
    %1989 = vmatprep.subr.mxu0 0.0
    %1990 = vmatpush2.msra.mxu0 0.0
    %1991 = vmatprep.mubr.f32.mxu0 0.0
    %1992 = vmatmul.mubr.f32.gmra.mxu0 %v1925
    %v1993 = vpop.f32.mrf.mxu0
    %v1994 = vadd.f32 0.0, %v1993
    %v1995 = vpop.f32.mrf.mxu0
    %1996 = vdwg.mxu0
    %v1998 = vsel %vm1057, %v1773, 0
    %2000 = vmatprep.subr.mxu0 0.0
    %2001 = vmatpush1.msra.mxu0 0.0
    %2002 = vmatprep.subr.mxu0 0.0
    %2003 = vmatpush1.msra.mxu0 0.0
    %2004 = vmatprep.subr.mxu0 0.0
    %2005 = vmatpush1.msra.mxu0 0.0
    %2006 = vmatprep.subr.mxu0 0.0
    %2007 = vmatpush1.msra.mxu0 0.0
    %2008 = vmatprep.subr.mxu0 0.0
    %2009 = vmatpush1.msra.mxu0 0.0
    %2010 = vmatprep.subr.mxu0 0.0
    %2011 = vmatpush1.msra.mxu0 0.0
    %2012 = vmatprep.subr.mxu0 0.0
    %2013 = vmatpush1.msra.mxu0 0.0
    %2014 = vmatprep.subr.mxu0 0.0
    %2015 = vmatpush1.msra.mxu0 0.0
    %2016 = vmatprep.subr.mxu0 0.0
    %2017 = vmatpush1.msra.mxu0 0.0
    %2018 = vmatprep.subr.mxu0 0.0
    %2019 = vmatpush1.msra.mxu0 0.0
    %2020 = vmatprep.subr.mxu0 0.0
    %2021 = vmatpush1.msra.mxu0 0.0
    %2022 = vmatprep.subr.mxu0 0.0
    %2023 = vmatpush1.msra.mxu0 0.0
    %2024 = vmatprep.subr.mxu0 0.0
    %2025 = vmatpush1.msra.mxu0 0.0
    %2026 = vmatprep.subr.mxu0 0.0
    %2027 = vmatpush1.msra.mxu0 0.0
    %2028 = vmatprep.subr.mxu0 0.0
    %2029 = vmatpush1.msra.mxu0 0.0
    %2030 = vmatprep.subr.mxu0 0.0
    %2031 = vmatpush1.msra.mxu0 %v1054
    %2032 = vmatprep.subr.mxu0 0.0
    %2033 = vmatpush2.msra.mxu0 0.0
    %2034 = vmatprep.subr.mxu0 0.0
    %2035 = vmatpush2.msra.mxu0 0.0
    %2036 = vmatprep.subr.mxu0 0.0
    %2037 = vmatpush2.msra.mxu0 0.0
    %2038 = vmatprep.subr.mxu0 0.0
    %2039 = vmatpush2.msra.mxu0 0.0
    %2040 = vmatprep.subr.mxu0 0.0
    %2041 = vmatpush2.msra.mxu0 0.0
    %2042 = vmatprep.subr.mxu0 0.0
    %2043 = vmatpush2.msra.mxu0 0.0
    %2044 = vmatprep.subr.mxu0 0.0
    %2045 = vmatpush2.msra.mxu0 0.0
    %2046 = vmatprep.subr.mxu0 0.0
    %2047 = vmatpush2.msra.mxu0 0.0
    %2048 = vmatprep.subr.mxu0 0.0
    %2049 = vmatpush2.msra.mxu0 0.0
    %2050 = vmatprep.subr.mxu0 0.0
    %2051 = vmatpush2.msra.mxu0 0.0
    %2052 = vmatprep.subr.mxu0 0.0
    %2053 = vmatpush2.msra.mxu0 0.0
    %2054 = vmatprep.subr.mxu0 0.0
    %2055 = vmatpush2.msra.mxu0 0.0
    %2056 = vmatprep.subr.mxu0 0.0
    %2057 = vmatpush2.msra.mxu0 0.0
    %2058 = vmatprep.subr.mxu0 0.0
    %2059 = vmatpush2.msra.mxu0 0.0
    %2060 = vmatprep.subr.mxu0 0.0
    %2061 = vmatpush2.msra.mxu0 0.0
    %2062 = vmatprep.subr.mxu0 0.0
    %2063 = vmatpush2.msra.mxu0 0.0
    %2064 = vmatprep.mubr.f32.mxu0 0.0
    %2065 = vmatmul.mubr.f32.gmra.mxu0 %v1998
    %v2066 = vpop.f32.mrf.mxu0
    %v2067 = vadd.f32 0.0, %v2066
    %v2068 = vpop.f32.mrf.mxu0
    %2069 = vdwg.mxu0
    %v2071 = vsel %vm1057, %v1774, 0
    %2073 = vmatprep.subr.mxu0 0.0
    %2074 = vmatpush1.msra.mxu0 0.0
    %2075 = vmatprep.subr.mxu0 0.0
    %2076 = vmatpush1.msra.mxu0 0.0
    %2077 = vmatprep.subr.mxu0 0.0
    %2078 = vmatpush1.msra.mxu0 0.0
    %2079 = vmatprep.subr.mxu0 0.0
    %2080 = vmatpush1.msra.mxu0 0.0
    %2081 = vmatprep.subr.mxu0 0.0
    %2082 = vmatpush1.msra.mxu0 0.0
    %2083 = vmatprep.subr.mxu0 0.0
    %2084 = vmatpush1.msra.mxu0 0.0
    %2085 = vmatprep.subr.mxu0 0.0
    %2086 = vmatpush1.msra.mxu0 0.0
    %2087 = vmatprep.subr.mxu0 0.0
    %2088 = vmatpush1.msra.mxu0 0.0
    %2089 = vmatprep.subr.mxu0 0.0
    %2090 = vmatpush1.msra.mxu0 0.0
    %2091 = vmatprep.subr.mxu0 0.0
    %2092 = vmatpush1.msra.mxu0 0.0
    %2093 = vmatprep.subr.mxu0 0.0
    %2094 = vmatpush1.msra.mxu0 0.0
    %2095 = vmatprep.subr.mxu0 0.0
    %2096 = vmatpush1.msra.mxu0 0.0
    %2097 = vmatprep.subr.mxu0 0.0
    %2098 = vmatpush1.msra.mxu0 0.0
    %2099 = vmatprep.subr.mxu0 0.0
    %2100 = vmatpush1.msra.mxu0 0.0
    %2101 = vmatprep.subr.mxu0 0.0
    %2102 = vmatpush1.msra.mxu0 0.0
    %2103 = vmatprep.subr.mxu0 0.0
    %2104 = vmatpush1.msra.mxu0 %v987
    %2105 = vmatprep.subr.mxu0 0.0
    %2106 = vmatpush2.msra.mxu0 0.0
    %2107 = vmatprep.subr.mxu0 0.0
    %2108 = vmatpush2.msra.mxu0 0.0
    %2109 = vmatprep.subr.mxu0 0.0
    %2110 = vmatpush2.msra.mxu0 0.0
    %2111 = vmatprep.subr.mxu0 0.0
    %2112 = vmatpush2.msra.mxu0 0.0
    %2113 = vmatprep.subr.mxu0 0.0
    %2114 = vmatpush2.msra.mxu0 0.0
    %2115 = vmatprep.subr.mxu0 0.0
    %2116 = vmatpush2.msra.mxu0 0.0
    %2117 = vmatprep.subr.mxu0 0.0
    %2118 = vmatpush2.msra.mxu0 0.0
    %2119 = vmatprep.subr.mxu0 0.0
    %2120 = vmatpush2.msra.mxu0 0.0
    %2121 = vmatprep.subr.mxu0 0.0
    %2122 = vmatpush2.msra.mxu0 0.0
    %2123 = vmatprep.subr.mxu0 0.0
    %2124 = vmatpush2.msra.mxu0 0.0
    %2125 = vmatprep.subr.mxu0 0.0
    %2126 = vmatpush2.msra.mxu0 0.0
    %2127 = vmatprep.subr.mxu0 0.0
    %2128 = vmatpush2.msra.mxu0 0.0
    %2129 = vmatprep.subr.mxu0 0.0
    %2130 = vmatpush2.msra.mxu0 0.0
    %2131 = vmatprep.subr.mxu0 0.0
    %2132 = vmatpush2.msra.mxu0 0.0
    %2133 = vmatprep.subr.mxu0 0.0
    %2134 = vmatpush2.msra.mxu0 0.0
    %2135 = vmatprep.subr.mxu0 0.0
    %2136 = vmatpush2.msra.mxu0 0.0
    %2137 = vmatprep.mubr.f32.mxu0 0.0
    %2138 = vmatmul.mubr.f32.gmra.mxu0 %v2071
    %v2139 = vpop.f32.mrf.mxu0
    %v2140 = vadd.f32 0.0, %v2139
    %v2141 = vpop.f32.mrf.mxu0
    %2142 = vdwg.mxu0
    %v2144 = vsel %vm1057, %v1775, 0
    %2146 = vmatprep.subr.mxu0 0.0
    %2147 = vmatpush1.msra.mxu0 0.0
    %2148 = vmatprep.subr.mxu0 0.0
    %2149 = vmatpush1.msra.mxu0 0.0
    %2150 = vmatprep.subr.mxu0 0.0
    %2151 = vmatpush1.msra.mxu0 0.0
    %2152 = vmatprep.subr.mxu0 0.0
    %2153 = vmatpush1.msra.mxu0 0.0
    %2154 = vmatprep.subr.mxu0 0.0
    %2155 = vmatpush1.msra.mxu0 0.0
    %2156 = vmatprep.subr.mxu0 0.0
    %2157 = vmatpush1.msra.mxu0 0.0
    %2158 = vmatprep.subr.mxu0 0.0
    %2159 = vmatpush1.msra.mxu0 0.0
    %2160 = vmatprep.subr.mxu0 0.0
    %2161 = vmatpush1.msra.mxu0 0.0
    %2162 = vmatprep.subr.mxu0 0.0
    %2163 = vmatpush1.msra.mxu0 0.0
    %2164 = vmatprep.subr.mxu0 0.0
    %2165 = vmatpush1.msra.mxu0 0.0
    %2166 = vmatprep.subr.mxu0 0.0
    %2167 = vmatpush1.msra.mxu0 0.0
    %2168 = vmatprep.subr.mxu0 0.0
    %2169 = vmatpush1.msra.mxu0 0.0
    %2170 = vmatprep.subr.mxu0 0.0
    %2171 = vmatpush1.msra.mxu0 0.0
    %2172 = vmatprep.subr.mxu0 0.0
    %2173 = vmatpush1.msra.mxu0 0.0
    %2174 = vmatprep.subr.mxu0 0.0
    %2175 = vmatpush1.msra.mxu0 0.0
    %2176 = vmatprep.subr.mxu0 0.0
    %2177 = vmatpush1.msra.mxu0 %v1055
    %2178 = vmatprep.subr.mxu0 0.0
    %2179 = vmatpush2.msra.mxu0 0.0
    %2180 = vmatprep.subr.mxu0 0.0
    %2181 = vmatpush2.msra.mxu0 0.0
    %2182 = vmatprep.subr.mxu0 0.0
    %2183 = vmatpush2.msra.mxu0 0.0
    %2184 = vmatprep.subr.mxu0 0.0
    %2185 = vmatpush2.msra.mxu0 0.0
    %2186 = vmatprep.subr.mxu0 0.0
    %2187 = vmatpush2.msra.mxu0 0.0
    %2188 = vmatprep.subr.mxu0 0.0
    %2189 = vmatpush2.msra.mxu0 0.0
    %2190 = vmatprep.subr.mxu0 0.0
    %2191 = vmatpush2.msra.mxu0 0.0
    %2192 = vmatprep.subr.mxu0 0.0
    %2193 = vmatpush2.msra.mxu0 0.0
    %2194 = vmatprep.subr.mxu0 0.0
    %2195 = vmatpush2.msra.mxu0 0.0
    %2196 = vmatprep.subr.mxu0 0.0
    %2197 = vmatpush2.msra.mxu0 0.0
    %2198 = vmatprep.subr.mxu0 0.0
    %2199 = vmatpush2.msra.mxu0 0.0
    %2200 = vmatprep.subr.mxu0 0.0
    %2201 = vmatpush2.msra.mxu0 0.0
    %2202 = vmatprep.subr.mxu0 0.0
    %2203 = vmatpush2.msra.mxu0 0.0
    %2204 = vmatprep.subr.mxu0 0.0
    %2205 = vmatpush2.msra.mxu0 0.0
    %2206 = vmatprep.subr.mxu0 0.0
    %2207 = vmatpush2.msra.mxu0 0.0
    %2208 = vmatprep.subr.mxu0 0.0
    %2209 = vmatpush2.msra.mxu0 0.0
    %2210 = vmatprep.mubr.f32.mxu0 0.0
    %2211 = vmatmul.mubr.f32.gmra.mxu0 %v2144
    %v2212 = vpop.f32.mrf.mxu0
    %v2213 = vadd.f32 0.0, %v2212
    %v2214 = vpop.f32.mrf.mxu0
    %2215 = vdwg.mxu0
    %v2217 = vsel %vm1057, %v1776, 0
    %2219 = vmatprep.subr.mxu0 0.0
    %2220 = vmatpush1.msra.mxu0 0.0
    %2221 = vmatprep.subr.mxu0 0.0
    %2222 = vmatpush1.msra.mxu0 0.0
    %2223 = vmatprep.subr.mxu0 0.0
    %2224 = vmatpush1.msra.mxu0 0.0
    %2225 = vmatprep.subr.mxu0 0.0
    %2226 = vmatpush1.msra.mxu0 0.0
    %2227 = vmatprep.subr.mxu0 0.0
    %2228 = vmatpush1.msra.mxu0 0.0
    %2229 = vmatprep.subr.mxu0 0.0
    %2230 = vmatpush1.msra.mxu0 0.0
    %2231 = vmatprep.subr.mxu0 0.0
    %2232 = vmatpush1.msra.mxu0 0.0
    %2233 = vmatprep.subr.mxu0 0.0
    %2234 = vmatpush1.msra.mxu0 0.0
    %2235 = vmatprep.subr.mxu0 0.0
    %2236 = vmatpush1.msra.mxu0 0.0
    %2237 = vmatprep.subr.mxu0 0.0
    %2238 = vmatpush1.msra.mxu0 0.0
    %2239 = vmatprep.subr.mxu0 0.0
    %2240 = vmatpush1.msra.mxu0 0.0
    %2241 = vmatprep.subr.mxu0 0.0
    %2242 = vmatpush1.msra.mxu0 0.0
    %2243 = vmatprep.subr.mxu0 0.0
    %2244 = vmatpush1.msra.mxu0 0.0
    %2245 = vmatprep.subr.mxu0 0.0
    %2246 = vmatpush1.msra.mxu0 0.0
    %2247 = vmatprep.subr.mxu0 0.0
    %2248 = vmatpush1.msra.mxu0 0.0
    %2249 = vmatprep.subr.mxu0 0.0
    %2250 = vmatpush1.msra.mxu0 %v988
    %2251 = vmatprep.subr.mxu0 0.0
    %2252 = vmatpush2.msra.mxu0 0.0
    %2253 = vmatprep.subr.mxu0 0.0
    %2254 = vmatpush2.msra.mxu0 0.0
    %2255 = vmatprep.subr.mxu0 0.0
    %2256 = vmatpush2.msra.mxu0 0.0
    %2257 = vmatprep.subr.mxu0 0.0
    %2258 = vmatpush2.msra.mxu0 0.0
    %2259 = vmatprep.subr.mxu0 0.0
    %2260 = vmatpush2.msra.mxu0 0.0
    %2261 = vmatprep.subr.mxu0 0.0
    %2262 = vmatpush2.msra.mxu0 0.0
    %2263 = vmatprep.subr.mxu0 0.0
    %2264 = vmatpush2.msra.mxu0 0.0
    %2265 = vmatprep.subr.mxu0 0.0
    %2266 = vmatpush2.msra.mxu0 0.0
    %2267 = vmatprep.subr.mxu0 0.0
    %2268 = vmatpush2.msra.mxu0 0.0
    %2269 = vmatprep.subr.mxu0 0.0
    %2270 = vmatpush2.msra.mxu0 0.0
    %2271 = vmatprep.subr.mxu0 0.0
    %2272 = vmatpush2.msra.mxu0 0.0
    %2273 = vmatprep.subr.mxu0 0.0
    %2274 = vmatpush2.msra.mxu0 0.0
    %2275 = vmatprep.subr.mxu0 0.0
    %2276 = vmatpush2.msra.mxu0 0.0
    %2277 = vmatprep.subr.mxu0 0.0
    %2278 = vmatpush2.msra.mxu0 0.0
    %2279 = vmatprep.subr.mxu0 0.0
    %2280 = vmatpush2.msra.mxu0 0.0
    %2281 = vmatprep.subr.mxu0 0.0
    %2282 = vmatpush2.msra.mxu0 0.0
    %2283 = vmatprep.mubr.f32.mxu0 0.0
    %2284 = vmatmul.mubr.f32.gmra.mxu0 %v2217
    %v2285 = vpop.f32.mrf.mxu0
    %v2286 = vadd.f32 0.0, %v2285
    %v2287 = vpop.f32.mrf.mxu0
    %2288 = vdwg.mxu0
    %v2290 = vsel %vm1057, %v1777, 0
    %2292 = vmatprep.subr.mxu0 0.0
    %2293 = vmatpush1.msra.mxu0 0.0
    %2294 = vmatprep.subr.mxu0 0.0
    %2295 = vmatpush1.msra.mxu0 0.0
    %2296 = vmatprep.subr.mxu0 0.0
    %2297 = vmatpush1.msra.mxu0 0.0
    %2298 = vmatprep.subr.mxu0 0.0
    %2299 = vmatpush1.msra.mxu0 0.0
    %2300 = vmatprep.subr.mxu0 0.0
    %2301 = vmatpush1.msra.mxu0 0.0
    %2302 = vmatprep.subr.mxu0 0.0
    %2303 = vmatpush1.msra.mxu0 0.0
    %2304 = vmatprep.subr.mxu0 0.0
    %2305 = vmatpush1.msra.mxu0 0.0
    %2306 = vmatprep.subr.mxu0 0.0
    %2307 = vmatpush1.msra.mxu0 0.0
    %2308 = vmatprep.subr.mxu0 0.0
    %2309 = vmatpush1.msra.mxu0 0.0
    %2310 = vmatprep.subr.mxu0 0.0
    %2311 = vmatpush1.msra.mxu0 0.0
    %2312 = vmatprep.subr.mxu0 0.0
    %2313 = vmatpush1.msra.mxu0 0.0
    %2314 = vmatprep.subr.mxu0 0.0
    %2315 = vmatpush1.msra.mxu0 0.0
    %2316 = vmatprep.subr.mxu0 0.0
    %2317 = vmatpush1.msra.mxu0 0.0
    %2318 = vmatprep.subr.mxu0 0.0
    %2319 = vmatpush1.msra.mxu0 0.0
    %2320 = vmatprep.subr.mxu0 0.0
    %2321 = vmatpush1.msra.mxu0 0.0
    %2322 = vmatprep.subr.mxu0 0.0
    %2323 = vmatpush1.msra.mxu0 %v1056
    %2324 = vmatprep.subr.mxu0 0.0
    %2325 = vmatpush2.msra.mxu0 0.0
    %2326 = vmatprep.subr.mxu0 0.0
    %2327 = vmatpush2.msra.mxu0 0.0
    %2328 = vmatprep.subr.mxu0 0.0
    %2329 = vmatpush2.msra.mxu0 0.0
    %2330 = vmatprep.subr.mxu0 0.0
    %2331 = vmatpush2.msra.mxu0 0.0
    %2332 = vmatprep.subr.mxu0 0.0
    %2333 = vmatpush2.msra.mxu0 0.0
    %2334 = vmatprep.subr.mxu0 0.0
    %2335 = vmatpush2.msra.mxu0 0.0
    %2336 = vmatprep.subr.mxu0 0.0
    %2337 = vmatpush2.msra.mxu0 0.0
    %2338 = vmatprep.subr.mxu0 0.0
    %2339 = vmatpush2.msra.mxu0 0.0
    %2340 = vmatprep.subr.mxu0 0.0
    %2341 = vmatpush2.msra.mxu0 0.0
    %2342 = vmatprep.subr.mxu0 0.0
    %2343 = vmatpush2.msra.mxu0 0.0
    %2344 = vmatprep.subr.mxu0 0.0
    %2345 = vmatpush2.msra.mxu0 0.0
    %2346 = vmatprep.subr.mxu0 0.0
    %2347 = vmatpush2.msra.mxu0 0.0
    %2348 = vmatprep.subr.mxu0 0.0
    %2349 = vmatpush2.msra.mxu0 0.0
    %2350 = vmatprep.subr.mxu0 0.0
    %2351 = vmatpush2.msra.mxu0 0.0
    %2352 = vmatprep.subr.mxu0 0.0
    %2353 = vmatpush2.msra.mxu0 0.0
    %2354 = vmatprep.subr.mxu0 0.0
    %2355 = vmatpush2.msra.mxu0 0.0
    %2356 = vmatprep.mubr.f32.mxu0 0.0
    %2357 = vmatmul.mubr.f32.gmra.mxu0 %v2290
    %v2358 = vpop.f32.mrf.mxu0
    %v2359 = vadd.f32 0.0, %v2358
    %v2360 = vpop.f32.mrf.mxu0
    %2361 = vdwg.mxu0
    %v2362 = vcombine.low %v1848, %v2140
    %v2363 = vcombine.high %v1848, %v2140
    %v2365 = vunpack.c.l.s4 1983009808
    %v2366 = vunpack.c.0.s8 %v2365
    %v2367 = vlaneseq
    %v2368 = vshrl.u32 %v2367, 7
    %v2369 = vsub.s32 %v2366, %v2368
    %v2370 = vrot.slane %v2362, %v2369
    %v2372 = vunpack.c.l.s4 1983009808
    %v2373 = vunpack.c.0.s8 %v2372
    %v2374 = vlaneseq
    %v2375 = vshrl.u32 %v2374, 7
    %v2376 = vsub.s32 %v2373, %v2375
    %v2377 = vrot.slane %v2363, %v2376
    %v2378 = vcombine.low %v1994, %v2286
    %v2379 = vcombine.high %v1994, %v2286
    %v2381 = vunpack.c.l.s4 1983009808
    %v2382 = vunpack.c.0.s8 %v2381
    %v2383 = vlaneseq
    %v2384 = vshrl.u32 %v2383, 7
    %v2385 = vsub.s32 %v2382, %v2384
    %v2386 = vrot.slane %v2378, %v2385
    %v2388 = vunpack.c.l.s4 1983009808
    %v2389 = vunpack.c.0.s8 %v2388
    %v2390 = vlaneseq
    %v2391 = vshrl.u32 %v2390, 7
    %v2392 = vsub.s32 %v2389, %v2391
    %v2393 = vrot.slane %v2379, %v2392
    %v2394 = vcombine.low %v2370, %v2386
    %v2395 = vcombine.high %v2370, %v2386
    %v2397 = vunpack.c.l.s4 1934713408
    %v2398 = vunpack.c.0.s8 %v2397
    %v2399 = vlaneseq
    %v2400 = vshrl.u32 %v2399, 7
    %v2401 = vsub.s32 %v2398, %v2400
    %v2402 = vrot.slane %v2394, %v2401
    %v2404 = vunpack.c.l.s4 1934713408
    %v2405 = vunpack.c.0.s8 %v2404
    %v2406 = vlaneseq
    %v2407 = vshrl.u32 %v2406, 7
    %v2408 = vsub.s32 %v2405, %v2407
    %v2409 = vrot.slane %v2395, %v2408
    %v2410 = vcombine.low %v2377, %v2393
    %v2411 = vcombine.high %v2377, %v2393
    %v2413 = vunpack.c.l.s4 1934713408
    %v2414 = vunpack.c.0.s8 %v2413
    %v2415 = vlaneseq
    %v2416 = vshrl.u32 %v2415, 7
    %v2417 = vsub.s32 %v2414, %v2416
    %v2418 = vrot.slane %v2410, %v2417
    %v2420 = vunpack.c.l.s4 1934713408
    %v2421 = vunpack.c.0.s8 %v2420
    %v2422 = vlaneseq
    %v2423 = vshrl.u32 %v2422, 7
    %v2424 = vsub.s32 %v2421, %v2423
    %v2425 = vrot.slane %v2411, %v2424
    %v2426 = vcombine.high %v2402, 0.0
    %v2427 = vcombine.high %v2409, 0.0
    %v2428 = vcombine.high %v2418, 0.0
    %v2429 = vcombine.high %v2425, 0.0
    %v2430 = vcombine.low %v1921, %v2213
    %v2431 = vcombine.high %v1921, %v2213
    %v2433 = vunpack.c.l.s4 1983009808
    %v2434 = vunpack.c.0.s8 %v2433
    %v2435 = vlaneseq
    %v2436 = vshrl.u32 %v2435, 7
    %v2437 = vsub.s32 %v2434, %v2436
    %v2438 = vrot.slane %v2430, %v2437
    %v2440 = vunpack.c.l.s4 1983009808
    %v2441 = vunpack.c.0.s8 %v2440
    %v2442 = vlaneseq
    %v2443 = vshrl.u32 %v2442, 7
    %v2444 = vsub.s32 %v2441, %v2443
    %v2445 = vrot.slane %v2431, %v2444
    %v2446 = vcombine.low %v2067, %v2359
    %v2447 = vcombine.high %v2067, %v2359
    %v2449 = vunpack.c.l.s4 1983009808
    %v2450 = vunpack.c.0.s8 %v2449
    %v2451 = vlaneseq
    %v2452 = vshrl.u32 %v2451, 7
    %v2453 = vsub.s32 %v2450, %v2452
    %v2454 = vrot.slane %v2446, %v2453
    %v2456 = vunpack.c.l.s4 1983009808
    %v2457 = vunpack.c.0.s8 %v2456
    %v2458 = vlaneseq
    %v2459 = vshrl.u32 %v2458, 7
    %v2460 = vsub.s32 %v2457, %v2459
    %v2461 = vrot.slane %v2447, %v2460
    %v2462 = vcombine.low %v2438, %v2454
    %v2463 = vcombine.high %v2438, %v2454
    %v2465 = vunpack.c.l.s4 1934713408
    %v2466 = vunpack.c.0.s8 %v2465
    %v2467 = vlaneseq
    %v2468 = vshrl.u32 %v2467, 7
    %v2469 = vsub.s32 %v2466, %v2468
    %v2470 = vrot.slane %v2462, %v2469
    %v2472 = vunpack.c.l.s4 1934713408
    %v2473 = vunpack.c.0.s8 %v2472
    %v2474 = vlaneseq
    %v2475 = vshrl.u32 %v2474, 7
    %v2476 = vsub.s32 %v2473, %v2475
    %v2477 = vrot.slane %v2463, %v2476
    %v2478 = vcombine.low %v2445, %v2461
    %v2479 = vcombine.high %v2445, %v2461
    %v2481 = vunpack.c.l.s4 1934713408
    %v2482 = vunpack.c.0.s8 %v2481
    %v2483 = vlaneseq
    %v2484 = vshrl.u32 %v2483, 7
    %v2485 = vsub.s32 %v2482, %v2484
    %v2486 = vrot.slane %v2478, %v2485
    %v2488 = vunpack.c.l.s4 1934713408
    %v2489 = vunpack.c.0.s8 %v2488
    %v2490 = vlaneseq
    %v2491 = vshrl.u32 %v2490, 7
    %v2492 = vsub.s32 %v2489, %v2491
    %v2493 = vrot.slane %v2479, %v2492
    %v2494 = vcombine.high %v2470, 0.0
    %v2495 = vcombine.high %v2477, 0.0
    %v2496 = vcombine.high %v2486, 0.0
    %v2497 = vcombine.high %v2493, 0.0
    %v2498 = vcombine.low %v2402, %v2409
    %v2500 = vunpack.c.l.s4 1983009808
    %v2501 = vunpack.c.0.s8 %v2500
    %v2502 = vlaneseq
    %v2503 = vshrl.u32 %v2502, 7
    %v2504 = vsub.s32 %v2501, %v2503
    %v2505 = vrot.slane %v2498, %v2504
    %v2506 = vcombine.low %v2426, %v2427
    %v2508 = vunpack.c.l.s4 1983009808
    %v2509 = vunpack.c.0.s8 %v2508
    %v2510 = vlaneseq
    %v2511 = vshrl.u32 %v2510, 7
    %v2512 = vsub.s32 %v2509, %v2511
    %v2513 = vrot.slane %v2506, %v2512
    %v2514 = vcombine.low %v2418, %v2425
    %v2516 = vunpack.c.l.s4 1983009808
    %v2517 = vunpack.c.0.s8 %v2516
    %v2518 = vlaneseq
    %v2519 = vshrl.u32 %v2518, 7
    %v2520 = vsub.s32 %v2517, %v2519
    %v2521 = vrot.slane %v2514, %v2520
    %v2522 = vcombine.low %v2428, %v2429
    %v2524 = vunpack.c.l.s4 1983009808
    %v2525 = vunpack.c.0.s8 %v2524
    %v2526 = vlaneseq
    %v2527 = vshrl.u32 %v2526, 7
    %v2528 = vsub.s32 %v2525, %v2527
    %v2529 = vrot.slane %v2522, %v2528
    %v2530 = vcombine.low %v2505, %v2513
    %v2531 = vcombine.high %v2505, %v2513
    %v2533 = vunpack.c.l.s4 1934713408
    %v2534 = vunpack.c.0.s8 %v2533
    %v2535 = vlaneseq
    %v2536 = vshrl.u32 %v2535, 7
    %v2537 = vsub.s32 %v2534, %v2536
    %v2538 = vrot.slane %v2530, %v2537
    %v2540 = vunpack.c.l.s4 1934713408
    %v2541 = vunpack.c.0.s8 %v2540
    %v2542 = vlaneseq
    %v2543 = vshrl.u32 %v2542, 7
    %v2544 = vsub.s32 %v2541, %v2543
    %v2545 = vrot.slane %v2531, %v2544
    %v2546 = vcombine.low %v2521, %v2529
    %v2547 = vcombine.high %v2521, %v2529
    %v2549 = vunpack.c.l.s4 1934713408
    %v2550 = vunpack.c.0.s8 %v2549
    %v2551 = vlaneseq
    %v2552 = vshrl.u32 %v2551, 7
    %v2553 = vsub.s32 %v2550, %v2552
    %v2554 = vrot.slane %v2546, %v2553
    %v2556 = vunpack.c.l.s4 1934713408
    %v2557 = vunpack.c.0.s8 %v2556
    %v2558 = vlaneseq
    %v2559 = vshrl.u32 %v2558, 7
    %v2560 = vsub.s32 %v2557, %v2559
    %v2561 = vrot.slane %v2547, %v2560
    %v2562 = vcombine.low %v2538, %v2554
    %v2563 = vcombine.high %v2538, %v2554
    %v2564 = vcombine.low %v2545, %v2561
    %v2565 = vcombine.high %v2545, %v2561
    %v2566 = vcombine.low %v2470, %v2477
    %v2568 = vunpack.c.l.s4 1983009808
    %v2569 = vunpack.c.0.s8 %v2568
    %v2570 = vlaneseq
    %v2571 = vshrl.u32 %v2570, 7
    %v2572 = vsub.s32 %v2569, %v2571
    %v2573 = vrot.slane %v2566, %v2572
    %v2574 = vcombine.low %v2494, %v2495
    %v2576 = vunpack.c.l.s4 1983009808
    %v2577 = vunpack.c.0.s8 %v2576
    %v2578 = vlaneseq
    %v2579 = vshrl.u32 %v2578, 7
    %v2580 = vsub.s32 %v2577, %v2579
    %v2581 = vrot.slane %v2574, %v2580
    %v2582 = vcombine.low %v2486, %v2493
    %v2584 = vunpack.c.l.s4 1983009808
    %v2585 = vunpack.c.0.s8 %v2584
    %v2586 = vlaneseq
    %v2587 = vshrl.u32 %v2586, 7
    %v2588 = vsub.s32 %v2585, %v2587
    %v2589 = vrot.slane %v2582, %v2588
    %v2590 = vcombine.low %v2496, %v2497
    %v2592 = vunpack.c.l.s4 1983009808
    %v2593 = vunpack.c.0.s8 %v2592
    %v2594 = vlaneseq
    %v2595 = vshrl.u32 %v2594, 7
    %v2596 = vsub.s32 %v2593, %v2595
    %v2597 = vrot.slane %v2590, %v2596
    %v2598 = vcombine.low %v2573, %v2581
    %v2599 = vcombine.high %v2573, %v2581
    %v2601 = vunpack.c.l.s4 1934713408
    %v2602 = vunpack.c.0.s8 %v2601
    %v2603 = vlaneseq
    %v2604 = vshrl.u32 %v2603, 7
    %v2605 = vsub.s32 %v2602, %v2604
    %v2606 = vrot.slane %v2598, %v2605
    %v2608 = vunpack.c.l.s4 1934713408
    %v2609 = vunpack.c.0.s8 %v2608
    %v2610 = vlaneseq
    %v2611 = vshrl.u32 %v2610, 7
    %v2612 = vsub.s32 %v2609, %v2611
    %v2613 = vrot.slane %v2599, %v2612
    %v2614 = vcombine.low %v2589, %v2597
    %v2615 = vcombine.high %v2589, %v2597
    %v2617 = vunpack.c.l.s4 1934713408
    %v2618 = vunpack.c.0.s8 %v2617
    %v2619 = vlaneseq
    %v2620 = vshrl.u32 %v2619, 7
    %v2621 = vsub.s32 %v2618, %v2620
    %v2622 = vrot.slane %v2614, %v2621
    %v2624 = vunpack.c.l.s4 1934713408
    %v2625 = vunpack.c.0.s8 %v2624
    %v2626 = vlaneseq
    %v2627 = vshrl.u32 %v2626, 7
    %v2628 = vsub.s32 %v2625, %v2627
    %v2629 = vrot.slane %v2615, %v2628
    %v2630 = vcombine.low %v2606, %v2622
    %v2631 = vcombine.high %v2606, %v2622
    %v2632 = vcombine.low %v2613, %v2629
    %v2633 = vcombine.high %v2613, %v2629
    %2636 = vrot.lane.b32.xlu0 %v2563, 8
    %v2637 = vpop.permute.xlu0 %2636
    %2638 = vrot.lane.b32.xlu0 %v2631, 8
    %v2639 = vpop.permute.xlu0 %2638
    %2644 = vrot.lane.b32.xlu0 %v2564, 16
    %v2645 = vpop.permute.xlu0 %2644
    %2646 = vrot.lane.b32.xlu0 %v2632, 16
    %v2647 = vpop.permute.xlu0 %2646
    %2652 = vrot.lane.b32.xlu0 %v2565, 24
    %v2653 = vpop.permute.xlu0 %2652
    %2654 = vrot.lane.b32.xlu0 %v2633, 24
    %v2655 = vpop.permute.xlu0 %2654
    %v2658 = vsel %vm1057, %v2562, %v2637
    %v2659 = vsel %vm1057, %v2630, %v2639
    %vm2660 = vcmask 130048
    %v2661 = vsel %vm2660, %v2658, %v2645
    %v2662 = vsel %vm2660, %v2659, %v2647
    %vm2663 = vcmask 195584
    %v2664 = vsel %vm2663, %v2661, %v2653
    %v2665 = vsel %vm2663, %v2662, %v2655
    %v2666 = vld [vmem:[#allocation7] sm:$0xff]
    %v2667 = vld [vmem:[#allocation7 + $0x8] sm:$0xff]
    %v2668 = vld [vmem:[#allocation7 + $0x10] sm:$0xff]
    %v2669 = vld [vmem:[#allocation7 + $0x18] sm:$0xff]
    %v2670 = vld [vmem:[%s4] sm:$0x1]
    %v2672 = vlaneseq
    %v2673 = vshrl.u32 %v2672, 7
    %v2674 = vsub.s32 0, %v2673
    %v2675 = vrot.slane %v2670, %v2674
    %v2678 = vsel %vm75, %v2664, 0
    %v2681 = vsel %vm75, %v2665, 0
    %2683 = vmatprep.subr.mxu0 0.0
    %2684 = vmatpush1.msra.mxu0 0.0
    %2685 = vmatprep.subr.mxu0 0.0
    %2686 = vmatpush1.msra.mxu0 0.0
    %2687 = vmatprep.subr.mxu0 0.0
    %2688 = vmatpush1.msra.mxu0 0.0
    %2689 = vmatprep.subr.mxu0 0.0
    %2690 = vmatpush1.msra.mxu0 0.0
    %2691 = vmatprep.subr.mxu0 0.0
    %2692 = vmatpush1.msra.mxu0 0.0
    %2693 = vmatprep.subr.mxu0 0.0
    %2694 = vmatpush1.msra.mxu0 0.0
    %2695 = vmatprep.subr.mxu0 0.0
    %2696 = vmatpush1.msra.mxu0 0.0
    %2697 = vmatprep.subr.mxu0 0.0
    %2698 = vmatpush1.msra.mxu0 0.0
    %2699 = vmatprep.subr.mxu0 0.0
    %2700 = vmatpush1.msra.mxu0 0.0
    %2701 = vmatprep.subr.mxu0 0.0
    %2702 = vmatpush1.msra.mxu0 0.0
    %2703 = vmatprep.subr.mxu0 0.0
    %2704 = vmatpush1.msra.mxu0 0.0
    %2705 = vmatprep.subr.mxu0 0.0
    %2706 = vmatpush1.msra.mxu0 0.0
    %2707 = vmatprep.subr.mxu0 0.0
    %2708 = vmatpush1.msra.mxu0 %v2669
    %2709 = vmatprep.subr.mxu0 0.0
    %2710 = vmatpush1.msra.mxu0 %v2668
    %2711 = vmatprep.subr.mxu0 0.0
    %2712 = vmatpush1.msra.mxu0 %v2667
    %2713 = vmatprep.subr.mxu0 0.0
    %2714 = vmatpush1.msra.mxu0 %v2666
    %2715 = vmatprep.subr.mxu0 0.0
    %2716 = vmatpush2.msra.mxu0 0.0
    %2717 = vmatprep.subr.mxu0 0.0
    %2718 = vmatpush2.msra.mxu0 0.0
    %2719 = vmatprep.subr.mxu0 0.0
    %2720 = vmatpush2.msra.mxu0 0.0
    %2721 = vmatprep.subr.mxu0 0.0
    %2722 = vmatpush2.msra.mxu0 0.0
    %2723 = vmatprep.subr.mxu0 0.0
    %2724 = vmatpush2.msra.mxu0 0.0
    %2725 = vmatprep.subr.mxu0 0.0
    %2726 = vmatpush2.msra.mxu0 0.0
    %2727 = vmatprep.subr.mxu0 0.0
    %2728 = vmatpush2.msra.mxu0 0.0
    %2729 = vmatprep.subr.mxu0 0.0
    %2730 = vmatpush2.msra.mxu0 0.0
    %2731 = vmatprep.subr.mxu0 0.0
    %2732 = vmatpush2.msra.mxu0 0.0
    %2733 = vmatprep.subr.mxu0 0.0
    %2734 = vmatpush2.msra.mxu0 0.0
    %2735 = vmatprep.subr.mxu0 0.0
    %2736 = vmatpush2.msra.mxu0 0.0
    %2737 = vmatprep.subr.mxu0 0.0
    %2738 = vmatpush2.msra.mxu0 0.0
    %2739 = vmatprep.subr.mxu0 0.0
    %2740 = vmatpush2.msra.mxu0 0.0
    %2741 = vmatprep.subr.mxu0 0.0
    %2742 = vmatpush2.msra.mxu0 0.0
    %2743 = vmatprep.subr.mxu0 0.0
    %2744 = vmatpush2.msra.mxu0 0.0
    %2745 = vmatprep.subr.mxu0 0.0
    %2746 = vmatpush2.msra.mxu0 0.0
    %2747 = vmatprep.mubr.f32.mxu0 0.0
    %2748 = vmatmul.mubr.f32.gmra.mxu0 %v2678
    %v2749 = vpop.f32.mrf.mxu0
    %v2750 = vadd.f32 %v2675, %v2749
    %v2751 = vpop.f32.mrf.mxu0
    %2752 = vmatprep.mubr.f32.mxu0 0.0
    %2753 = vmatmul.mubr.f32.gmra.mxu0 %v2681
    %v2754 = vpop.f32.mrf.mxu0
    %v2755 = vadd.f32 %v2675, %v2754
    %v2756 = vpop.f32.mrf.mxu0
    %2757 = vdwg.mxu0
    %2758 = vst.msk [vmem:[#allocation8] sm:$0xff] %vm75, %v2750
    %2759 = vst.msk [vmem:[#allocation8 + $0x8] sm:$0xff] %vm75, %v2755
    // Predicated region
    $region34: #{tpu_custom_call.1} parent=1 // pred_check
      _
    $region35: #{tpu_custom_call.1} parent=1 // pred_check_branch
      %2761 = sbr.rel (0) target = $region37
    $region36: #{tpu_custom_call.1} parent=1 // pred_region
      %s2763 = ssub.s32 256, 256
      %2764 = vsyncadd [#allocation4], %s2763
      %s2765 = sshll.u32 [#allocation8], 4
      %s2766 = int_to_ptr.vmem [resolvable:$true] %s2765
      %2771 = dma.vmem_to_hbm [thread:$0]  %s2766, 256, %s5, [#allocation4], 128, 128, 8
    $region37: #{tpu_custom_call.1} parent=1 // pred_fallthru
      _
    // Predicated region
    $region38: #{tpu_custom_call.1} parent=1 // pred_check
      _
    $region39: #{tpu_custom_call.1} parent=1 // pred_check_branch
      %2773 = sbr.rel (0) target = $region41
    $region40: #{tpu_custom_call.1} parent=1 // pred_region
      %2774 = dma.done [#allocation4], 256
    $region41: #{tpu_custom_call.1} parent=1 // pred_fallthru
      _
    %2775 = vsyncpa [#allocation3], 1
    %2776 = vsyncpa [#allocation6], 1
    %2777 = vsyncpa [#allocation4], 1

// kernel: tpu_custom_call.1
$region0: #{tpu_custom_call.1}
  #allocation0 [shape = 'u32[]', space=smem, size = 0x4, offset = 0x4, fixed_abs, tag = 'smem constant byte address 0x4 - core index']
  #allocation1 [shape = 'u32[144,128]{1,0:T(1,128)}', space=vmem, size = 0x12000, scoped, tag = 'internal scratch']
  %s0 = inlined_call_operand.hbm [shape: f32[2,8,32], index: 0, kind: input, shape index: {}]
  %s1 = inlined_call_operand.hbm [shape: f32[32,96], index: 1, kind: input, shape index: {}]
  %s2 = inlined_call_operand.vmem [shape: f32[1,96], index: 2, kind: input, shape index: {}]
  %s3 = inlined_call_operand.hbm [shape: f32[32,32], index: 3, kind: input, shape index: {}]
  %s4 = inlined_call_operand.vmem [shape: f32[1,32], index: 4, kind: input, shape index: {}]
  %s5 = inlined_call_operand.hbm [shape: f32[2,8,32], index: 5, kind: output, shape index: {}]
  %s6 = sld [smem:[#allocation0]]
  $region42: #{tpu_custom_call.1} parent=0
    _
  %s8 = ssub.s32 1, %s6
  %s9 = scalar_select 0, %s8, %s6
  $region1: #{tpu_custom_call.1} parent=0
    #allocation2 [shape = 'u8[8192]{0}', space=vmem, size = 0x2000, scoped, tag = 'input window, operand 0, single buffered']
    #allocation3 [shape = 's32[1]{0}', space=sflag, size = 0x4, scoped, tag = 'scoped memory for tpu_custom_call.1']
    #allocation4 [shape = 's32[1]{0}', space=sflag, size = 0x4, scoped, tag = 'scoped memory for tpu_custom_call.1']
    #allocation5 [shape = 'u8[16384]{0}', space=vmem, size = 0x4000, scoped, tag = 'input window, operand 1, single buffered']
    #allocation6 [shape = 's32[1]{0}', space=sflag, size = 0x4, scoped, tag = 'scoped memory for tpu_custom_call.1']
    #allocation7 [shape = 'u8[16384]{0}', space=vmem, size = 0x4000, scoped, tag = 'input window, operand 3, single buffered']
    #allocation8 [shape = 'u8[8192]{0}', space=vmem, size = 0x2000, scoped, tag = 'output window, operand 0, single buffered']
    %10 = vsyncpa [#allocation3], 0
    %11 = vsyncpa [#allocation6], 0
    %12 = vsyncpa [#allocation4], 0
    // Predicated region
    $region2: #{tpu_custom_call.1} parent=1 // pred_check
      _
    $region3: #{tpu_custom_call.1} parent=1 // pred_check_branch
      %14 = sbr.rel (0) target = $region5
    $region4: #{tpu_custom_call.1} parent=1 // pred_region
      %s16 = ssub.s32 256, 256
      %17 = vsyncadd [#allocation3], %s16
      %s18 = sshll.u32 [#allocation2], 4
      %s19 = int_to_ptr.vmem [resolvable:$true] %s18
      %24 = dma.hbm_to_vmem [thread:$0]  %s0, 256, %s19, [#allocation3], 128, 128, 8
    $region5: #{tpu_custom_call.1} parent=1 // pred_fallthru
      _
    // Predicated region
    $region6: #{tpu_custom_call.1} parent=1 // pred_check
      _
    $region7: #{tpu_custom_call.1} parent=1 // pred_check_branch
      %26 = sbr.rel (0) target = $region9
    $region8: #{tpu_custom_call.1} parent=1 // pred_region
      %s28 = ssub.s32 512, 512
      %29 = vsyncadd [#allocation6], %s28
      %s30 = sshll.u32 [#allocation5], 4
      %s31 = int_to_ptr.vmem [resolvable:$true] %s30
      %36 = dma.hbm_to_vmem [thread:$0]  %s1, 512, %s31, [#allocation6], 128, 128, 8
    $region9: #{tpu_custom_call.1} parent=1 // pred_fallthru
      _
    // Predicated region
    $region10: #{tpu_custom_call.1} parent=1 // pred_check
      _
    $region11: #{tpu_custom_call.1} parent=1 // pred_check_branch
      %38 = sbr.rel (0) target = $region13
    $region12: #{tpu_custom_call.1} parent=1 // pred_region
      _
    $region13: #{tpu_custom_call.1} parent=1 // pred_fallthru
      _
    // Predicated region
    $region14: #{tpu_custom_call.1} parent=1 // pred_check
      _
    $region15: #{tpu_custom_call.1} parent=1 // pred_check_branch
      %40 = sbr.rel (0) target = $region17
    $region16: #{tpu_custom_call.1} parent=1 // pred_region
      %s42 = ssub.s32 512, 512
      %43 = vsyncadd [#allocation6], %s42
      %s44 = sshll.u32 [#allocation7], 4
      %s45 = int_to_ptr.vmem [resolvable:$true] %s44
      %50 = dma.hbm_to_vmem [thread:$0]  %s3, 512, %s45, [#allocation6], 128, 128, 8
    $region17: #{tpu_custom_call.1} parent=1 // pred_fallthru
      _
    // Predicated region
    $region18: #{tpu_custom_call.1} parent=1 // pred_check
      _
    $region19: #{tpu_custom_call.1} parent=1 // pred_check_branch
      %52 = sbr.rel (0) target = $region21
    $region20: #{tpu_custom_call.1} parent=1 // pred_region
      _
    $region21: #{tpu_custom_call.1} parent=1 // pred_fallthru
      _
    // Predicated region
    $region22: #{tpu_custom_call.1} parent=1 // pred_check
      _
    $region23: #{tpu_custom_call.1} parent=1 // pred_check_branch
      %54 = sbr.rel (0) target = $region25
    $region24: #{tpu_custom_call.1} parent=1 // pred_region
      %55 = dma.done [#allocation3], 256
    $region25: #{tpu_custom_call.1} parent=1 // pred_fallthru
      _
    // Predicated region
    $region26: #{tpu_custom_call.1} parent=1 // pred_check
      _
    $region27: #{tpu_custom_call.1} parent=1 // pred_check_branch
      %57 = sbr.rel (0) target = $region29
    $region28: #{tpu_custom_call.1} parent=1 // pred_region
      %58 = dma.done [#allocation6], 512
    $region29: #{tpu_custom_call.1} parent=1 // pred_fallthru
      _
    // Predicated region
    $region30: #{tpu_custom_call.1} parent=1 // pred_check
      _
    $region31: #{tpu_custom_call.1} parent=1 // pred_check_branch
      %60 = sbr.rel (0) target = $region33
    $region32: #{tpu_custom_call.1} parent=1 // pred_region
      %61 = dma.done [#allocation6], 512
    $region33: #{tpu_custom_call.1} parent=1 // pred_fallthru
      _
    %v62 = vld [vmem:[#allocation2] sm:$0xff]
    %v63 = vld [vmem:[#allocation2 + $0x8] sm:$0xff]
    %v64 = vld [vmem:[#allocation5] sm:$0xff]
    %v65 = vld [vmem:[#allocation5 + $0x8] sm:$0xff]
    %v66 = vld [vmem:[#allocation5 + $0x10] sm:$0xff]
    %v67 = vld [vmem:[#allocation5 + $0x18] sm:$0xff]
    %v68 = vld [vmem:[%s2] sm:$0x1]
    %v70 = vlaneseq
    %v71 = vshrl.u32 %v70, 7
    %v72 = vsub.s32 0, %v71
    %v73 = vrot.slane %v68, %v72
    %vm75 = vcmask 261120
    %v77 = vsel %vm75, %v62, 0
    %v80 = vsel %vm75, %v63, 0
    %82 = vmatprep.subr.mxu0 0.0
    %83 = vmatpush1.msra.mxu0 0.0
    %84 = vmatprep.subr.mxu0 0.0
    %85 = vmatpush1.msra.mxu0 0.0
    %86 = vmatprep.subr.mxu0 0.0
    %87 = vmatpush1.msra.mxu0 0.0
    %88 = vmatprep.subr.mxu0 0.0
    %89 = vmatpush1.msra.mxu0 0.0
    %90 = vmatprep.subr.mxu0 0.0
    %91 = vmatpush1.msra.mxu0 0.0
    %92 = vmatprep.subr.mxu0 0.0
    %93 = vmatpush1.msra.mxu0 0.0
    %94 = vmatprep.subr.mxu0 0.0
    %95 = vmatpush1.msra.mxu0 0.0
    %96 = vmatprep.subr.mxu0 0.0
    %97 = vmatpush1.msra.mxu0 0.0
    %98 = vmatprep.subr.mxu0 0.0
    %99 = vmatpush1.msra.mxu0 0.0
    %100 = vmatprep.subr.mxu0 0.0
    %101 = vmatpush1.msra.mxu0 0.0
    %102 = vmatprep.subr.mxu0 0.0
    %103 = vmatpush1.msra.mxu0 0.0
    %104 = vmatprep.subr.mxu0 0.0
    %105 = vmatpush1.msra.mxu0 0.0
    %106 = vmatprep.subr.mxu0 0.0
    %107 = vmatpush1.msra.mxu0 %v67
    %108 = vmatprep.subr.mxu0 0.0
    %109 = vmatpush1.msra.mxu0 %v66
    %110 = vmatprep.subr.mxu0 0.0
    %111 = vmatpush1.msra.mxu0 %v65
    %112 = vmatprep.subr.mxu0 0.0
    %113 = vmatpush1.msra.mxu0 %v64
    %114 = vmatprep.subr.mxu0 0.0
    %115 = vmatpush2.msra.mxu0 0.0
    %116 = vmatprep.subr.mxu0 0.0
    %117 = vmatpush2.msra.mxu0 0.0
    %118 = vmatprep.subr.mxu0 0.0
    %119 = vmatpush2.msra.mxu0 0.0
    %120 = vmatprep.subr.mxu0 0.0
    %121 = vmatpush2.msra.mxu0 0.0
    %122 = vmatprep.subr.mxu0 0.0
    %123 = vmatpush2.msra.mxu0 0.0
    %124 = vmatprep.subr.mxu0 0.0
    %125 = vmatpush2.msra.mxu0 0.0
    %126 = vmatprep.subr.mxu0 0.0
    %127 = vmatpush2.msra.mxu0 0.0
    %128 = vmatprep.subr.mxu0 0.0
    %129 = vmatpush2.msra.mxu0 0.0
    %130 = vmatprep.subr.mxu0 0.0
    %131 = vmatpush2.msra.mxu0 0.0
    %132 = vmatprep.subr.mxu0 0.0
    %133 = vmatpush2.msra.mxu0 0.0
    %134 = vmatprep.subr.mxu0 0.0
    %135 = vmatpush2.msra.mxu0 0.0
    %136 = vmatprep.subr.mxu0 0.0
    %137 = vmatpush2.msra.mxu0 0.0
    %138 = vmatprep.subr.mxu0 0.0
    %139 = vmatpush2.msra.mxu0 0.0
    %140 = vmatprep.subr.mxu0 0.0
    %141 = vmatpush2.msra.mxu0 0.0
    %142 = vmatprep.subr.mxu0 0.0
    %143 = vmatpush2.msra.mxu0 0.0
    %144 = vmatprep.subr.mxu0 0.0
    %145 = vmatpush2.msra.mxu0 0.0
    %146 = vmatprep.mubr.f32.mxu0 0.0
    %147 = vmatmul.mubr.f32.gmra.mxu0 %v77
    %v148 = vpop.f32.mrf.mxu0
    %v149 = vadd.f32 %v73, %v148
    %v150 = vpop.f32.mrf.mxu0
    %151 = vmatprep.mubr.f32.mxu0 0.0
    %152 = vmatmul.mubr.f32.gmra.mxu0 %v80
    %v153 = vpop.f32.mrf.mxu0
    %v154 = vadd.f32 %v73, %v153
    %v155 = vpop.f32.mrf.mxu0
    %156 = vdwg.mxu0
    %v157 = vmul.f32 %v149, 0.35355338
    %v158 = vmul.f32 %v154, 0.35355338
    %161 = vrot.lane.b32.xlu0 %v157, 120
    %v162 = vpop.permute.xlu0 %161
    %163 = vrot.lane.b32.xlu0 %v158, 120
    %v164 = vpop.permute.xlu0 %163
    %167 = vrot.lane.b32.xlu0 %v157, 112
    %v168 = vpop.permute.xlu0 %167
    %169 = vrot.lane.b32.xlu0 %v158, 112
    %v170 = vpop.permute.xlu0 %169
    %173 = vrot.lane.b32.xlu0 %v157, 104
    %v174 = vpop.permute.xlu0 %173
    %175 = vrot.lane.b32.xlu0 %v158, 104
    %v176 = vpop.permute.xlu0 %175
    %v179 = vcombine.low %v157, %v168
    %v180 = vcombine.high %v157, %v168
    %v182 = vunpack.c.l.s4 1983009808
    %v183 = vunpack.c.0.s8 %v182
    %v184 = vlaneseq
    %v185 = vshrl.u32 %v184, 7
    %v186 = vsub.s32 %v183, %v185
    %v187 = vrot.slane %v179, %v186
    %v189 = vunpack.c.l.s4 1983009808
    %v190 = vunpack.c.0.s8 %v189
    %v191 = vlaneseq
    %v192 = vshrl.u32 %v191, 7
    %v193 = vsub.s32 %v190, %v192
    %v194 = vrot.slane %v180, %v193
    %v195 = vcombine.low %v162, %v174
    %v196 = vcombine.high %v162, %v174
    %v198 = vunpack.c.l.s4 1983009808
    %v199 = vunpack.c.0.s8 %v198
    %v200 = vlaneseq
    %v201 = vshrl.u32 %v200, 7
    %v202 = vsub.s32 %v199, %v201
    %v203 = vrot.slane %v195, %v202
    %v205 = vunpack.c.l.s4 1983009808
    %v206 = vunpack.c.0.s8 %v205
    %v207 = vlaneseq
    %v208 = vshrl.u32 %v207, 7
    %v209 = vsub.s32 %v206, %v208
    %v210 = vrot.slane %v196, %v209
    %v211 = vcombine.low %v187, %v203
    %v212 = vcombine.high %v187, %v203
    %v214 = vunpack.c.l.s4 1934713408
    %v215 = vunpack.c.0.s8 %v214
    %v216 = vlaneseq
    %v217 = vshrl.u32 %v216, 7
    %v218 = vsub.s32 %v215, %v217
    %v219 = vrot.slane %v211, %v218
    %v221 = vunpack.c.l.s4 1934713408
    %v222 = vunpack.c.0.s8 %v221
    %v223 = vlaneseq
    %v224 = vshrl.u32 %v223, 7
    %v225 = vsub.s32 %v222, %v224
    %v226 = vrot.slane %v212, %v225
    %v227 = vcombine.low %v194, %v210
    %v228 = vcombine.high %v194, %v210
    %v230 = vunpack.c.l.s4 1934713408
    %v231 = vunpack.c.0.s8 %v230
    %v232 = vlaneseq
    %v233 = vshrl.u32 %v232, 7
    %v234 = vsub.s32 %v231, %v233
    %v235 = vrot.slane %v227, %v234
    %v237 = vunpack.c.l.s4 1934713408
    %v238 = vunpack.c.0.s8 %v237
    %v239 = vlaneseq
    %v240 = vshrl.u32 %v239, 7
    %v241 = vsub.s32 %v238, %v240
    %v242 = vrot.slane %v228, %v241
    %v243 = vcombine.high %v219, 0.0
    %v244 = vcombine.high %v226, 0.0
    %v245 = vcombine.high %v235, 0.0
    %v246 = vcombine.high %v242, 0.0
    %v247 = vcombine.low %v158, %v170
    %v248 = vcombine.high %v158, %v170
    %v250 = vunpack.c.l.s4 1983009808
    %v251 = vunpack.c.0.s8 %v250
    %v252 = vlaneseq
    %v253 = vshrl.u32 %v252, 7
    %v254 = vsub.s32 %v251, %v253
    %v255 = vrot.slane %v247, %v254
    %v257 = vunpack.c.l.s4 1983009808
    %v258 = vunpack.c.0.s8 %v257
    %v259 = vlaneseq
    %v260 = vshrl.u32 %v259, 7
    %v261 = vsub.s32 %v258, %v260
    %v262 = vrot.slane %v248, %v261
    %v263 = vcombine.low %v164, %v176
    %v264 = vcombine.high %v164, %v176
    %v266 = vunpack.c.l.s4 1983009808
    %v267 = vunpack.c.0.s8 %v266
    %v268 = vlaneseq
    %v269 = vshrl.u32 %v268, 7
    %v270 = vsub.s32 %v267, %v269
    %v271 = vrot.slane %v263, %v270
    %v273 = vunpack.c.l.s4 1983009808
    %v274 = vunpack.c.0.s8 %v273
    %v275 = vlaneseq
    %v276 = vshrl.u32 %v275, 7
    %v277 = vsub.s32 %v274, %v276
    %v278 = vrot.slane %v264, %v277
    %v279 = vcombine.low %v255, %v271
    %v280 = vcombine.high %v255, %v271
    %v282 = vunpack.c.l.s4 1934713408
    %v283 = vunpack.c.0.s8 %v282
    %v284 = vlaneseq
    %v285 = vshrl.u32 %v284, 7
    %v286 = vsub.s32 %v283, %v285
    %v287 = vrot.slane %v279, %v286
    %v289 = vunpack.c.l.s4 1934713408
    %v290 = vunpack.c.0.s8 %v289
    %v291 = vlaneseq
    %v292 = vshrl.u32 %v291, 7
    %v293 = vsub.s32 %v290, %v292
    %v294 = vrot.slane %v280, %v293
    %v295 = vcombine.low %v262, %v278
    %v296 = vcombine.high %v262, %v278
    %v298 = vunpack.c.l.s4 1934713408
    %v299 = vunpack.c.0.s8 %v298
    %v300 = vlaneseq
    %v301 = vshrl.u32 %v300, 7
    %v302 = vsub.s32 %v299, %v301
    %v303 = vrot.slane %v295, %v302
    %v305 = vunpack.c.l.s4 1934713408
    %v306 = vunpack.c.0.s8 %v305
    %v307 = vlaneseq
    %v308 = vshrl.u32 %v307, 7
    %v309 = vsub.s32 %v306, %v308
    %v310 = vrot.slane %v296, %v309
    %v311 = vcombine.high %v287, 0.0
    %v312 = vcombine.high %v294, 0.0
    %v313 = vcombine.high %v303, 0.0
    %v314 = vcombine.high %v310, 0.0
    %v315 = vcombine.low %v219, %v226
    %v317 = vunpack.c.l.s4 1983009808
    %v318 = vunpack.c.0.s8 %v317
    %v319 = vlaneseq
    %v320 = vshrl.u32 %v319, 7
    %v321 = vsub.s32 %v318, %v320
    %v322 = vrot.slane %v315, %v321
    %v323 = vcombine.low %v243, %v244
    %v325 = vunpack.c.l.s4 1983009808
    %v326 = vunpack.c.0.s8 %v325
    %v327 = vlaneseq
    %v328 = vshrl.u32 %v327, 7
    %v329 = vsub.s32 %v326, %v328
    %v330 = vrot.slane %v323, %v329
    %v331 = vcombine.low %v235, %v242
    %v333 = vunpack.c.l.s4 1983009808
    %v334 = vunpack.c.0.s8 %v333
    %v335 = vlaneseq
    %v336 = vshrl.u32 %v335, 7
    %v337 = vsub.s32 %v334, %v336
    %v338 = vrot.slane %v331, %v337
    %v339 = vcombine.low %v245, %v246
    %v341 = vunpack.c.l.s4 1983009808
    %v342 = vunpack.c.0.s8 %v341
    %v343 = vlaneseq
    %v344 = vshrl.u32 %v343, 7
    %v345 = vsub.s32 %v342, %v344
    %v346 = vrot.slane %v339, %v345
    %v347 = vcombine.low %v322, %v330
    %v348 = vcombine.high %v322, %v330
    %v350 = vunpack.c.l.s4 1934713408
    %v351 = vunpack.c.0.s8 %v350
    %v352 = vlaneseq
    %v353 = vshrl.u32 %v352, 7
    %v354 = vsub.s32 %v351, %v353
    %v355 = vrot.slane %v347, %v354
    %v357 = vunpack.c.l.s4 1934713408
    %v358 = vunpack.c.0.s8 %v357
    %v359 = vlaneseq
    %v360 = vshrl.u32 %v359, 7
    %v361 = vsub.s32 %v358, %v360
    %v362 = vrot.slane %v348, %v361
    %v363 = vcombine.low %v338, %v346
    %v364 = vcombine.high %v338, %v346
    %v366 = vunpack.c.l.s4 1934713408
    %v367 = vunpack.c.0.s8 %v366
    %v368 = vlaneseq
    %v369 = vshrl.u32 %v368, 7
    %v370 = vsub.s32 %v367, %v369
    %v371 = vrot.slane %v363, %v370
    %v373 = vunpack.c.l.s4 1934713408
    %v374 = vunpack.c.0.s8 %v373
    %v375 = vlaneseq
    %v376 = vshrl.u32 %v375, 7
    %v377 = vsub.s32 %v374, %v376
    %v378 = vrot.slane %v364, %v377
    %v379 = vcombine.low %v355, %v371
    %v380 = vcombine.high %v355, %v371
    %v381 = vcombine.low %v362, %v378
    %v382 = vcombine.high %v362, %v378
    %v383 = vcombine.low %v287, %v294
    %v385 = vunpack.c.l.s4 1983009808
    %v386 = vunpack.c.0.s8 %v385
    %v387 = vlaneseq
    %v388 = vshrl.u32 %v387, 7
    %v389 = vsub.s32 %v386, %v388
    %v390 = vrot.slane %v383, %v389
    %v391 = vcombine.low %v311, %v312
    %v393 = vunpack.c.l.s4 1983009808
    %v394 = vunpack.c.0.s8 %v393
    %v395 = vlaneseq
    %v396 = vshrl.u32 %v395, 7
    %v397 = vsub.s32 %v394, %v396
    %v398 = vrot.slane %v391, %v397
    %v399 = vcombine.low %v303, %v310
    %v401 = vunpack.c.l.s4 1983009808
    %v402 = vunpack.c.0.s8 %v401
    %v403 = vlaneseq
    %v404 = vshrl.u32 %v403, 7
    %v405 = vsub.s32 %v402, %v404
    %v406 = vrot.slane %v399, %v405
    %v407 = vcombine.low %v313, %v314
    %v409 = vunpack.c.l.s4 1983009808
    %v410 = vunpack.c.0.s8 %v409
    %v411 = vlaneseq
    %v412 = vshrl.u32 %v411, 7
    %v413 = vsub.s32 %v410, %v412
    %v414 = vrot.slane %v407, %v413
    %v415 = vcombine.low %v390, %v398
    %v416 = vcombine.high %v390, %v398
    %v418 = vunpack.c.l.s4 1934713408
    %v419 = vunpack.c.0.s8 %v418
    %v420 = vlaneseq
    %v421 = vshrl.u32 %v420, 7
    %v422 = vsub.s32 %v419, %v421
    %v423 = vrot.slane %v415, %v422
    %v425 = vunpack.c.l.s4 1934713408
    %v426 = vunpack.c.0.s8 %v425
    %v427 = vlaneseq
    %v428 = vshrl.u32 %v427, 7
    %v429 = vsub.s32 %v426, %v428
    %v430 = vrot.slane %v416, %v429
    %v431 = vcombine.low %v406, %v414
    %v432 = vcombine.high %v406, %v414
    %v434 = vunpack.c.l.s4 1934713408
    %v435 = vunpack.c.0.s8 %v434
    %v436 = vlaneseq
    %v437 = vshrl.u32 %v436, 7
    %v438 = vsub.s32 %v435, %v437
    %v439 = vrot.slane %v431, %v438
    %v441 = vunpack.c.l.s4 1934713408
    %v442 = vunpack.c.0.s8 %v441
    %v443 = vlaneseq
    %v444 = vshrl.u32 %v443, 7
    %v445 = vsub.s32 %v442, %v444
    %v446 = vrot.slane %v432, %v445
    %v447 = vcombine.low %v423, %v439
    %v448 = vcombine.high %v423, %v439
    %v449 = vcombine.low %v430, %v446
    %v450 = vcombine.high %v430, %v446
    %453 = vrot.lane.b32.xlu0 %v149, 120
    %v454 = vpop.permute.xlu0 %453
    %455 = vrot.lane.b32.xlu0 %v154, 120
    %v456 = vpop.permute.xlu0 %455
    %457 = vrot.lane.b32.xlu0 %v149, 112
    %v458 = vpop.permute.xlu0 %457
    %459 = vrot.lane.b32.xlu0 %v154, 112
    %v460 = vpop.permute.xlu0 %459
    %461 = vrot.lane.b32.xlu0 %v149, 104
    %v462 = vpop.permute.xlu0 %461
    %463 = vrot.lane.b32.xlu0 %v154, 104
    %v464 = vpop.permute.xlu0 %463
    %465 = vrot.lane.b32.xlu0 %v149, 96
    %v466 = vpop.permute.xlu0 %465
    %467 = vrot.lane.b32.xlu0 %v154, 96
    %v468 = vpop.permute.xlu0 %467
    %469 = vrot.lane.b32.xlu0 %v454, 96
    %v470 = vpop.permute.xlu0 %469
    %471 = vrot.lane.b32.xlu0 %v456, 96
    %v472 = vpop.permute.xlu0 %471
    %473 = vrot.lane.b32.xlu0 %v458, 96
    %v474 = vpop.permute.xlu0 %473
    %475 = vrot.lane.b32.xlu0 %v460, 96
    %v476 = vpop.permute.xlu0 %475
    %477 = vrot.lane.b32.xlu0 %v462, 96
    %v478 = vpop.permute.xlu0 %477
    %479 = vrot.lane.b32.xlu0 %v464, 96
    %v480 = vpop.permute.xlu0 %479
    %v489 = vcombine.low %v466, %v474
    %v490 = vcombine.high %v466, %v474
    %v492 = vunpack.c.l.s4 1983009808
    %v493 = vunpack.c.0.s8 %v492
    %v494 = vlaneseq
    %v495 = vshrl.u32 %v494, 7
    %v496 = vsub.s32 %v493, %v495
    %v497 = vrot.slane %v489, %v496
    %v499 = vunpack.c.l.s4 1983009808
    %v500 = vunpack.c.0.s8 %v499
    %v501 = vlaneseq
    %v502 = vshrl.u32 %v501, 7
    %v503 = vsub.s32 %v500, %v502
    %v504 = vrot.slane %v490, %v503
    %v505 = vcombine.low %v470, %v478
    %v506 = vcombine.high %v470, %v478
    %v508 = vunpack.c.l.s4 1983009808
    %v509 = vunpack.c.0.s8 %v508
    %v510 = vlaneseq
    %v511 = vshrl.u32 %v510, 7
    %v512 = vsub.s32 %v509, %v511
    %v513 = vrot.slane %v505, %v512
    %v515 = vunpack.c.l.s4 1983009808
    %v516 = vunpack.c.0.s8 %v515
    %v517 = vlaneseq
    %v518 = vshrl.u32 %v517, 7
    %v519 = vsub.s32 %v516, %v518
    %v520 = vrot.slane %v506, %v519
    %v521 = vcombine.low %v497, %v513
    %v522 = vcombine.high %v497, %v513
    %v524 = vunpack.c.l.s4 1934713408
    %v525 = vunpack.c.0.s8 %v524
    %v526 = vlaneseq
    %v527 = vshrl.u32 %v526, 7
    %v528 = vsub.s32 %v525, %v527
    %v529 = vrot.slane %v521, %v528
    %v531 = vunpack.c.l.s4 1934713408
    %v532 = vunpack.c.0.s8 %v531
    %v533 = vlaneseq
    %v534 = vshrl.u32 %v533, 7
    %v535 = vsub.s32 %v532, %v534
    %v536 = vrot.slane %v522, %v535
    %v537 = vcombine.low %v504, %v520
    %v538 = vcombine.high %v504, %v520
    %v540 = vunpack.c.l.s4 1934713408
    %v541 = vunpack.c.0.s8 %v540
    %v542 = vlaneseq
    %v543 = vshrl.u32 %v542, 7
    %v544 = vsub.s32 %v541, %v543
    %v545 = vrot.slane %v537, %v544
    %v547 = vunpack.c.l.s4 1934713408
    %v548 = vunpack.c.0.s8 %v547
    %v549 = vlaneseq
    %v550 = vshrl.u32 %v549, 7
    %v551 = vsub.s32 %v548, %v550
    %v552 = vrot.slane %v538, %v551
    %v553 = vcombine.high %v529, 0.0
    %v554 = vcombine.high %v536, 0.0
    %v555 = vcombine.high %v545, 0.0
    %v556 = vcombine.high %v552, 0.0
    %v557 = vcombine.low %v468, %v476
    %v558 = vcombine.high %v468, %v476
    %v560 = vunpack.c.l.s4 1983009808
    %v561 = vunpack.c.0.s8 %v560
    %v562 = vlaneseq
    %v563 = vshrl.u32 %v562, 7
    %v564 = vsub.s32 %v561, %v563
    %v565 = vrot.slane %v557, %v564
    %v567 = vunpack.c.l.s4 1983009808
    %v568 = vunpack.c.0.s8 %v567
    %v569 = vlaneseq
    %v570 = vshrl.u32 %v569, 7
    %v571 = vsub.s32 %v568, %v570
    %v572 = vrot.slane %v558, %v571
    %v573 = vcombine.low %v472, %v480
    %v574 = vcombine.high %v472, %v480
    %v576 = vunpack.c.l.s4 1983009808
    %v577 = vunpack.c.0.s8 %v576
    %v578 = vlaneseq
    %v579 = vshrl.u32 %v578, 7
    %v580 = vsub.s32 %v577, %v579
    %v581 = vrot.slane %v573, %v580
    %v583 = vunpack.c.l.s4 1983009808
    %v584 = vunpack.c.0.s8 %v583
    %v585 = vlaneseq
    %v586 = vshrl.u32 %v585, 7
    %v587 = vsub.s32 %v584, %v586
    %v588 = vrot.slane %v574, %v587
    %v589 = vcombine.low %v565, %v581
    %v590 = vcombine.high %v565, %v581
    %v592 = vunpack.c.l.s4 1934713408
    %v593 = vunpack.c.0.s8 %v592
    %v594 = vlaneseq
    %v595 = vshrl.u32 %v594, 7
    %v596 = vsub.s32 %v593, %v595
    %v597 = vrot.slane %v589, %v596
    %v599 = vunpack.c.l.s4 1934713408
    %v600 = vunpack.c.0.s8 %v599
    %v601 = vlaneseq
    %v602 = vshrl.u32 %v601, 7
    %v603 = vsub.s32 %v600, %v602
    %v604 = vrot.slane %v590, %v603
    %v605 = vcombine.low %v572, %v588
    %v606 = vcombine.high %v572, %v588
    %v608 = vunpack.c.l.s4 1934713408
    %v609 = vunpack.c.0.s8 %v608
    %v610 = vlaneseq
    %v611 = vshrl.u32 %v610, 7
    %v612 = vsub.s32 %v609, %v611
    %v613 = vrot.slane %v605, %v612
    %v615 = vunpack.c.l.s4 1934713408
    %v616 = vunpack.c.0.s8 %v615
    %v617 = vlaneseq
    %v618 = vshrl.u32 %v617, 7
    %v619 = vsub.s32 %v616, %v618
    %v620 = vrot.slane %v606, %v619
    %v621 = vcombine.high %v597, 0.0
    %v622 = vcombine.high %v604, 0.0
    %v623 = vcombine.high %v613, 0.0
    %v624 = vcombine.high %v620, 0.0
    %v625 = vcombine.low %v529, %v536
    %v627 = vunpack.c.l.s4 1983009808
    %v628 = vunpack.c.0.s8 %v627
    %v629 = vlaneseq
    %v630 = vshrl.u32 %v629, 7
    %v631 = vsub.s32 %v628, %v630
    %v632 = vrot.slane %v625, %v631
    %v633 = vcombine.low %v553, %v554
    %v635 = vunpack.c.l.s4 1983009808
    %v636 = vunpack.c.0.s8 %v635
    %v637 = vlaneseq
    %v638 = vshrl.u32 %v637, 7
    %v639 = vsub.s32 %v636, %v638
    %v640 = vrot.slane %v633, %v639
    %v641 = vcombine.low %v545, %v552
    %v643 = vunpack.c.l.s4 1983009808
    %v644 = vunpack.c.0.s8 %v643
    %v645 = vlaneseq
    %v646 = vshrl.u32 %v645, 7
    %v647 = vsub.s32 %v644, %v646
    %v648 = vrot.slane %v641, %v647
    %v649 = vcombine.low %v555, %v556
    %v651 = vunpack.c.l.s4 1983009808
    %v652 = vunpack.c.0.s8 %v651
    %v653 = vlaneseq
    %v654 = vshrl.u32 %v653, 7
    %v655 = vsub.s32 %v652, %v654
    %v656 = vrot.slane %v649, %v655
    %v657 = vcombine.low %v632, %v640
    %v658 = vcombine.high %v632, %v640
    %v660 = vunpack.c.l.s4 1934713408
    %v661 = vunpack.c.0.s8 %v660
    %v662 = vlaneseq
    %v663 = vshrl.u32 %v662, 7
    %v664 = vsub.s32 %v661, %v663
    %v665 = vrot.slane %v657, %v664
    %v667 = vunpack.c.l.s4 1934713408
    %v668 = vunpack.c.0.s8 %v667
    %v669 = vlaneseq
    %v670 = vshrl.u32 %v669, 7
    %v671 = vsub.s32 %v668, %v670
    %v672 = vrot.slane %v658, %v671
    %v673 = vcombine.low %v648, %v656
    %v674 = vcombine.high %v648, %v656
    %v676 = vunpack.c.l.s4 1934713408
    %v677 = vunpack.c.0.s8 %v676
    %v678 = vlaneseq
    %v679 = vshrl.u32 %v678, 7
    %v680 = vsub.s32 %v677, %v679
    %v681 = vrot.slane %v673, %v680
    %v683 = vunpack.c.l.s4 1934713408
    %v684 = vunpack.c.0.s8 %v683
    %v685 = vlaneseq
    %v686 = vshrl.u32 %v685, 7
    %v687 = vsub.s32 %v684, %v686
    %v688 = vrot.slane %v674, %v687
    %v689 = vcombine.low %v665, %v681
    %v690 = vcombine.high %v665, %v681
    %v691 = vcombine.low %v672, %v688
    %v692 = vcombine.high %v672, %v688
    %v693 = vcombine.low %v597, %v604
    %v695 = vunpack.c.l.s4 1983009808
    %v696 = vunpack.c.0.s8 %v695
    %v697 = vlaneseq
    %v698 = vshrl.u32 %v697, 7
    %v699 = vsub.s32 %v696, %v698
    %v700 = vrot.slane %v693, %v699
    %v701 = vcombine.low %v621, %v622
    %v703 = vunpack.c.l.s4 1983009808
    %v704 = vunpack.c.0.s8 %v703
    %v705 = vlaneseq
    %v706 = vshrl.u32 %v705, 7
    %v707 = vsub.s32 %v704, %v706
    %v708 = vrot.slane %v701, %v707
    %v709 = vcombine.low %v613, %v620
    %v711 = vunpack.c.l.s4 1983009808
    %v712 = vunpack.c.0.s8 %v711
    %v713 = vlaneseq
    %v714 = vshrl.u32 %v713, 7
    %v715 = vsub.s32 %v712, %v714
    %v716 = vrot.slane %v709, %v715
    %v717 = vcombine.low %v623, %v624
    %v719 = vunpack.c.l.s4 1983009808
    %v720 = vunpack.c.0.s8 %v719
    %v721 = vlaneseq
    %v722 = vshrl.u32 %v721, 7
    %v723 = vsub.s32 %v720, %v722
    %v724 = vrot.slane %v717, %v723
    %v725 = vcombine.low %v700, %v708
    %v726 = vcombine.high %v700, %v708
    %v728 = vunpack.c.l.s4 1934713408
    %v729 = vunpack.c.0.s8 %v728
    %v730 = vlaneseq
    %v731 = vshrl.u32 %v730, 7
    %v732 = vsub.s32 %v729, %v731
    %v733 = vrot.slane %v725, %v732
    %v735 = vunpack.c.l.s4 1934713408
    %v736 = vunpack.c.0.s8 %v735
    %v737 = vlaneseq
    %v738 = vshrl.u32 %v737, 7
    %v739 = vsub.s32 %v736, %v738
    %v740 = vrot.slane %v726, %v739
    %v741 = vcombine.low %v716, %v724
    %v742 = vcombine.high %v716, %v724
    %v744 = vunpack.c.l.s4 1934713408
    %v745 = vunpack.c.0.s8 %v744
    %v746 = vlaneseq
    %v747 = vshrl.u32 %v746, 7
    %v748 = vsub.s32 %v745, %v747
    %v749 = vrot.slane %v741, %v748
    %v751 = vunpack.c.l.s4 1934713408
    %v752 = vunpack.c.0.s8 %v751
    %v753 = vlaneseq
    %v754 = vshrl.u32 %v753, 7
    %v755 = vsub.s32 %v752, %v754
    %v756 = vrot.slane %v742, %v755
    %v757 = vcombine.low %v733, %v749
    %v758 = vcombine.high %v733, %v749
    %v759 = vcombine.low %v740, %v756
    %v760 = vcombine.high %v740, %v756
    %761 = vrot.lane.b32.xlu0 %v149, 64
    %v762 = vpop.permute.xlu0 %761
    %763 = vrot.lane.b32.xlu0 %v154, 64
    %v764 = vpop.permute.xlu0 %763
    %765 = vrot.lane.b32.xlu0 %v454, 64
    %v766 = vpop.permute.xlu0 %765
    %767 = vrot.lane.b32.xlu0 %v456, 64
    %v768 = vpop.permute.xlu0 %767
    %769 = vrot.lane.b32.xlu0 %v458, 64
    %v770 = vpop.permute.xlu0 %769
    %771 = vrot.lane.b32.xlu0 %v460, 64
    %v772 = vpop.permute.xlu0 %771
    %773 = vrot.lane.b32.xlu0 %v462, 64
    %v774 = vpop.permute.xlu0 %773
    %775 = vrot.lane.b32.xlu0 %v464, 64
    %v776 = vpop.permute.xlu0 %775
    %v785 = vcombine.low %v762, %v770
    %v786 = vcombine.high %v762, %v770
    %v788 = vunpack.c.l.s4 1983009808
    %v789 = vunpack.c.0.s8 %v788
    %v790 = vlaneseq
    %v791 = vshrl.u32 %v790, 7
    %v792 = vsub.s32 %v789, %v791
    %v793 = vrot.slane %v785, %v792
    %v795 = vunpack.c.l.s4 1983009808
    %v796 = vunpack.c.0.s8 %v795
    %v797 = vlaneseq
    %v798 = vshrl.u32 %v797, 7
    %v799 = vsub.s32 %v796, %v798
    %v800 = vrot.slane %v786, %v799
    %v801 = vcombine.low %v766, %v774
    %v802 = vcombine.high %v766, %v774
    %v804 = vunpack.c.l.s4 1983009808
    %v805 = vunpack.c.0.s8 %v804
    %v806 = vlaneseq
    %v807 = vshrl.u32 %v806, 7
    %v808 = vsub.s32 %v805, %v807
    %v809 = vrot.slane %v801, %v808
    %v811 = vunpack.c.l.s4 1983009808
    %v812 = vunpack.c.0.s8 %v811
    %v813 = vlaneseq
    %v814 = vshrl.u32 %v813, 7
    %v815 = vsub.s32 %v812, %v814
    %v816 = vrot.slane %v802, %v815
    %v817 = vcombine.low %v793, %v809
    %v818 = vcombine.high %v793, %v809
    %v820 = vunpack.c.l.s4 1934713408
    %v821 = vunpack.c.0.s8 %v820
    %v822 = vlaneseq
    %v823 = vshrl.u32 %v822, 7
    %v824 = vsub.s32 %v821, %v823
    %v825 = vrot.slane %v817, %v824
    %v827 = vunpack.c.l.s4 1934713408
    %v828 = vunpack.c.0.s8 %v827
    %v829 = vlaneseq
    %v830 = vshrl.u32 %v829, 7
    %v831 = vsub.s32 %v828, %v830
    %v832 = vrot.slane %v818, %v831
    %v833 = vcombine.low %v800, %v816
    %v834 = vcombine.high %v800, %v816
    %v836 = vunpack.c.l.s4 1934713408
    %v837 = vunpack.c.0.s8 %v836
    %v838 = vlaneseq
    %v839 = vshrl.u32 %v838, 7
    %v840 = vsub.s32 %v837, %v839
    %v841 = vrot.slane %v833, %v840
    %v843 = vunpack.c.l.s4 1934713408
    %v844 = vunpack.c.0.s8 %v843
    %v845 = vlaneseq
    %v846 = vshrl.u32 %v845, 7
    %v847 = vsub.s32 %v844, %v846
    %v848 = vrot.slane %v834, %v847
    %v849 = vcombine.high %v825, 0.0
    %v850 = vcombine.high %v832, 0.0
    %v851 = vcombine.high %v841, 0.0
    %v852 = vcombine.high %v848, 0.0
    %v853 = vcombine.low %v764, %v772
    %v854 = vcombine.high %v764, %v772
    %v856 = vunpack.c.l.s4 1983009808
    %v857 = vunpack.c.0.s8 %v856
    %v858 = vlaneseq
    %v859 = vshrl.u32 %v858, 7
    %v860 = vsub.s32 %v857, %v859
    %v861 = vrot.slane %v853, %v860
    %v863 = vunpack.c.l.s4 1983009808
    %v864 = vunpack.c.0.s8 %v863
    %v865 = vlaneseq
    %v866 = vshrl.u32 %v865, 7
    %v867 = vsub.s32 %v864, %v866
    %v868 = vrot.slane %v854, %v867
    %v869 = vcombine.low %v768, %v776
    %v870 = vcombine.high %v768, %v776
    %v872 = vunpack.c.l.s4 1983009808
    %v873 = vunpack.c.0.s8 %v872
    %v874 = vlaneseq
    %v875 = vshrl.u32 %v874, 7
    %v876 = vsub.s32 %v873, %v875
    %v877 = vrot.slane %v869, %v876
    %v879 = vunpack.c.l.s4 1983009808
    %v880 = vunpack.c.0.s8 %v879
    %v881 = vlaneseq
    %v882 = vshrl.u32 %v881, 7
    %v883 = vsub.s32 %v880, %v882
    %v884 = vrot.slane %v870, %v883
    %v885 = vcombine.low %v861, %v877
    %v886 = vcombine.high %v861, %v877
    %v888 = vunpack.c.l.s4 1934713408
    %v889 = vunpack.c.0.s8 %v888
    %v890 = vlaneseq
    %v891 = vshrl.u32 %v890, 7
    %v892 = vsub.s32 %v889, %v891
    %v893 = vrot.slane %v885, %v892
    %v895 = vunpack.c.l.s4 1934713408
    %v896 = vunpack.c.0.s8 %v895
    %v897 = vlaneseq
    %v898 = vshrl.u32 %v897, 7
    %v899 = vsub.s32 %v896, %v898
    %v900 = vrot.slane %v886, %v899
    %v901 = vcombine.low %v868, %v884
    %v902 = vcombine.high %v868, %v884
    %v904 = vunpack.c.l.s4 1934713408
    %v905 = vunpack.c.0.s8 %v904
    %v906 = vlaneseq
    %v907 = vshrl.u32 %v906, 7
    %v908 = vsub.s32 %v905, %v907
    %v909 = vrot.slane %v901, %v908
    %v911 = vunpack.c.l.s4 1934713408
    %v912 = vunpack.c.0.s8 %v911
    %v913 = vlaneseq
    %v914 = vshrl.u32 %v913, 7
    %v915 = vsub.s32 %v912, %v914
    %v916 = vrot.slane %v902, %v915
    %v917 = vcombine.high %v893, 0.0
    %v918 = vcombine.high %v900, 0.0
    %v919 = vcombine.high %v909, 0.0
    %v920 = vcombine.high %v916, 0.0
    %v921 = vcombine.low %v825, %v832
    %v923 = vunpack.c.l.s4 1983009808
    %v924 = vunpack.c.0.s8 %v923
    %v925 = vlaneseq
    %v926 = vshrl.u32 %v925, 7
    %v927 = vsub.s32 %v924, %v926
    %v928 = vrot.slane %v921, %v927
    %v929 = vcombine.low %v849, %v850
    %v931 = vunpack.c.l.s4 1983009808
    %v932 = vunpack.c.0.s8 %v931
    %v933 = vlaneseq
    %v934 = vshrl.u32 %v933, 7
    %v935 = vsub.s32 %v932, %v934
    %v936 = vrot.slane %v929, %v935
    %v937 = vcombine.low %v841, %v848
    %v939 = vunpack.c.l.s4 1983009808
    %v940 = vunpack.c.0.s8 %v939
    %v941 = vlaneseq
    %v942 = vshrl.u32 %v941, 7
    %v943 = vsub.s32 %v940, %v942
    %v944 = vrot.slane %v937, %v943
    %v945 = vcombine.low %v851, %v852
    %v947 = vunpack.c.l.s4 1983009808
    %v948 = vunpack.c.0.s8 %v947
    %v949 = vlaneseq
    %v950 = vshrl.u32 %v949, 7
    %v951 = vsub.s32 %v948, %v950
    %v952 = vrot.slane %v945, %v951
    %v953 = vcombine.low %v928, %v936
    %v954 = vcombine.high %v928, %v936
    %v956 = vunpack.c.l.s4 1934713408
    %v957 = vunpack.c.0.s8 %v956
    %v958 = vlaneseq
    %v959 = vshrl.u32 %v958, 7
    %v960 = vsub.s32 %v957, %v959
    %v961 = vrot.slane %v953, %v960
    %v963 = vunpack.c.l.s4 1934713408
    %v964 = vunpack.c.0.s8 %v963
    %v965 = vlaneseq
    %v966 = vshrl.u32 %v965, 7
    %v967 = vsub.s32 %v964, %v966
    %v968 = vrot.slane %v954, %v967
    %v969 = vcombine.low %v944, %v952
    %v970 = vcombine.high %v944, %v952
    %v972 = vunpack.c.l.s4 1934713408
    %v973 = vunpack.c.0.s8 %v972
    %v974 = vlaneseq
    %v975 = vshrl.u32 %v974, 7
    %v976 = vsub.s32 %v973, %v975
    %v977 = vrot.slane %v969, %v976
    %v979 = vunpack.c.l.s4 1934713408
    %v980 = vunpack.c.0.s8 %v979
    %v981 = vlaneseq
    %v982 = vshrl.u32 %v981, 7
    %v983 = vsub.s32 %v980, %v982
    %v984 = vrot.slane %v970, %v983
    %v985 = vcombine.low %v961, %v977
    %v986 = vcombine.high %v961, %v977
    %v987 = vcombine.low %v968, %v984
    %v988 = vcombine.high %v968, %v984
    %v989 = vcombine.low %v893, %v900
    %v991 = vunpack.c.l.s4 1983009808
    %v992 = vunpack.c.0.s8 %v991
    %v993 = vlaneseq
    %v994 = vshrl.u32 %v993, 7
    %v995 = vsub.s32 %v992, %v994
    %v996 = vrot.slane %v989, %v995
    %v997 = vcombine.low %v917, %v918
    %v999 = vunpack.c.l.s4 1983009808
    %v1000 = vunpack.c.0.s8 %v999
    %v1001 = vlaneseq
    %v1002 = vshrl.u32 %v1001, 7
    %v1003 = vsub.s32 %v1000, %v1002
    %v1004 = vrot.slane %v997, %v1003
    %v1005 = vcombine.low %v909, %v916
    %v1007 = vunpack.c.l.s4 1983009808
    %v1008 = vunpack.c.0.s8 %v1007
    %v1009 = vlaneseq
    %v1010 = vshrl.u32 %v1009, 7
    %v1011 = vsub.s32 %v1008, %v1010
    %v1012 = vrot.slane %v1005, %v1011
    %v1013 = vcombine.low %v919, %v920
    %v1015 = vunpack.c.l.s4 1983009808
    %v1016 = vunpack.c.0.s8 %v1015
    %v1017 = vlaneseq
    %v1018 = vshrl.u32 %v1017, 7
    %v1019 = vsub.s32 %v1016, %v1018
    %v1020 = vrot.slane %v1013, %v1019
    %v1021 = vcombine.low %v996, %v1004
    %v1022 = vcombine.high %v996, %v1004
    %v1024 = vunpack.c.l.s4 1934713408
    %v1025 = vunpack.c.0.s8 %v1024
    %v1026 = vlaneseq
    %v1027 = vshrl.u32 %v1026, 7
    %v1028 = vsub.s32 %v1025, %v1027
    %v1029 = vrot.slane %v1021, %v1028
    %v1031 = vunpack.c.l.s4 1934713408
    %v1032 = vunpack.c.0.s8 %v1031
    %v1033 = vlaneseq
    %v1034 = vshrl.u32 %v1033, 7
    %v1035 = vsub.s32 %v1032, %v1034
    %v1036 = vrot.slane %v1022, %v1035
    %v1037 = vcombine.low %v1012, %v1020
    %v1038 = vcombine.high %v1012, %v1020
    %v1040 = vunpack.c.l.s4 1934713408
    %v1041 = vunpack.c.0.s8 %v1040
    %v1042 = vlaneseq
    %v1043 = vshrl.u32 %v1042, 7
    %v1044 = vsub.s32 %v1041, %v1043
    %v1045 = vrot.slane %v1037, %v1044
    %v1047 = vunpack.c.l.s4 1934713408
    %v1048 = vunpack.c.0.s8 %v1047
    %v1049 = vlaneseq
    %v1050 = vshrl.u32 %v1049, 7
    %v1051 = vsub.s32 %v1048, %v1050
    %v1052 = vrot.slane %v1038, %v1051
    %v1053 = vcombine.low %v1029, %v1045
    %v1054 = vcombine.high %v1029, %v1045
    %v1055 = vcombine.low %v1036, %v1052
    %v1056 = vcombine.high %v1036, %v1052
    %vm1057 = vcmask 64512
    %v1059 = vsel %vm1057, %v379, 0
    %v1062 = vsel %vm1057, %v689, 0
    %1064 = vmatprep.subr.mxu0 0.0
    %1065 = vmatpush1.xpose.msra.mxu0 0.0
    %1066 = vmatprep.subr.mxu0 0.0
    %1067 = vmatpush1.xpose.msra.mxu0 0.0
    %1068 = vmatprep.subr.mxu0 0.0
    %1069 = vmatpush1.xpose.msra.mxu0 0.0
    %1070 = vmatprep.subr.mxu0 0.0
    %1071 = vmatpush1.xpose.msra.mxu0 0.0
    %1072 = vmatprep.subr.mxu0 0.0
    %1073 = vmatpush1.xpose.msra.mxu0 0.0
    %1074 = vmatprep.subr.mxu0 0.0
    %1075 = vmatpush1.xpose.msra.mxu0 0.0
    %1076 = vmatprep.subr.mxu0 0.0
    %1077 = vmatpush1.xpose.msra.mxu0 0.0
    %1078 = vmatprep.subr.mxu0 0.0
    %1079 = vmatpush1.xpose.msra.mxu0 0.0
    %1080 = vmatprep.subr.mxu0 0.0
    %1081 = vmatpush1.xpose.msra.mxu0 0.0
    %1082 = vmatprep.subr.mxu0 0.0
    %1083 = vmatpush1.xpose.msra.mxu0 0.0
    %1084 = vmatprep.subr.mxu0 0.0
    %1085 = vmatpush1.xpose.msra.mxu0 0.0
    %1086 = vmatprep.subr.mxu0 0.0
    %1087 = vmatpush1.xpose.msra.mxu0 0.0
    %1088 = vmatprep.subr.mxu0 0.0
    %1089 = vmatpush1.xpose.msra.mxu0 0.0
    %1090 = vmatprep.subr.mxu0 0.0
    %1091 = vmatpush1.xpose.msra.mxu0 0.0
    %1092 = vmatprep.subr.mxu0 0.0
    %1093 = vmatpush1.xpose.msra.mxu0 0.0
    %1094 = vmatprep.subr.mxu0 0.0
    %1095 = vmatpush1.xpose.msra.mxu0 %v1062
    %1096 = vmatprep.subr.mxu0 0.0
    %1097 = vmatpush2.xpose.msra.mxu0 0.0
    %1098 = vmatprep.subr.mxu0 0.0
    %1099 = vmatpush2.xpose.msra.mxu0 0.0
    %1100 = vmatprep.subr.mxu0 0.0
    %1101 = vmatpush2.xpose.msra.mxu0 0.0
    %1102 = vmatprep.subr.mxu0 0.0
    %1103 = vmatpush2.xpose.msra.mxu0 0.0
    %1104 = vmatprep.subr.mxu0 0.0
    %1105 = vmatpush2.xpose.msra.mxu0 0.0
    %1106 = vmatprep.subr.mxu0 0.0
    %1107 = vmatpush2.xpose.msra.mxu0 0.0
    %1108 = vmatprep.subr.mxu0 0.0
    %1109 = vmatpush2.xpose.msra.mxu0 0.0
    %1110 = vmatprep.subr.mxu0 0.0
    %1111 = vmatpush2.xpose.msra.mxu0 0.0
    %1112 = vmatprep.subr.mxu0 0.0
    %1113 = vmatpush2.xpose.msra.mxu0 0.0
    %1114 = vmatprep.subr.mxu0 0.0
    %1115 = vmatpush2.xpose.msra.mxu0 0.0
    %1116 = vmatprep.subr.mxu0 0.0
    %1117 = vmatpush2.xpose.msra.mxu0 0.0
    %1118 = vmatprep.subr.mxu0 0.0
    %1119 = vmatpush2.xpose.msra.mxu0 0.0
    %1120 = vmatprep.subr.mxu0 0.0
    %1121 = vmatpush2.xpose.msra.mxu0 0.0
    %1122 = vmatprep.subr.mxu0 0.0
    %1123 = vmatpush2.xpose.msra.mxu0 0.0
    %1124 = vmatprep.subr.mxu0 0.0
    %1125 = vmatpush2.xpose.msra.mxu0 0.0
    %1126 = vmatprep.subr.mxu0 0.0
    %1127 = vmatpush2.xpose.msra.mxu0 0.0
    %1128 = vmatprep.mubr.f32.mxu0 0.0
    %1129 = vmatmul.mubr.f32.gmra.mxu0 %v1059
    %v1130 = vpop.f32.mrf.mxu0
    %v1131 = vadd.f32 0.0, %v1130
    %v1132 = vpop.f32.mrf.mxu0
    %1133 = vdwg.mxu0
    %v1135 = vsel %vm1057, %v447, 0
    %v1138 = vsel %vm1057, %v757, 0
    %1140 = vmatprep.subr.mxu0 0.0
    %1141 = vmatpush1.xpose.msra.mxu0 0.0
    %1142 = vmatprep.subr.mxu0 0.0
    %1143 = vmatpush1.xpose.msra.mxu0 0.0
    %1144 = vmatprep.subr.mxu0 0.0
    %1145 = vmatpush1.xpose.msra.mxu0 0.0
    %1146 = vmatprep.subr.mxu0 0.0
    %1147 = vmatpush1.xpose.msra.mxu0 0.0
    %1148 = vmatprep.subr.mxu0 0.0
    %1149 = vmatpush1.xpose.msra.mxu0 0.0
    %1150 = vmatprep.subr.mxu0 0.0
    %1151 = vmatpush1.xpose.msra.mxu0 0.0
    %1152 = vmatprep.subr.mxu0 0.0
    %1153 = vmatpush1.xpose.msra.mxu0 0.0
    %1154 = vmatprep.subr.mxu0 0.0
    %1155 = vmatpush1.xpose.msra.mxu0 0.0
    %1156 = vmatprep.subr.mxu0 0.0
    %1157 = vmatpush1.xpose.msra.mxu0 0.0
    %1158 = vmatprep.subr.mxu0 0.0
    %1159 = vmatpush1.xpose.msra.mxu0 0.0
    %1160 = vmatprep.subr.mxu0 0.0
    %1161 = vmatpush1.xpose.msra.mxu0 0.0
    %1162 = vmatprep.subr.mxu0 0.0
    %1163 = vmatpush1.xpose.msra.mxu0 0.0
    %1164 = vmatprep.subr.mxu0 0.0
    %1165 = vmatpush1.xpose.msra.mxu0 0.0
    %1166 = vmatprep.subr.mxu0 0.0
    %1167 = vmatpush1.xpose.msra.mxu0 0.0
    %1168 = vmatprep.subr.mxu0 0.0
    %1169 = vmatpush1.xpose.msra.mxu0 0.0
    %1170 = vmatprep.subr.mxu0 0.0
    %1171 = vmatpush1.xpose.msra.mxu0 %v1138
    %1172 = vmatprep.subr.mxu0 0.0
    %1173 = vmatpush2.xpose.msra.mxu0 0.0
    %1174 = vmatprep.subr.mxu0 0.0
    %1175 = vmatpush2.xpose.msra.mxu0 0.0
    %1176 = vmatprep.subr.mxu0 0.0
    %1177 = vmatpush2.xpose.msra.mxu0 0.0
    %1178 = vmatprep.subr.mxu0 0.0
    %1179 = vmatpush2.xpose.msra.mxu0 0.0
    %1180 = vmatprep.subr.mxu0 0.0
    %1181 = vmatpush2.xpose.msra.mxu0 0.0
    %1182 = vmatprep.subr.mxu0 0.0
    %1183 = vmatpush2.xpose.msra.mxu0 0.0
    %1184 = vmatprep.subr.mxu0 0.0
    %1185 = vmatpush2.xpose.msra.mxu0 0.0
    %1186 = vmatprep.subr.mxu0 0.0
    %1187 = vmatpush2.xpose.msra.mxu0 0.0
    %1188 = vmatprep.subr.mxu0 0.0
    %1189 = vmatpush2.xpose.msra.mxu0 0.0
    %1190 = vmatprep.subr.mxu0 0.0
    %1191 = vmatpush2.xpose.msra.mxu0 0.0
    %1192 = vmatprep.subr.mxu0 0.0
    %1193 = vmatpush2.xpose.msra.mxu0 0.0
    %1194 = vmatprep.subr.mxu0 0.0
    %1195 = vmatpush2.xpose.msra.mxu0 0.0
    %1196 = vmatprep.subr.mxu0 0.0
    %1197 = vmatpush2.xpose.msra.mxu0 0.0
    %1198 = vmatprep.subr.mxu0 0.0
    %1199 = vmatpush2.xpose.msra.mxu0 0.0
    %1200 = vmatprep.subr.mxu0 0.0
    %1201 = vmatpush2.xpose.msra.mxu0 0.0
    %1202 = vmatprep.subr.mxu0 0.0
    %1203 = vmatpush2.xpose.msra.mxu0 0.0
    %1204 = vmatprep.mubr.f32.mxu0 0.0
    %1205 = vmatmul.mubr.f32.gmra.mxu0 %v1135
    %v1206 = vpop.f32.mrf.mxu0
    %v1207 = vadd.f32 0.0, %v1206
    %v1208 = vpop.f32.mrf.mxu0
    %1209 = vdwg.mxu0
    %v1211 = vsel %vm1057, %v380, 0
    %v1214 = vsel %vm1057, %v690, 0
    %1216 = vmatprep.subr.mxu0 0.0
    %1217 = vmatpush1.xpose.msra.mxu0 0.0
    %1218 = vmatprep.subr.mxu0 0.0
    %1219 = vmatpush1.xpose.msra.mxu0 0.0
    %1220 = vmatprep.subr.mxu0 0.0
    %1221 = vmatpush1.xpose.msra.mxu0 0.0
    %1222 = vmatprep.subr.mxu0 0.0
    %1223 = vmatpush1.xpose.msra.mxu0 0.0
    %1224 = vmatprep.subr.mxu0 0.0
    %1225 = vmatpush1.xpose.msra.mxu0 0.0
    %1226 = vmatprep.subr.mxu0 0.0
    %1227 = vmatpush1.xpose.msra.mxu0 0.0
    %1228 = vmatprep.subr.mxu0 0.0
    %1229 = vmatpush1.xpose.msra.mxu0 0.0
    %1230 = vmatprep.subr.mxu0 0.0
    %1231 = vmatpush1.xpose.msra.mxu0 0.0
    %1232 = vmatprep.subr.mxu0 0.0
    %1233 = vmatpush1.xpose.msra.mxu0 0.0
    %1234 = vmatprep.subr.mxu0 0.0
    %1235 = vmatpush1.xpose.msra.mxu0 0.0
    %1236 = vmatprep.subr.mxu0 0.0
    %1237 = vmatpush1.xpose.msra.mxu0 0.0
    %1238 = vmatprep.subr.mxu0 0.0
    %1239 = vmatpush1.xpose.msra.mxu0 0.0
    %1240 = vmatprep.subr.mxu0 0.0
    %1241 = vmatpush1.xpose.msra.mxu0 0.0
    %1242 = vmatprep.subr.mxu0 0.0
    %1243 = vmatpush1.xpose.msra.mxu0 0.0
    %1244 = vmatprep.subr.mxu0 0.0
    %1245 = vmatpush1.xpose.msra.mxu0 0.0
    %1246 = vmatprep.subr.mxu0 0.0
    %1247 = vmatpush1.xpose.msra.mxu0 %v1214
    %1248 = vmatprep.subr.mxu0 0.0
    %1249 = vmatpush2.xpose.msra.mxu0 0.0
    %1250 = vmatprep.subr.mxu0 0.0
    %1251 = vmatpush2.xpose.msra.mxu0 0.0
    %1252 = vmatprep.subr.mxu0 0.0
    %1253 = vmatpush2.xpose.msra.mxu0 0.0
    %1254 = vmatprep.subr.mxu0 0.0
    %1255 = vmatpush2.xpose.msra.mxu0 0.0
    %1256 = vmatprep.subr.mxu0 0.0
    %1257 = vmatpush2.xpose.msra.mxu0 0.0
    %1258 = vmatprep.subr.mxu0 0.0
    %1259 = vmatpush2.xpose.msra.mxu0 0.0
    %1260 = vmatprep.subr.mxu0 0.0
    %1261 = vmatpush2.xpose.msra.mxu0 0.0
    %1262 = vmatprep.subr.mxu0 0.0
    %1263 = vmatpush2.xpose.msra.mxu0 0.0
    %1264 = vmatprep.subr.mxu0 0.0
    %1265 = vmatpush2.xpose.msra.mxu0 0.0
    %1266 = vmatprep.subr.mxu0 0.0
    %1267 = vmatpush2.xpose.msra.mxu0 0.0
    %1268 = vmatprep.subr.mxu0 0.0
    %1269 = vmatpush2.xpose.msra.mxu0 0.0
    %1270 = vmatprep.subr.mxu0 0.0
    %1271 = vmatpush2.xpose.msra.mxu0 0.0
    %1272 = vmatprep.subr.mxu0 0.0
    %1273 = vmatpush2.xpose.msra.mxu0 0.0
    %1274 = vmatprep.subr.mxu0 0.0
    %1275 = vmatpush2.xpose.msra.mxu0 0.0
    %1276 = vmatprep.subr.mxu0 0.0
    %1277 = vmatpush2.xpose.msra.mxu0 0.0
    %1278 = vmatprep.subr.mxu0 0.0
    %1279 = vmatpush2.xpose.msra.mxu0 0.0
    %1280 = vmatprep.mubr.f32.mxu0 0.0
    %1281 = vmatmul.mubr.f32.gmra.mxu0 %v1211
    %v1282 = vpop.f32.mrf.mxu0
    %v1283 = vadd.f32 0.0, %v1282
    %v1284 = vpop.f32.mrf.mxu0
    %1285 = vdwg.mxu0
    %v1287 = vsel %vm1057, %v448, 0
    %v1290 = vsel %vm1057, %v758, 0
    %1292 = vmatprep.subr.mxu0 0.0
    %1293 = vmatpush1.xpose.msra.mxu0 0.0
    %1294 = vmatprep.subr.mxu0 0.0
    %1295 = vmatpush1.xpose.msra.mxu0 0.0
    %1296 = vmatprep.subr.mxu0 0.0
    %1297 = vmatpush1.xpose.msra.mxu0 0.0
    %1298 = vmatprep.subr.mxu0 0.0
    %1299 = vmatpush1.xpose.msra.mxu0 0.0
    %1300 = vmatprep.subr.mxu0 0.0
    %1301 = vmatpush1.xpose.msra.mxu0 0.0
    %1302 = vmatprep.subr.mxu0 0.0
    %1303 = vmatpush1.xpose.msra.mxu0 0.0
    %1304 = vmatprep.subr.mxu0 0.0
    %1305 = vmatpush1.xpose.msra.mxu0 0.0
    %1306 = vmatprep.subr.mxu0 0.0
    %1307 = vmatpush1.xpose.msra.mxu0 0.0
    %1308 = vmatprep.subr.mxu0 0.0
    %1309 = vmatpush1.xpose.msra.mxu0 0.0
    %1310 = vmatprep.subr.mxu0 0.0
    %1311 = vmatpush1.xpose.msra.mxu0 0.0
    %1312 = vmatprep.subr.mxu0 0.0
    %1313 = vmatpush1.xpose.msra.mxu0 0.0
    %1314 = vmatprep.subr.mxu0 0.0
    %1315 = vmatpush1.xpose.msra.mxu0 0.0
    %1316 = vmatprep.subr.mxu0 0.0
    %1317 = vmatpush1.xpose.msra.mxu0 0.0
    %1318 = vmatprep.subr.mxu0 0.0
    %1319 = vmatpush1.xpose.msra.mxu0 0.0
    %1320 = vmatprep.subr.mxu0 0.0
    %1321 = vmatpush1.xpose.msra.mxu0 0.0
    %1322 = vmatprep.subr.mxu0 0.0
    %1323 = vmatpush1.xpose.msra.mxu0 %v1290
    %1324 = vmatprep.subr.mxu0 0.0
    %1325 = vmatpush2.xpose.msra.mxu0 0.0
    %1326 = vmatprep.subr.mxu0 0.0
    %1327 = vmatpush2.xpose.msra.mxu0 0.0
    %1328 = vmatprep.subr.mxu0 0.0
    %1329 = vmatpush2.xpose.msra.mxu0 0.0
    %1330 = vmatprep.subr.mxu0 0.0
    %1331 = vmatpush2.xpose.msra.mxu0 0.0
    %1332 = vmatprep.subr.mxu0 0.0
    %1333 = vmatpush2.xpose.msra.mxu0 0.0
    %1334 = vmatprep.subr.mxu0 0.0
    %1335 = vmatpush2.xpose.msra.mxu0 0.0
    %1336 = vmatprep.subr.mxu0 0.0
    %1337 = vmatpush2.xpose.msra.mxu0 0.0
    %1338 = vmatprep.subr.mxu0 0.0
    %1339 = vmatpush2.xpose.msra.mxu0 0.0
    %1340 = vmatprep.subr.mxu0 0.0
    %1341 = vmatpush2.xpose.msra.mxu0 0.0
    %1342 = vmatprep.subr.mxu0 0.0
    %1343 = vmatpush2.xpose.msra.mxu0 0.0
    %1344 = vmatprep.subr.mxu0 0.0
    %1345 = vmatpush2.xpose.msra.mxu0 0.0
    %1346 = vmatprep.subr.mxu0 0.0
    %1347 = vmatpush2.xpose.msra.mxu0 0.0
    %1348 = vmatprep.subr.mxu0 0.0
    %1349 = vmatpush2.xpose.msra.mxu0 0.0
    %1350 = vmatprep.subr.mxu0 0.0
    %1351 = vmatpush2.xpose.msra.mxu0 0.0
    %1352 = vmatprep.subr.mxu0 0.0
    %1353 = vmatpush2.xpose.msra.mxu0 0.0
    %1354 = vmatprep.subr.mxu0 0.0
    %1355 = vmatpush2.xpose.msra.mxu0 0.0
    %1356 = vmatprep.mubr.f32.mxu0 0.0
    %1357 = vmatmul.mubr.f32.gmra.mxu0 %v1287
    %v1358 = vpop.f32.mrf.mxu0
    %v1359 = vadd.f32 0.0, %v1358
    %v1360 = vpop.f32.mrf.mxu0
    %1361 = vdwg.mxu0
    %v1363 = vsel %vm1057, %v381, 0
    %v1366 = vsel %vm1057, %v691, 0
    %1368 = vmatprep.subr.mxu0 0.0
    %1369 = vmatpush1.xpose.msra.mxu0 0.0
    %1370 = vmatprep.subr.mxu0 0.0
    %1371 = vmatpush1.xpose.msra.mxu0 0.0
    %1372 = vmatprep.subr.mxu0 0.0
    %1373 = vmatpush1.xpose.msra.mxu0 0.0
    %1374 = vmatprep.subr.mxu0 0.0
    %1375 = vmatpush1.xpose.msra.mxu0 0.0
    %1376 = vmatprep.subr.mxu0 0.0
    %1377 = vmatpush1.xpose.msra.mxu0 0.0
    %1378 = vmatprep.subr.mxu0 0.0
    %1379 = vmatpush1.xpose.msra.mxu0 0.0
    %1380 = vmatprep.subr.mxu0 0.0
    %1381 = vmatpush1.xpose.msra.mxu0 0.0
    %1382 = vmatprep.subr.mxu0 0.0
    %1383 = vmatpush1.xpose.msra.mxu0 0.0
    %1384 = vmatprep.subr.mxu0 0.0
    %1385 = vmatpush1.xpose.msra.mxu0 0.0
    %1386 = vmatprep.subr.mxu0 0.0
    %1387 = vmatpush1.xpose.msra.mxu0 0.0
    %1388 = vmatprep.subr.mxu0 0.0
    %1389 = vmatpush1.xpose.msra.mxu0 0.0
    %1390 = vmatprep.subr.mxu0 0.0
    %1391 = vmatpush1.xpose.msra.mxu0 0.0
    %1392 = vmatprep.subr.mxu0 0.0
    %1393 = vmatpush1.xpose.msra.mxu0 0.0
    %1394 = vmatprep.subr.mxu0 0.0
    %1395 = vmatpush1.xpose.msra.mxu0 0.0
    %1396 = vmatprep.subr.mxu0 0.0
    %1397 = vmatpush1.xpose.msra.mxu0 0.0
    %1398 = vmatprep.subr.mxu0 0.0
    %1399 = vmatpush1.xpose.msra.mxu0 %v1366
    %1400 = vmatprep.subr.mxu0 0.0
    %1401 = vmatpush2.xpose.msra.mxu0 0.0
    %1402 = vmatprep.subr.mxu0 0.0
    %1403 = vmatpush2.xpose.msra.mxu0 0.0
    %1404 = vmatprep.subr.mxu0 0.0
    %1405 = vmatpush2.xpose.msra.mxu0 0.0
    %1406 = vmatprep.subr.mxu0 0.0
    %1407 = vmatpush2.xpose.msra.mxu0 0.0
    %1408 = vmatprep.subr.mxu0 0.0
    %1409 = vmatpush2.xpose.msra.mxu0 0.0
    %1410 = vmatprep.subr.mxu0 0.0
    %1411 = vmatpush2.xpose.msra.mxu0 0.0
    %1412 = vmatprep.subr.mxu0 0.0
    %1413 = vmatpush2.xpose.msra.mxu0 0.0
    %1414 = vmatprep.subr.mxu0 0.0
    %1415 = vmatpush2.xpose.msra.mxu0 0.0
    %1416 = vmatprep.subr.mxu0 0.0
    %1417 = vmatpush2.xpose.msra.mxu0 0.0
    %1418 = vmatprep.subr.mxu0 0.0
    %1419 = vmatpush2.xpose.msra.mxu0 0.0
    %1420 = vmatprep.subr.mxu0 0.0
    %1421 = vmatpush2.xpose.msra.mxu0 0.0
    %1422 = vmatprep.subr.mxu0 0.0
    %1423 = vmatpush2.xpose.msra.mxu0 0.0
    %1424 = vmatprep.subr.mxu0 0.0
    %1425 = vmatpush2.xpose.msra.mxu0 0.0
    %1426 = vmatprep.subr.mxu0 0.0
    %1427 = vmatpush2.xpose.msra.mxu0 0.0
    %1428 = vmatprep.subr.mxu0 0.0
    %1429 = vmatpush2.xpose.msra.mxu0 0.0
    %1430 = vmatprep.subr.mxu0 0.0
    %1431 = vmatpush2.xpose.msra.mxu0 0.0
    %1432 = vmatprep.mubr.f32.mxu0 0.0
    %1433 = vmatmul.mubr.f32.gmra.mxu0 %v1363
    %v1434 = vpop.f32.mrf.mxu0
    %v1435 = vadd.f32 0.0, %v1434
    %v1436 = vpop.f32.mrf.mxu0
    %1437 = vdwg.mxu0
    %v1439 = vsel %vm1057, %v449, 0
    %v1442 = vsel %vm1057, %v759, 0
    %1444 = vmatprep.subr.mxu0 0.0
    %1445 = vmatpush1.xpose.msra.mxu0 0.0
    %1446 = vmatprep.subr.mxu0 0.0
    %1447 = vmatpush1.xpose.msra.mxu0 0.0
    %1448 = vmatprep.subr.mxu0 0.0
    %1449 = vmatpush1.xpose.msra.mxu0 0.0
    %1450 = vmatprep.subr.mxu0 0.0
    %1451 = vmatpush1.xpose.msra.mxu0 0.0
    %1452 = vmatprep.subr.mxu0 0.0
    %1453 = vmatpush1.xpose.msra.mxu0 0.0
    %1454 = vmatprep.subr.mxu0 0.0
    %1455 = vmatpush1.xpose.msra.mxu0 0.0
    %1456 = vmatprep.subr.mxu0 0.0
    %1457 = vmatpush1.xpose.msra.mxu0 0.0
    %1458 = vmatprep.subr.mxu0 0.0
    %1459 = vmatpush1.xpose.msra.mxu0 0.0
    %1460 = vmatprep.subr.mxu0 0.0
    %1461 = vmatpush1.xpose.msra.mxu0 0.0
    %1462 = vmatprep.subr.mxu0 0.0
    %1463 = vmatpush1.xpose.msra.mxu0 0.0
    %1464 = vmatprep.subr.mxu0 0.0
    %1465 = vmatpush1.xpose.msra.mxu0 0.0
    %1466 = vmatprep.subr.mxu0 0.0
    %1467 = vmatpush1.xpose.msra.mxu0 0.0
    %1468 = vmatprep.subr.mxu0 0.0
    %1469 = vmatpush1.xpose.msra.mxu0 0.0
    %1470 = vmatprep.subr.mxu0 0.0
    %1471 = vmatpush1.xpose.msra.mxu0 0.0
    %1472 = vmatprep.subr.mxu0 0.0
    %1473 = vmatpush1.xpose.msra.mxu0 0.0
    %1474 = vmatprep.subr.mxu0 0.0
    %1475 = vmatpush1.xpose.msra.mxu0 %v1442
    %1476 = vmatprep.subr.mxu0 0.0
    %1477 = vmatpush2.xpose.msra.mxu0 0.0
    %1478 = vmatprep.subr.mxu0 0.0
    %1479 = vmatpush2.xpose.msra.mxu0 0.0
    %1480 = vmatprep.subr.mxu0 0.0
    %1481 = vmatpush2.xpose.msra.mxu0 0.0
    %1482 = vmatprep.subr.mxu0 0.0
    %1483 = vmatpush2.xpose.msra.mxu0 0.0
    %1484 = vmatprep.subr.mxu0 0.0
    %1485 = vmatpush2.xpose.msra.mxu0 0.0
    %1486 = vmatprep.subr.mxu0 0.0
    %1487 = vmatpush2.xpose.msra.mxu0 0.0
    %1488 = vmatprep.subr.mxu0 0.0
    %1489 = vmatpush2.xpose.msra.mxu0 0.0
    %1490 = vmatprep.subr.mxu0 0.0
    %1491 = vmatpush2.xpose.msra.mxu0 0.0
    %1492 = vmatprep.subr.mxu0 0.0
    %1493 = vmatpush2.xpose.msra.mxu0 0.0
    %1494 = vmatprep.subr.mxu0 0.0
    %1495 = vmatpush2.xpose.msra.mxu0 0.0
    %1496 = vmatprep.subr.mxu0 0.0
    %1497 = vmatpush2.xpose.msra.mxu0 0.0
    %1498 = vmatprep.subr.mxu0 0.0
    %1499 = vmatpush2.xpose.msra.mxu0 0.0
    %1500 = vmatprep.subr.mxu0 0.0
    %1501 = vmatpush2.xpose.msra.mxu0 0.0
    %1502 = vmatprep.subr.mxu0 0.0
    %1503 = vmatpush2.xpose.msra.mxu0 0.0
    %1504 = vmatprep.subr.mxu0 0.0
    %1505 = vmatpush2.xpose.msra.mxu0 0.0
    %1506 = vmatprep.subr.mxu0 0.0
    %1507 = vmatpush2.xpose.msra.mxu0 0.0
    %1508 = vmatprep.mubr.f32.mxu0 0.0
    %1509 = vmatmul.mubr.f32.gmra.mxu0 %v1439
    %v1510 = vpop.f32.mrf.mxu0
    %v1511 = vadd.f32 0.0, %v1510
    %v1512 = vpop.f32.mrf.mxu0
    %1513 = vdwg.mxu0
    %v1515 = vsel %vm1057, %v382, 0
    %v1518 = vsel %vm1057, %v692, 0
    %1520 = vmatprep.subr.mxu0 0.0
    %1521 = vmatpush1.xpose.msra.mxu0 0.0
    %1522 = vmatprep.subr.mxu0 0.0
    %1523 = vmatpush1.xpose.msra.mxu0 0.0
    %1524 = vmatprep.subr.mxu0 0.0
    %1525 = vmatpush1.xpose.msra.mxu0 0.0
    %1526 = vmatprep.subr.mxu0 0.0
    %1527 = vmatpush1.xpose.msra.mxu0 0.0
    %1528 = vmatprep.subr.mxu0 0.0
    %1529 = vmatpush1.xpose.msra.mxu0 0.0
    %1530 = vmatprep.subr.mxu0 0.0
    %1531 = vmatpush1.xpose.msra.mxu0 0.0
    %1532 = vmatprep.subr.mxu0 0.0
    %1533 = vmatpush1.xpose.msra.mxu0 0.0
    %1534 = vmatprep.subr.mxu0 0.0
    %1535 = vmatpush1.xpose.msra.mxu0 0.0
    %1536 = vmatprep.subr.mxu0 0.0
    %1537 = vmatpush1.xpose.msra.mxu0 0.0
    %1538 = vmatprep.subr.mxu0 0.0
    %1539 = vmatpush1.xpose.msra.mxu0 0.0
    %1540 = vmatprep.subr.mxu0 0.0
    %1541 = vmatpush1.xpose.msra.mxu0 0.0
    %1542 = vmatprep.subr.mxu0 0.0
    %1543 = vmatpush1.xpose.msra.mxu0 0.0
    %1544 = vmatprep.subr.mxu0 0.0
    %1545 = vmatpush1.xpose.msra.mxu0 0.0
    %1546 = vmatprep.subr.mxu0 0.0
    %1547 = vmatpush1.xpose.msra.mxu0 0.0
    %1548 = vmatprep.subr.mxu0 0.0
    %1549 = vmatpush1.xpose.msra.mxu0 0.0
    %1550 = vmatprep.subr.mxu0 0.0
    %1551 = vmatpush1.xpose.msra.mxu0 %v1518
    %1552 = vmatprep.subr.mxu0 0.0
    %1553 = vmatpush2.xpose.msra.mxu0 0.0
    %1554 = vmatprep.subr.mxu0 0.0
    %1555 = vmatpush2.xpose.msra.mxu0 0.0
    %1556 = vmatprep.subr.mxu0 0.0
    %1557 = vmatpush2.xpose.msra.mxu0 0.0
    %1558 = vmatprep.subr.mxu0 0.0
    %1559 = vmatpush2.xpose.msra.mxu0 0.0
    %1560 = vmatprep.subr.mxu0 0.0
    %1561 = vmatpush2.xpose.msra.mxu0 0.0
    %1562 = vmatprep.subr.mxu0 0.0
    %1563 = vmatpush2.xpose.msra.mxu0 0.0
    %1564 = vmatprep.subr.mxu0 0.0
    %1565 = vmatpush2.xpose.msra.mxu0 0.0
    %1566 = vmatprep.subr.mxu0 0.0
    %1567 = vmatpush2.xpose.msra.mxu0 0.0
    %1568 = vmatprep.subr.mxu0 0.0
    %1569 = vmatpush2.xpose.msra.mxu0 0.0
    %1570 = vmatprep.subr.mxu0 0.0
    %1571 = vmatpush2.xpose.msra.mxu0 0.0
    %1572 = vmatprep.subr.mxu0 0.0
    %1573 = vmatpush2.xpose.msra.mxu0 0.0
    %1574 = vmatprep.subr.mxu0 0.0
    %1575 = vmatpush2.xpose.msra.mxu0 0.0
    %1576 = vmatprep.subr.mxu0 0.0
    %1577 = vmatpush2.xpose.msra.mxu0 0.0
    %1578 = vmatprep.subr.mxu0 0.0
    %1579 = vmatpush2.xpose.msra.mxu0 0.0
    %1580 = vmatprep.subr.mxu0 0.0
    %1581 = vmatpush2.xpose.msra.mxu0 0.0
    %1582 = vmatprep.subr.mxu0 0.0
    %1583 = vmatpush2.xpose.msra.mxu0 0.0
    %1584 = vmatprep.mubr.f32.mxu0 0.0
    %1585 = vmatmul.mubr.f32.gmra.mxu0 %v1515
    %v1586 = vpop.f32.mrf.mxu0
    %v1587 = vadd.f32 0.0, %v1586
    %v1588 = vpop.f32.mrf.mxu0
    %1589 = vdwg.mxu0
    %v1591 = vsel %vm1057, %v450, 0
    %v1594 = vsel %vm1057, %v760, 0
    %1596 = vmatprep.subr.mxu0 0.0
    %1597 = vmatpush1.xpose.msra.mxu0 0.0
    %1598 = vmatprep.subr.mxu0 0.0
    %1599 = vmatpush1.xpose.msra.mxu0 0.0
    %1600 = vmatprep.subr.mxu0 0.0
    %1601 = vmatpush1.xpose.msra.mxu0 0.0
    %1602 = vmatprep.subr.mxu0 0.0
    %1603 = vmatpush1.xpose.msra.mxu0 0.0
    %1604 = vmatprep.subr.mxu0 0.0
    %1605 = vmatpush1.xpose.msra.mxu0 0.0
    %1606 = vmatprep.subr.mxu0 0.0
    %1607 = vmatpush1.xpose.msra.mxu0 0.0
    %1608 = vmatprep.subr.mxu0 0.0
    %1609 = vmatpush1.xpose.msra.mxu0 0.0
    %1610 = vmatprep.subr.mxu0 0.0
    %1611 = vmatpush1.xpose.msra.mxu0 0.0
    %1612 = vmatprep.subr.mxu0 0.0
    %1613 = vmatpush1.xpose.msra.mxu0 0.0
    %1614 = vmatprep.subr.mxu0 0.0
    %1615 = vmatpush1.xpose.msra.mxu0 0.0
    %1616 = vmatprep.subr.mxu0 0.0
    %1617 = vmatpush1.xpose.msra.mxu0 0.0
    %1618 = vmatprep.subr.mxu0 0.0
    %1619 = vmatpush1.xpose.msra.mxu0 0.0
    %1620 = vmatprep.subr.mxu0 0.0
    %1621 = vmatpush1.xpose.msra.mxu0 0.0
    %1622 = vmatprep.subr.mxu0 0.0
    %1623 = vmatpush1.xpose.msra.mxu0 0.0
    %1624 = vmatprep.subr.mxu0 0.0
    %1625 = vmatpush1.xpose.msra.mxu0 0.0
    %1626 = vmatprep.subr.mxu0 0.0
    %1627 = vmatpush1.xpose.msra.mxu0 %v1594
    %1628 = vmatprep.subr.mxu0 0.0
    %1629 = vmatpush2.xpose.msra.mxu0 0.0
    %1630 = vmatprep.subr.mxu0 0.0
    %1631 = vmatpush2.xpose.msra.mxu0 0.0
    %1632 = vmatprep.subr.mxu0 0.0
    %1633 = vmatpush2.xpose.msra.mxu0 0.0
    %1634 = vmatprep.subr.mxu0 0.0
    %1635 = vmatpush2.xpose.msra.mxu0 0.0
    %1636 = vmatprep.subr.mxu0 0.0
    %1637 = vmatpush2.xpose.msra.mxu0 0.0
    %1638 = vmatprep.subr.mxu0 0.0
    %1639 = vmatpush2.xpose.msra.mxu0 0.0
    %1640 = vmatprep.subr.mxu0 0.0
    %1641 = vmatpush2.xpose.msra.mxu0 0.0
    %1642 = vmatprep.subr.mxu0 0.0
    %1643 = vmatpush2.xpose.msra.mxu0 0.0
    %1644 = vmatprep.subr.mxu0 0.0
    %1645 = vmatpush2.xpose.msra.mxu0 0.0
    %1646 = vmatprep.subr.mxu0 0.0
    %1647 = vmatpush2.xpose.msra.mxu0 0.0
    %1648 = vmatprep.subr.mxu0 0.0
    %1649 = vmatpush2.xpose.msra.mxu0 0.0
    %1650 = vmatprep.subr.mxu0 0.0
    %1651 = vmatpush2.xpose.msra.mxu0 0.0
    %1652 = vmatprep.subr.mxu0 0.0
    %1653 = vmatpush2.xpose.msra.mxu0 0.0
    %1654 = vmatprep.subr.mxu0 0.0
    %1655 = vmatpush2.xpose.msra.mxu0 0.0
    %1656 = vmatprep.subr.mxu0 0.0
    %1657 = vmatpush2.xpose.msra.mxu0 0.0
    %1658 = vmatprep.subr.mxu0 0.0
    %1659 = vmatpush2.xpose.msra.mxu0 0.0
    %1660 = vmatprep.mubr.f32.mxu0 0.0
    %1661 = vmatmul.mubr.f32.gmra.mxu0 %v1591
    %v1662 = vpop.f32.mrf.mxu0
    %v1663 = vadd.f32 0.0, %v1662
    %v1664 = vpop.f32.mrf.mxu0
    %1665 = vdwg.mxu0
    %v1666 = vsel %vm1057, %v1131, -inf
    %1667 = vmax.xlane.f32.xlu0 %v1666
    %v1668 = vpop.xlane.xlu0 %1667
    %v1669 = vsel %vm1057, %v1207, -inf
    %1670 = vmax.xlane.f32.xlu0 %v1669
    %v1671 = vpop.xlane.xlu0 %1670
    %v1672 = vsel %vm1057, %v1283, -inf
    %1673 = vmax.xlane.f32.xlu0 %v1672
    %v1674 = vpop.xlane.xlu0 %1673
    %v1675 = vsel %vm1057, %v1359, -inf
    %1676 = vmax.xlane.f32.xlu0 %v1675
    %v1677 = vpop.xlane.xlu0 %1676
    %v1678 = vsel %vm1057, %v1435, -inf
    %1679 = vmax.xlane.f32.xlu0 %v1678
    %v1680 = vpop.xlane.xlu0 %1679
    %v1681 = vsel %vm1057, %v1511, -inf
    %1682 = vmax.xlane.f32.xlu0 %v1681
    %v1683 = vpop.xlane.xlu0 %1682
    %v1684 = vsel %vm1057, %v1587, -inf
    %1685 = vmax.xlane.f32.xlu0 %v1684
    %v1686 = vpop.xlane.xlu0 %1685
    %v1687 = vsel %vm1057, %v1663, -inf
    %1688 = vmax.xlane.f32.xlu0 %v1687
    %v1689 = vpop.xlane.xlu0 %1688
    %v1690 = vsub.f32 %v1131, %v1668
    %v1691 = vsub.f32 %v1207, %v1671
    %v1692 = vsub.f32 %v1283, %v1674
    %v1693 = vsub.f32 %v1359, %v1677
    %v1694 = vsub.f32 %v1435, %v1680
    %v1695 = vsub.f32 %v1511, %v1683
    %v1696 = vsub.f32 %v1587, %v1686
    %v1697 = vsub.f32 %v1663, %v1689
    %v1698 = vmul.f32 %v1690, 1.442695
    %v1699 = vpow.pop %v1698
    %v1700 = vmul.f32 %v1691, 1.442695
    %v1701 = vpow.pop %v1700
    %v1702 = vmul.f32 %v1692, 1.442695
    %v1703 = vpow.pop %v1702
    %v1704 = vmul.f32 %v1693, 1.442695
    %v1705 = vpow.pop %v1704
    %v1706 = vmul.f32 %v1694, 1.442695
    %v1707 = vpow.pop %v1706
    %v1708 = vmul.f32 %v1695, 1.442695
    %v1709 = vpow.pop %v1708
    %v1710 = vmul.f32 %v1696, 1.442695
    %v1711 = vpow.pop %v1710
    %v1712 = vmul.f32 %v1697, 1.442695
    %v1713 = vpow.pop %v1712
    %v1714 = vsel %vm1057, %v1699, 0.0
    %1715 = vadd.xlane.f32.xlu0 %v1714
    %v1716 = vpop.xlane.xlu0 %1715
    %v1717 = vsel %vm1057, %v1701, 0.0
    %1718 = vadd.xlane.f32.xlu0 %v1717
    %v1719 = vpop.xlane.xlu0 %1718
    %v1720 = vsel %vm1057, %v1703, 0.0
    %1721 = vadd.xlane.f32.xlu0 %v1720
    %v1722 = vpop.xlane.xlu0 %1721
    %v1723 = vsel %vm1057, %v1705, 0.0
    %1724 = vadd.xlane.f32.xlu0 %v1723
    %v1725 = vpop.xlane.xlu0 %1724
    %v1726 = vsel %vm1057, %v1707, 0.0
    %1727 = vadd.xlane.f32.xlu0 %v1726
    %v1728 = vpop.xlane.xlu0 %1727
    %v1729 = vsel %vm1057, %v1709, 0.0
    %1730 = vadd.xlane.f32.xlu0 %v1729
    %v1731 = vpop.xlane.xlu0 %1730
    %v1732 = vsel %vm1057, %v1711, 0.0
    %1733 = vadd.xlane.f32.xlu0 %v1732
    %v1734 = vpop.xlane.xlu0 %1733
    %v1735 = vsel %vm1057, %v1713, 0.0
    %1736 = vadd.xlane.f32.xlu0 %v1735
    %v1737 = vpop.xlane.xlu0 %1736
    %v1738 = vrcp.pop %v1716
    %v1739 = vrcp.pop %v1719
    %v1740 = vrcp.pop %v1722
    %v1741 = vrcp.pop %v1725
    %v1742 = vrcp.pop %v1728
    %v1743 = vrcp.pop %v1731
    %v1744 = vrcp.pop %v1734
    %v1745 = vrcp.pop %v1737
    %v1746 = vmul.f32 %v1716, %v1738
    %v1747 = vmul.f32 %v1719, %v1739
    %v1748 = vmul.f32 %v1722, %v1740
    %v1749 = vmul.f32 %v1725, %v1741
    %v1750 = vmul.f32 %v1728, %v1742
    %v1751 = vmul.f32 %v1731, %v1743
    %v1752 = vmul.f32 %v1734, %v1744
    %v1753 = vmul.f32 %v1737, %v1745
    %v1754 = vsub.f32 2.0, %v1746
    %v1755 = vsub.f32 2.0, %v1747
    %v1756 = vsub.f32 2.0, %v1748
    %v1757 = vsub.f32 2.0, %v1749
    %v1758 = vsub.f32 2.0, %v1750
    %v1759 = vsub.f32 2.0, %v1751
    %v1760 = vsub.f32 2.0, %v1752
    %v1761 = vsub.f32 2.0, %v1753
    %v1762 = vmul.f32 %v1738, %v1754
    %v1763 = vmul.f32 %v1739, %v1755
    %v1764 = vmul.f32 %v1740, %v1756
    %v1765 = vmul.f32 %v1741, %v1757
    %v1766 = vmul.f32 %v1742, %v1758
    %v1767 = vmul.f32 %v1743, %v1759
    %v1768 = vmul.f32 %v1744, %v1760
    %v1769 = vmul.f32 %v1745, %v1761
    %v1770 = vmul.f32 %v1699, %v1762
    %v1771 = vmul.f32 %v1701, %v1763
    %v1772 = vmul.f32 %v1703, %v1764
    %v1773 = vmul.f32 %v1705, %v1765
    %v1774 = vmul.f32 %v1707, %v1766
    %v1775 = vmul.f32 %v1709, %v1767
    %v1776 = vmul.f32 %v1711, %v1768
    %v1777 = vmul.f32 %v1713, %v1769
    %v1779 = vsel %vm1057, %v1770, 0
    %1781 = vmatprep.subr.mxu0 0.0
    %1782 = vmatpush1.msra.mxu0 0.0
    %1783 = vmatprep.subr.mxu0 0.0
    %1784 = vmatpush1.msra.mxu0 0.0
    %1785 = vmatprep.subr.mxu0 0.0
    %1786 = vmatpush1.msra.mxu0 0.0
    %1787 = vmatprep.subr.mxu0 0.0
    %1788 = vmatpush1.msra.mxu0 0.0
    %1789 = vmatprep.subr.mxu0 0.0
    %1790 = vmatpush1.msra.mxu0 0.0
    %1791 = vmatprep.subr.mxu0 0.0
    %1792 = vmatpush1.msra.mxu0 0.0
    %1793 = vmatprep.subr.mxu0 0.0
    %1794 = vmatpush1.msra.mxu0 0.0
    %1795 = vmatprep.subr.mxu0 0.0
    %1796 = vmatpush1.msra.mxu0 0.0
    %1797 = vmatprep.subr.mxu0 0.0
    %1798 = vmatpush1.msra.mxu0 0.0
    %1799 = vmatprep.subr.mxu0 0.0
    %1800 = vmatpush1.msra.mxu0 0.0
    %1801 = vmatprep.subr.mxu0 0.0
    %1802 = vmatpush1.msra.mxu0 0.0
    %1803 = vmatprep.subr.mxu0 0.0
    %1804 = vmatpush1.msra.mxu0 0.0
    %1805 = vmatprep.subr.mxu0 0.0
    %1806 = vmatpush1.msra.mxu0 0.0
    %1807 = vmatprep.subr.mxu0 0.0
    %1808 = vmatpush1.msra.mxu0 0.0
    %1809 = vmatprep.subr.mxu0 0.0
    %1810 = vmatpush1.msra.mxu0 0.0
    %1811 = vmatprep.subr.mxu0 0.0
    %1812 = vmatpush1.msra.mxu0 %v985
    %1813 = vmatprep.subr.mxu0 0.0
    %1814 = vmatpush2.msra.mxu0 0.0
    %1815 = vmatprep.subr.mxu0 0.0
    %1816 = vmatpush2.msra.mxu0 0.0
    %1817 = vmatprep.subr.mxu0 0.0
    %1818 = vmatpush2.msra.mxu0 0.0
    %1819 = vmatprep.subr.mxu0 0.0
    %1820 = vmatpush2.msra.mxu0 0.0
    %1821 = vmatprep.subr.mxu0 0.0
    %1822 = vmatpush2.msra.mxu0 0.0
    %1823 = vmatprep.subr.mxu0 0.0
    %1824 = vmatpush2.msra.mxu0 0.0
    %1825 = vmatprep.subr.mxu0 0.0
    %1826 = vmatpush2.msra.mxu0 0.0
    %1827 = vmatprep.subr.mxu0 0.0
    %1828 = vmatpush2.msra.mxu0 0.0
    %1829 = vmatprep.subr.mxu0 0.0
    %1830 = vmatpush2.msra.mxu0 0.0
    %1831 = vmatprep.subr.mxu0 0.0
    %1832 = vmatpush2.msra.mxu0 0.0
    %1833 = vmatprep.subr.mxu0 0.0
    %1834 = vmatpush2.msra.mxu0 0.0
    %1835 = vmatprep.subr.mxu0 0.0
    %1836 = vmatpush2.msra.mxu0 0.0
    %1837 = vmatprep.subr.mxu0 0.0
    %1838 = vmatpush2.msra.mxu0 0.0
    %1839 = vmatprep.subr.mxu0 0.0
    %1840 = vmatpush2.msra.mxu0 0.0
    %1841 = vmatprep.subr.mxu0 0.0
    %1842 = vmatpush2.msra.mxu0 0.0
    %1843 = vmatprep.subr.mxu0 0.0
    %1844 = vmatpush2.msra.mxu0 0.0
    %1845 = vmatprep.mubr.f32.mxu0 0.0
    %1846 = vmatmul.mubr.f32.gmra.mxu0 %v1779
    %v1847 = vpop.f32.mrf.mxu0
    %v1848 = vadd.f32 0.0, %v1847
    %v1849 = vpop.f32.mrf.mxu0
    %1850 = vdwg.mxu0
    %v1852 = vsel %vm1057, %v1771, 0
    %1854 = vmatprep.subr.mxu0 0.0
    %1855 = vmatpush1.msra.mxu0 0.0
    %1856 = vmatprep.subr.mxu0 0.0
    %1857 = vmatpush1.msra.mxu0 0.0
    %1858 = vmatprep.subr.mxu0 0.0
    %1859 = vmatpush1.msra.mxu0 0.0
    %1860 = vmatprep.subr.mxu0 0.0
    %1861 = vmatpush1.msra.mxu0 0.0
    %1862 = vmatprep.subr.mxu0 0.0
    %1863 = vmatpush1.msra.mxu0 0.0
    %1864 = vmatprep.subr.mxu0 0.0
    %1865 = vmatpush1.msra.mxu0 0.0
    %1866 = vmatprep.subr.mxu0 0.0
    %1867 = vmatpush1.msra.mxu0 0.0
    %1868 = vmatprep.subr.mxu0 0.0
    %1869 = vmatpush1.msra.mxu0 0.0
    %1870 = vmatprep.subr.mxu0 0.0
    %1871 = vmatpush1.msra.mxu0 0.0
    %1872 = vmatprep.subr.mxu0 0.0
    %1873 = vmatpush1.msra.mxu0 0.0
    %1874 = vmatprep.subr.mxu0 0.0
    %1875 = vmatpush1.msra.mxu0 0.0
    %1876 = vmatprep.subr.mxu0 0.0
    %1877 = vmatpush1.msra.mxu0 0.0
    %1878 = vmatprep.subr.mxu0 0.0
    %1879 = vmatpush1.msra.mxu0 0.0
    %1880 = vmatprep.subr.mxu0 0.0
    %1881 = vmatpush1.msra.mxu0 0.0
    %1882 = vmatprep.subr.mxu0 0.0
    %1883 = vmatpush1.msra.mxu0 0.0
    %1884 = vmatprep.subr.mxu0 0.0
    %1885 = vmatpush1.msra.mxu0 %v1053
    %1886 = vmatprep.subr.mxu0 0.0
    %1887 = vmatpush2.msra.mxu0 0.0
    %1888 = vmatprep.subr.mxu0 0.0
    %1889 = vmatpush2.msra.mxu0 0.0
    %1890 = vmatprep.subr.mxu0 0.0
    %1891 = vmatpush2.msra.mxu0 0.0
    %1892 = vmatprep.subr.mxu0 0.0
    %1893 = vmatpush2.msra.mxu0 0.0
    %1894 = vmatprep.subr.mxu0 0.0
    %1895 = vmatpush2.msra.mxu0 0.0
    %1896 = vmatprep.subr.mxu0 0.0
    %1897 = vmatpush2.msra.mxu0 0.0
    %1898 = vmatprep.subr.mxu0 0.0
    %1899 = vmatpush2.msra.mxu0 0.0
    %1900 = vmatprep.subr.mxu0 0.0
    %1901 = vmatpush2.msra.mxu0 0.0
    %1902 = vmatprep.subr.mxu0 0.0
    %1903 = vmatpush2.msra.mxu0 0.0
    %1904 = vmatprep.subr.mxu0 0.0
    %1905 = vmatpush2.msra.mxu0 0.0
    %1906 = vmatprep.subr.mxu0 0.0
    %1907 = vmatpush2.msra.mxu0 0.0
    %1908 = vmatprep.subr.mxu0 0.0
    %1909 = vmatpush2.msra.mxu0 0.0
    %1910 = vmatprep.subr.mxu0 0.0
    %1911 = vmatpush2.msra.mxu0 0.0
    %1912 = vmatprep.subr.mxu0 0.0
    %1913 = vmatpush2.msra.mxu0 0.0
    %1914 = vmatprep.subr.mxu0 0.0
    %1915 = vmatpush2.msra.mxu0 0.0
    %1916 = vmatprep.subr.mxu0 0.0
    %1917 = vmatpush2.msra.mxu0 0.0
    %1918 = vmatprep.mubr.f32.mxu0 0.0
    %1919 = vmatmul.mubr.f32.gmra.mxu0 %v1852
    %v1920 = vpop.f32.mrf.mxu0
    %v1921 = vadd.f32 0.0, %v1920
    %v1922 = vpop.f32.mrf.mxu0
    %1923 = vdwg.mxu0
    %v1925 = vsel %vm1057, %v1772, 0
    %1927 = vmatprep.subr.mxu0 0.0
    %1928 = vmatpush1.msra.mxu0 0.0
    %1929 = vmatprep.subr.mxu0 0.0
    %1930 = vmatpush1.msra.mxu0 0.0
    %1931 = vmatprep.subr.mxu0 0.0
    %1932 = vmatpush1.msra.mxu0 0.0
    %1933 = vmatprep.subr.mxu0 0.0
    %1934 = vmatpush1.msra.mxu0 0.0
    %1935 = vmatprep.subr.mxu0 0.0
    %1936 = vmatpush1.msra.mxu0 0.0
    %1937 = vmatprep.subr.mxu0 0.0
    %1938 = vmatpush1.msra.mxu0 0.0
    %1939 = vmatprep.subr.mxu0 0.0
    %1940 = vmatpush1.msra.mxu0 0.0
    %1941 = vmatprep.subr.mxu0 0.0
    %1942 = vmatpush1.msra.mxu0 0.0
    %1943 = vmatprep.subr.mxu0 0.0
    %1944 = vmatpush1.msra.mxu0 0.0
    %1945 = vmatprep.subr.mxu0 0.0
    %1946 = vmatpush1.msra.mxu0 0.0
    %1947 = vmatprep.subr.mxu0 0.0
    %1948 = vmatpush1.msra.mxu0 0.0
    %1949 = vmatprep.subr.mxu0 0.0
    %1950 = vmatpush1.msra.mxu0 0.0
    %1951 = vmatprep.subr.mxu0 0.0
    %1952 = vmatpush1.msra.mxu0 0.0
    %1953 = vmatprep.subr.mxu0 0.0
    %1954 = vmatpush1.msra.mxu0 0.0
    %1955 = vmatprep.subr.mxu0 0.0
    %1956 = vmatpush1.msra.mxu0 0.0
    %1957 = vmatprep.subr.mxu0 0.0
    %1958 = vmatpush1.msra.mxu0 %v986
    %1959 = vmatprep.subr.mxu0 0.0
    %1960 = vmatpush2.msra.mxu0 0.0
    %1961 = vmatprep.subr.mxu0 0.0
    %1962 = vmatpush2.msra.mxu0 0.0
    %1963 = vmatprep.subr.mxu0 0.0
    %1964 = vmatpush2.msra.mxu0 0.0
    %1965 = vmatprep.subr.mxu0 0.0
    %1966 = vmatpush2.msra.mxu0 0.0
    %1967 = vmatprep.subr.mxu0 0.0
    %1968 = vmatpush2.msra.mxu0 0.0
    %1969 = vmatprep.subr.mxu0 0.0
    %1970 = vmatpush2.msra.mxu0 0.0
    %1971 = vmatprep.subr.mxu0 0.0
    %1972 = vmatpush2.msra.mxu0 0.0
    %1973 = vmatprep.subr.mxu0 0.0
    %1974 = vmatpush2.msra.mxu0 0.0
    %1975 = vmatprep.subr.mxu0 0.0
    %1976 = vmatpush2.msra.mxu0 0.0
    %1977 = vmatprep.subr.mxu0 0.0
    %1978 = vmatpush2.msra.mxu0 0.0
    %1979 = vmatprep.subr.mxu0 0.0
    %1980 = vmatpush2.msra.mxu0 0.0
    %1981 = vmatprep.subr.mxu0 0.0
    %1982 = vmatpush2.msra.mxu0 0.0
    %1983 = vmatprep.subr.mxu0 0.0
    %1984 = vmatpush2.msra.mxu0 0.0
    %1985 = vmatprep.subr.mxu0 0.0
    %1986 = vmatpush2.msra.mxu0 0.0
    %1987 = vmatprep.subr.mxu0 0.0
    %1988 = vmatpush2.msra.mxu0 0.0
    %1989 = vmatprep.subr.mxu0 0.0
    %1990 = vmatpush2.msra.mxu0 0.0
    %1991 = vmatprep.mubr.f32.mxu0 0.0
    %1992 = vmatmul.mubr.f32.gmra.mxu0 %v1925
    %v1993 = vpop.f32.mrf.mxu0
    %v1994 = vadd.f32 0.0, %v1993
    %v1995 = vpop.f32.mrf.mxu0
    %1996 = vdwg.mxu0
    %v1998 = vsel %vm1057, %v1773, 0
    %2000 = vmatprep.subr.mxu0 0.0
    %2001 = vmatpush1.msra.mxu0 0.0
    %2002 = vmatprep.subr.mxu0 0.0
    %2003 = vmatpush1.msra.mxu0 0.0
    %2004 = vmatprep.subr.mxu0 0.0
    %2005 = vmatpush1.msra.mxu0 0.0
    %2006 = vmatprep.subr.mxu0 0.0
    %2007 = vmatpush1.msra.mxu0 0.0
    %2008 = vmatprep.subr.mxu0 0.0
    %2009 = vmatpush1.msra.mxu0 0.0
    %2010 = vmatprep.subr.mxu0 0.0
    %2011 = vmatpush1.msra.mxu0 0.0
    %2012 = vmatprep.subr.mxu0 0.0
    %2013 = vmatpush1.msra.mxu0 0.0
    %2014 = vmatprep.subr.mxu0 0.0
    %2015 = vmatpush1.msra.mxu0 0.0
    %2016 = vmatprep.subr.mxu0 0.0
    %2017 = vmatpush1.msra.mxu0 0.0
    %2018 = vmatprep.subr.mxu0 0.0
    %2019 = vmatpush1.msra.mxu0 0.0
    %2020 = vmatprep.subr.mxu0 0.0
    %2021 = vmatpush1.msra.mxu0 0.0
    %2022 = vmatprep.subr.mxu0 0.0
    %2023 = vmatpush1.msra.mxu0 0.0
    %2024 = vmatprep.subr.mxu0 0.0
    %2025 = vmatpush1.msra.mxu0 0.0
    %2026 = vmatprep.subr.mxu0 0.0
    %2027 = vmatpush1.msra.mxu0 0.0
    %2028 = vmatprep.subr.mxu0 0.0
    %2029 = vmatpush1.msra.mxu0 0.0
    %2030 = vmatprep.subr.mxu0 0.0
    %2031 = vmatpush1.msra.mxu0 %v1054
    %2032 = vmatprep.subr.mxu0 0.0
    %2033 = vmatpush2.msra.mxu0 0.0
    %2034 = vmatprep.subr.mxu0 0.0
    %2035 = vmatpush2.msra.mxu0 0.0
    %2036 = vmatprep.subr.mxu0 0.0
    %2037 = vmatpush2.msra.mxu0 0.0
    %2038 = vmatprep.subr.mxu0 0.0
    %2039 = vmatpush2.msra.mxu0 0.0
    %2040 = vmatprep.subr.mxu0 0.0
    %2041 = vmatpush2.msra.mxu0 0.0
    %2042 = vmatprep.subr.mxu0 0.0
    %2043 = vmatpush2.msra.mxu0 0.0
    %2044 = vmatprep.subr.mxu0 0.0
    %2045 = vmatpush2.msra.mxu0 0.0
    %2046 = vmatprep.subr.mxu0 0.0
    %2047 = vmatpush2.msra.mxu0 0.0
    %2048 = vmatprep.subr.mxu0 0.0
    %2049 = vmatpush2.msra.mxu0 0.0
    %2050 = vmatprep.subr.mxu0 0.0
    %2051 = vmatpush2.msra.mxu0 0.0
    %2052 = vmatprep.subr.mxu0 0.0
    %2053 = vmatpush2.msra.mxu0 0.0
    %2054 = vmatprep.subr.mxu0 0.0
    %2055 = vmatpush2.msra.mxu0 0.0
    %2056 = vmatprep.subr.mxu0 0.0
    %2057 = vmatpush2.msra.mxu0 0.0
    %2058 = vmatprep.subr.mxu0 0.0
    %2059 = vmatpush2.msra.mxu0 0.0
    %2060 = vmatprep.subr.mxu0 0.0
    %2061 = vmatpush2.msra.mxu0 0.0
    %2062 = vmatprep.subr.mxu0 0.0
    %2063 = vmatpush2.msra.mxu0 0.0
    %2064 = vmatprep.mubr.f32.mxu0 0.0
    %2065 = vmatmul.mubr.f32.gmra.mxu0 %v1998
    %v2066 = vpop.f32.mrf.mxu0
    %v2067 = vadd.f32 0.0, %v2066
    %v2068 = vpop.f32.mrf.mxu0
    %2069 = vdwg.mxu0
    %v2071 = vsel %vm1057, %v1774, 0
    %2073 = vmatprep.subr.mxu0 0.0
    %2074 = vmatpush1.msra.mxu0 0.0
    %2075 = vmatprep.subr.mxu0 0.0
    %2076 = vmatpush1.msra.mxu0 0.0
    %2077 = vmatprep.subr.mxu0 0.0
    %2078 = vmatpush1.msra.mxu0 0.0
    %2079 = vmatprep.subr.mxu0 0.0
    %2080 = vmatpush1.msra.mxu0 0.0
    %2081 = vmatprep.subr.mxu0 0.0
    %2082 = vmatpush1.msra.mxu0 0.0
    %2083 = vmatprep.subr.mxu0 0.0
    %2084 = vmatpush1.msra.mxu0 0.0
    %2085 = vmatprep.subr.mxu0 0.0
    %2086 = vmatpush1.msra.mxu0 0.0
    %2087 = vmatprep.subr.mxu0 0.0
    %2088 = vmatpush1.msra.mxu0 0.0
    %2089 = vmatprep.subr.mxu0 0.0
    %2090 = vmatpush1.msra.mxu0 0.0
    %2091 = vmatprep.subr.mxu0 0.0
    %2092 = vmatpush1.msra.mxu0 0.0
    %2093 = vmatprep.subr.mxu0 0.0
    %2094 = vmatpush1.msra.mxu0 0.0
    %2095 = vmatprep.subr.mxu0 0.0
    %2096 = vmatpush1.msra.mxu0 0.0
    %2097 = vmatprep.subr.mxu0 0.0
    %2098 = vmatpush1.msra.mxu0 0.0
    %2099 = vmatprep.subr.mxu0 0.0
    %2100 = vmatpush1.msra.mxu0 0.0
    %2101 = vmatprep.subr.mxu0 0.0
    %2102 = vmatpush1.msra.mxu0 0.0
    %2103 = vmatprep.subr.mxu0 0.0
    %2104 = vmatpush1.msra.mxu0 %v987
    %2105 = vmatprep.subr.mxu0 0.0
    %2106 = vmatpush2.msra.mxu0 0.0
    %2107 = vmatprep.subr.mxu0 0.0
    %2108 = vmatpush2.msra.mxu0 0.0
    %2109 = vmatprep.subr.mxu0 0.0
    %2110 = vmatpush2.msra.mxu0 0.0
    %2111 = vmatprep.subr.mxu0 0.0
    %2112 = vmatpush2.msra.mxu0 0.0
    %2113 = vmatprep.subr.mxu0 0.0
    %2114 = vmatpush2.msra.mxu0 0.0
    %2115 = vmatprep.subr.mxu0 0.0
    %2116 = vmatpush2.msra.mxu0 0.0
    %2117 = vmatprep.subr.mxu0 0.0
    %2118 = vmatpush2.msra.mxu0 0.0
    %2119 = vmatprep.subr.mxu0 0.0
    %2120 = vmatpush2.msra.mxu0 0.0
    %2121 = vmatprep.subr.mxu0 0.0
    %2122 = vmatpush2.msra.mxu0 0.0
    %2123 = vmatprep.subr.mxu0 0.0
    %2124 = vmatpush2.msra.mxu0 0.0
    %2125 = vmatprep.subr.mxu0 0.0
    %2126 = vmatpush2.msra.mxu0 0.0
    %2127 = vmatprep.subr.mxu0 0.0
    %2128 = vmatpush2.msra.mxu0 0.0
    %2129 = vmatprep.subr.mxu0 0.0
    %2130 = vmatpush2.msra.mxu0 0.0
    %2131 = vmatprep.subr.mxu0 0.0
    %2132 = vmatpush2.msra.mxu0 0.0
    %2133 = vmatprep.subr.mxu0 0.0
    %2134 = vmatpush2.msra.mxu0 0.0
    %2135 = vmatprep.subr.mxu0 0.0
    %2136 = vmatpush2.msra.mxu0 0.0
    %2137 = vmatprep.mubr.f32.mxu0 0.0
    %2138 = vmatmul.mubr.f32.gmra.mxu0 %v2071
    %v2139 = vpop.f32.mrf.mxu0
    %v2140 = vadd.f32 0.0, %v2139
    %v2141 = vpop.f32.mrf.mxu0
    %2142 = vdwg.mxu0
    %v2144 = vsel %vm1057, %v1775, 0
    %2146 = vmatprep.subr.mxu0 0.0
    %2147 = vmatpush1.msra.mxu0 0.0
    %2148 = vmatprep.subr.mxu0 0.0
    %2149 = vmatpush1.msra.mxu0 0.0
    %2150 = vmatprep.subr.mxu0 0.0
    %2151 = vmatpush1.msra.mxu0 0.0
    %2152 = vmatprep.subr.mxu0 0.0
    %2153 = vmatpush1.msra.mxu0 0.0
    %2154 = vmatprep.subr.mxu0 0.0
    %2155 = vmatpush1.msra.mxu0 0.0
    %2156 = vmatprep.subr.mxu0 0.0
    %2157 = vmatpush1.msra.mxu0 0.0
    %2158 = vmatprep.subr.mxu0 0.0
    %2159 = vmatpush1.msra.mxu0 0.0
    %2160 = vmatprep.subr.mxu0 0.0
    %2161 = vmatpush1.msra.mxu0 0.0
    %2162 = vmatprep.subr.mxu0 0.0
    %2163 = vmatpush1.msra.mxu0 0.0
    %2164 = vmatprep.subr.mxu0 0.0
    %2165 = vmatpush1.msra.mxu0 0.0
    %2166 = vmatprep.subr.mxu0 0.0
    %2167 = vmatpush1.msra.mxu0 0.0
    %2168 = vmatprep.subr.mxu0 0.0
    %2169 = vmatpush1.msra.mxu0 0.0
    %2170 = vmatprep.subr.mxu0 0.0
    %2171 = vmatpush1.msra.mxu0 0.0
    %2172 = vmatprep.subr.mxu0 0.0
    %2173 = vmatpush1.msra.mxu0 0.0
    %2174 = vmatprep.subr.mxu0 0.0
    %2175 = vmatpush1.msra.mxu0 0.0
    %2176 = vmatprep.subr.mxu0 0.0
    %2177 = vmatpush1.msra.mxu0 %v1055
    %2178 = vmatprep.subr.mxu0 0.0
    %2179 = vmatpush2.msra.mxu0 0.0
    %2180 = vmatprep.subr.mxu0 0.0
    %2181 = vmatpush2.msra.mxu0 0.0
    %2182 = vmatprep.subr.mxu0 0.0
    %2183 = vmatpush2.msra.mxu0 0.0
    %2184 = vmatprep.subr.mxu0 0.0
    %2185 = vmatpush2.msra.mxu0 0.0
    %2186 = vmatprep.subr.mxu0 0.0
    %2187 = vmatpush2.msra.mxu0 0.0
    %2188 = vmatprep.subr.mxu0 0.0
    %2189 = vmatpush2.msra.mxu0 0.0
    %2190 = vmatprep.subr.mxu0 0.0
    %2191 = vmatpush2.msra.mxu0 0.0
    %2192 = vmatprep.subr.mxu0 0.0
    %2193 = vmatpush2.msra.mxu0 0.0
    %2194 = vmatprep.subr.mxu0 0.0
    %2195 = vmatpush2.msra.mxu0 0.0
    %2196 = vmatprep.subr.mxu0 0.0
    %2197 = vmatpush2.msra.mxu0 0.0
    %2198 = vmatprep.subr.mxu0 0.0
    %2199 = vmatpush2.msra.mxu0 0.0
    %2200 = vmatprep.subr.mxu0 0.0
    %2201 = vmatpush2.msra.mxu0 0.0
    %2202 = vmatprep.subr.mxu0 0.0
    %2203 = vmatpush2.msra.mxu0 0.0
    %2204 = vmatprep.subr.mxu0 0.0
    %2205 = vmatpush2.msra.mxu0 0.0
    %2206 = vmatprep.subr.mxu0 0.0
    %2207 = vmatpush2.msra.mxu0 0.0
    %2208 = vmatprep.subr.mxu0 0.0
    %2209 = vmatpush2.msra.mxu0 0.0
    %2210 = vmatprep.mubr.f32.mxu0 0.0
    %2211 = vmatmul.mubr.f32.gmra.mxu0 %v2144
    %v2212 = vpop.f32.mrf.mxu0
    %v2213 = vadd.f32 0.0, %v2212
    %v2214 = vpop.f32.mrf.mxu0
    %2215 = vdwg.mxu0
    %v2217 = vsel %vm1057, %v1776, 0
    %2219 = vmatprep.subr.mxu0 0.0
    %2220 = vmatpush1.msra.mxu0 0.0
    %2221 = vmatprep.subr.mxu0 0.0
    %2222 = vmatpush1.msra.mxu0 0.0
    %2223 = vmatprep.subr.mxu0 0.0
    %2224 = vmatpush1.msra.mxu0 0.0
    %2225 = vmatprep.subr.mxu0 0.0
    %2226 = vmatpush1.msra.mxu0 0.0
    %2227 = vmatprep.subr.mxu0 0.0
    %2228 = vmatpush1.msra.mxu0 0.0
    %2229 = vmatprep.subr.mxu0 0.0
    %2230 = vmatpush1.msra.mxu0 0.0
    %2231 = vmatprep.subr.mxu0 0.0
    %2232 = vmatpush1.msra.mxu0 0.0
    %2233 = vmatprep.subr.mxu0 0.0
    %2234 = vmatpush1.msra.mxu0 0.0
    %2235 = vmatprep.subr.mxu0 0.0
    %2236 = vmatpush1.msra.mxu0 0.0
    %2237 = vmatprep.subr.mxu0 0.0
    %2238 = vmatpush1.msra.mxu0 0.0
    %2239 = vmatprep.subr.mxu0 0.0
    %2240 = vmatpush1.msra.mxu0 0.0
    %2241 = vmatprep.subr.mxu0 0.0
    %2242 = vmatpush1.msra.mxu0 0.0
    %2243 = vmatprep.subr.mxu0 0.0
    %2244 = vmatpush1.msra.mxu0 0.0
    %2245 = vmatprep.subr.mxu0 0.0
    %2246 = vmatpush1.msra.mxu0 0.0
    %2247 = vmatprep.subr.mxu0 0.0
    %2248 = vmatpush1.msra.mxu0 0.0
    %2249 = vmatprep.subr.mxu0 0.0
    %2250 = vmatpush1.msra.mxu0 %v988
    %2251 = vmatprep.subr.mxu0 0.0
    %2252 = vmatpush2.msra.mxu0 0.0
    %2253 = vmatprep.subr.mxu0 0.0
    %2254 = vmatpush2.msra.mxu0 0.0
    %2255 = vmatprep.subr.mxu0 0.0
    %2256 = vmatpush2.msra.mxu0 0.0
    %2257 = vmatprep.subr.mxu0 0.0
    %2258 = vmatpush2.msra.mxu0 0.0
    %2259 = vmatprep.subr.mxu0 0.0
    %2260 = vmatpush2.msra.mxu0 0.0
    %2261 = vmatprep.subr.mxu0 0.0
    %2262 = vmatpush2.msra.mxu0 0.0
    %2263 = vmatprep.subr.mxu0 0.0
    %2264 = vmatpush2.msra.mxu0 0.0
    %2265 = vmatprep.subr.mxu0 0.0
    %2266 = vmatpush2.msra.mxu0 0.0
    %2267 = vmatprep.subr.mxu0 0.0
    %2268 = vmatpush2.msra.mxu0 0.0
    %2269 = vmatprep.subr.mxu0 0.0
    %2270 = vmatpush2.msra.mxu0 0.0
    %2271 = vmatprep.subr.mxu0 0.0
    %2272 = vmatpush2.msra.mxu0 0.0
    %2273 = vmatprep.subr.mxu0 0.0
    %2274 = vmatpush2.msra.mxu0 0.0
    %2275 = vmatprep.subr.mxu0 0.0
    %2276 = vmatpush2.msra.mxu0 0.0
    %2277 = vmatprep.subr.mxu0 0.0
    %2278 = vmatpush2.msra.mxu0 0.0
    %2279 = vmatprep.subr.mxu0 0.0
    %2280 = vmatpush2.msra.mxu0 0.0
    %2281 = vmatprep.subr.mxu0 0.0
    %2282 = vmatpush2.msra.mxu0 0.0
    %2283 = vmatprep.mubr.f32.mxu0 0.0
    %2284 = vmatmul.mubr.f32.gmra.mxu0 %v2217
    %v2285 = vpop.f32.mrf.mxu0
    %v2286 = vadd.f32 0.0, %v2285
    %v2287 = vpop.f32.mrf.mxu0
    %2288 = vdwg.mxu0
    %v2290 = vsel %vm1057, %v1777, 0
    %2292 = vmatprep.subr.mxu0 0.0
    %2293 = vmatpush1.msra.mxu0 0.0
    %2294 = vmatprep.subr.mxu0 0.0
    %2295 = vmatpush1.msra.mxu0 0.0
    %2296 = vmatprep.subr.mxu0 0.0
    %2297 = vmatpush1.msra.mxu0 0.0
    %2298 = vmatprep.subr.mxu0 0.0
    %2299 = vmatpush1.msra.mxu0 0.0
    %2300 = vmatprep.subr.mxu0 0.0
    %2301 = vmatpush1.msra.mxu0 0.0
    %2302 = vmatprep.subr.mxu0 0.0
    %2303 = vmatpush1.msra.mxu0 0.0
    %2304 = vmatprep.subr.mxu0 0.0
    %2305 = vmatpush1.msra.mxu0 0.0
    %2306 = vmatprep.subr.mxu0 0.0
    %2307 = vmatpush1.msra.mxu0 0.0
    %2308 = vmatprep.subr.mxu0 0.0
    %2309 = vmatpush1.msra.mxu0 0.0
    %2310 = vmatprep.subr.mxu0 0.0
    %2311 = vmatpush1.msra.mxu0 0.0
    %2312 = vmatprep.subr.mxu0 0.0
    %2313 = vmatpush1.msra.mxu0 0.0
    %2314 = vmatprep.subr.mxu0 0.0
    %2315 = vmatpush1.msra.mxu0 0.0
    %2316 = vmatprep.subr.mxu0 0.0
    %2317 = vmatpush1.msra.mxu0 0.0
    %2318 = vmatprep.subr.mxu0 0.0
    %2319 = vmatpush1.msra.mxu0 0.0
    %2320 = vmatprep.subr.mxu0 0.0
    %2321 = vmatpush1.msra.mxu0 0.0
    %2322 = vmatprep.subr.mxu0 0.0
    %2323 = vmatpush1.msra.mxu0 %v1056
    %2324 = vmatprep.subr.mxu0 0.0
    %2325 = vmatpush2.msra.mxu0 0.0
    %2326 = vmatprep.subr.mxu0 0.0
    %2327 = vmatpush2.msra.mxu0 0.0
    %2328 = vmatprep.subr.mxu0 0.0
    %2329 = vmatpush2.msra.mxu0 0.0
    %2330 = vmatprep.subr.mxu0 0.0
    %2331 = vmatpush2.msra.mxu0 0.0
    %2332 = vmatprep.subr.mxu0 0.0
    %2333 = vmatpush2.msra.mxu0 0.0
    %2334 = vmatprep.subr.mxu0 0.0
    %2335 = vmatpush2.msra.mxu0 0.0
    %2336 = vmatprep.subr.mxu0 0.0
    %2337 = vmatpush2.msra.mxu0 0.0
    %2338 = vmatprep.subr.mxu0 0.0
    %2339 = vmatpush2.msra.mxu0 0.0
    %2340 = vmatprep.subr.mxu0 0.0
    %2341 = vmatpush2.msra.mxu0 0.0
    %2342 = vmatprep.subr.mxu0 0.0
    %2343 = vmatpush2.msra.mxu0 0.0
    %2344 = vmatprep.subr.mxu0 0.0
    %2345 = vmatpush2.msra.mxu0 0.0
    %2346 = vmatprep.subr.mxu0 0.0
    %2347 = vmatpush2.msra.mxu0 0.0
    %2348 = vmatprep.subr.mxu0 0.0
    %2349 = vmatpush2.msra.mxu0 0.0
    %2350 = vmatprep.subr.mxu0 0.0
    %2351 = vmatpush2.msra.mxu0 0.0
    %2352 = vmatprep.subr.mxu0 0.0
    %2353 = vmatpush2.msra.mxu0 0.0
    %2354 = vmatprep.subr.mxu0 0.0
    %2355 = vmatpush2.msra.mxu0 0.0
    %2356 = vmatprep.mubr.f32.mxu0 0.0
    %2357 = vmatmul.mubr.f32.gmra.mxu0 %v2290
    %v2358 = vpop.f32.mrf.mxu0
    %v2359 = vadd.f32 0.0, %v2358
    %v2360 = vpop.f32.mrf.mxu0
    %2361 = vdwg.mxu0
    %v2362 = vcombine.low %v1848, %v2140
    %v2363 = vcombine.high %v1848, %v2140
    %v2365 = vunpack.c.l.s4 1983009808
    %v2366 = vunpack.c.0.s8 %v2365
    %v2367 = vlaneseq
    %v2368 = vshrl.u32 %v2367, 7
    %v2369 = vsub.s32 %v2366, %v2368
    %v2370 = vrot.slane %v2362, %v2369
    %v2372 = vunpack.c.l.s4 1983009808
    %v2373 = vunpack.c.0.s8 %v2372
    %v2374 = vlaneseq
    %v2375 = vshrl.u32 %v2374, 7
    %v2376 = vsub.s32 %v2373, %v2375
    %v2377 = vrot.slane %v2363, %v2376
    %v2378 = vcombine.low %v1994, %v2286
    %v2379 = vcombine.high %v1994, %v2286
    %v2381 = vunpack.c.l.s4 1983009808
    %v2382 = vunpack.c.0.s8 %v2381
    %v2383 = vlaneseq
    %v2384 = vshrl.u32 %v2383, 7
    %v2385 = vsub.s32 %v2382, %v2384
    %v2386 = vrot.slane %v2378, %v2385
    %v2388 = vunpack.c.l.s4 1983009808
    %v2389 = vunpack.c.0.s8 %v2388
    %v2390 = vlaneseq
    %v2391 = vshrl.u32 %v2390, 7
    %v2392 = vsub.s32 %v2389, %v2391
    %v2393 = vrot.slane %v2379, %v2392
    %v2394 = vcombine.low %v2370, %v2386
    %v2395 = vcombine.high %v2370, %v2386
    %v2397 = vunpack.c.l.s4 1934713408
    %v2398 = vunpack.c.0.s8 %v2397
    %v2399 = vlaneseq
    %v2400 = vshrl.u32 %v2399, 7
    %v2401 = vsub.s32 %v2398, %v2400
    %v2402 = vrot.slane %v2394, %v2401
    %v2404 = vunpack.c.l.s4 1934713408
    %v2405 = vunpack.c.0.s8 %v2404
    %v2406 = vlaneseq
    %v2407 = vshrl.u32 %v2406, 7
    %v2408 = vsub.s32 %v2405, %v2407
    %v2409 = vrot.slane %v2395, %v2408
    %v2410 = vcombine.low %v2377, %v2393
    %v2411 = vcombine.high %v2377, %v2393
    %v2413 = vunpack.c.l.s4 1934713408
    %v2414 = vunpack.c.0.s8 %v2413
    %v2415 = vlaneseq
    %v2416 = vshrl.u32 %v2415, 7
    %v2417 = vsub.s32 %v2414, %v2416
    %v2418 = vrot.slane %v2410, %v2417
    %v2420 = vunpack.c.l.s4 1934713408
    %v2421 = vunpack.c.0.s8 %v2420
    %v2422 = vlaneseq
    %v2423 = vshrl.u32 %v2422, 7
    %v2424 = vsub.s32 %v2421, %v2423
    %v2425 = vrot.slane %v2411, %v2424
    %v2426 = vcombine.high %v2402, 0.0
    %v2427 = vcombine.high %v2409, 0.0
    %v2428 = vcombine.high %v2418, 0.0
    %v2429 = vcombine.high %v2425, 0.0
    %v2430 = vcombine.low %v1921, %v2213
    %v2431 = vcombine.high %v1921, %v2213
    %v2433 = vunpack.c.l.s4 1983009808
    %v2434 = vunpack.c.0.s8 %v2433
    %v2435 = vlaneseq
    %v2436 = vshrl.u32 %v2435, 7
    %v2437 = vsub.s32 %v2434, %v2436
    %v2438 = vrot.slane %v2430, %v2437
    %v2440 = vunpack.c.l.s4 1983009808
    %v2441 = vunpack.c.0.s8 %v2440
    %v2442 = vlaneseq
    %v2443 = vshrl.u32 %v2442, 7
    %v2444 = vsub.s32 %v2441, %v2443
    %v2445 = vrot.slane %v2431, %v2444
    %v2446 = vcombine.low %v2067, %v2359
    %v2447 = vcombine.high %v2067, %v2359
    %v2449 = vunpack.c.l.s4 1983009808
    %v2450 = vunpack.c.0.s8 %v2449
    %v2451 = vlaneseq
    %v2452 = vshrl.u32 %v2451, 7
    %v2453 = vsub.s32 %v2450, %v2452
    %v2454 = vrot.slane %v2446, %v2453
    %v2456 = vunpack.c.l.s4 1983009808
    %v2457 = vunpack.c.0.s8 %v2456
    %v2458 = vlaneseq
    %v2459 = vshrl.u32 %v2458, 7
    %v2460 = vsub.s32 %v2457, %v2459
    %v2461 = vrot.slane %v2447, %v2460
    %v2462 = vcombine.low %v2438, %v2454
    %v2463 = vcombine.high %v2438, %v2454
    %v2465 = vunpack.c.l.s4 1934713408
    %v2466 = vunpack.c.0.s8 %v2465
    %v2467 = vlaneseq
    %v2468 = vshrl.u32 %v2467, 7
    %v2469 = vsub.s32 %v2466, %v2468
    %v2470 = vrot.slane %v2462, %v2469
    %v2472 = vunpack.c.l.s4 1934713408
    %v2473 = vunpack.c.0.s8 %v2472
    %v2474 = vlaneseq
    %v2475 = vshrl.u32 %v2474, 7
    %v2476 = vsub.s32 %v2473, %v2475
    %v2477 = vrot.slane %v2463, %v2476
    %v2478 = vcombine.low %v2445, %v2461
    %v2479 = vcombine.high %v2445, %v2461
    %v2481 = vunpack.c.l.s4 1934713408
    %v2482 = vunpack.c.0.s8 %v2481
    %v2483 = vlaneseq
    %v2484 = vshrl.u32 %v2483, 7
    %v2485 = vsub.s32 %v2482, %v2484
    %v2486 = vrot.slane %v2478, %v2485
    %v2488 = vunpack.c.l.s4 1934713408
    %v2489 = vunpack.c.0.s8 %v2488
    %v2490 = vlaneseq
    %v2491 = vshrl.u32 %v2490, 7
    %v2492 = vsub.s32 %v2489, %v2491
    %v2493 = vrot.slane %v2479, %v2492
    %v2494 = vcombine.high %v2470, 0.0
    %v2495 = vcombine.high %v2477, 0.0
    %v2496 = vcombine.high %v2486, 0.0
    %v2497 = vcombine.high %v2493, 0.0
    %v2498 = vcombine.low %v2402, %v2409
    %v2500 = vunpack.c.l.s4 1983009808
    %v2501 = vunpack.c.0.s8 %v2500
    %v2502 = vlaneseq
    %v2503 = vshrl.u32 %v2502, 7
    %v2504 = vsub.s32 %v2501, %v2503
    %v2505 = vrot.slane %v2498, %v2504
    %v2506 = vcombine.low %v2426, %v2427
    %v2508 = vunpack.c.l.s4 1983009808
    %v2509 = vunpack.c.0.s8 %v2508
    %v2510 = vlaneseq
    %v2511 = vshrl.u32 %v2510, 7
    %v2512 = vsub.s32 %v2509, %v2511
    %v2513 = vrot.slane %v2506, %v2512
    %v2514 = vcombine.low %v2418, %v2425
    %v2516 = vunpack.c.l.s4 1983009808
    %v2517 = vunpack.c.0.s8 %v2516
    %v2518 = vlaneseq
    %v2519 = vshrl.u32 %v2518, 7
    %v2520 = vsub.s32 %v2517, %v2519
    %v2521 = vrot.slane %v2514, %v2520
    %v2522 = vcombine.low %v2428, %v2429
    %v2524 = vunpack.c.l.s4 1983009808
    %v2525 = vunpack.c.0.s8 %v2524
    %v2526 = vlaneseq
    %v2527 = vshrl.u32 %v2526, 7
    %v2528 = vsub.s32 %v2525, %v2527
    %v2529 = vrot.slane %v2522, %v2528
    %v2530 = vcombine.low %v2505, %v2513
    %v2531 = vcombine.high %v2505, %v2513
    %v2533 = vunpack.c.l.s4 1934713408
    %v2534 = vunpack.c.0.s8 %v2533
    %v2535 = vlaneseq
    %v2536 = vshrl.u32 %v2535, 7
    %v2537 = vsub.s32 %v2534, %v2536
    %v2538 = vrot.slane %v2530, %v2537
    %v2540 = vunpack.c.l.s4 1934713408
    %v2541 = vunpack.c.0.s8 %v2540
    %v2542 = vlaneseq
    %v2543 = vshrl.u32 %v2542, 7
    %v2544 = vsub.s32 %v2541, %v2543
    %v2545 = vrot.slane %v2531, %v2544
    %v2546 = vcombine.low %v2521, %v2529
    %v2547 = vcombine.high %v2521, %v2529
    %v2549 = vunpack.c.l.s4 1934713408
    %v2550 = vunpack.c.0.s8 %v2549
    %v2551 = vlaneseq
    %v2552 = vshrl.u32 %v2551, 7
    %v2553 = vsub.s32 %v2550, %v2552
    %v2554 = vrot.slane %v2546, %v2553
    %v2556 = vunpack.c.l.s4 1934713408
    %v2557 = vunpack.c.0.s8 %v2556
    %v2558 = vlaneseq
    %v2559 = vshrl.u32 %v2558, 7
    %v2560 = vsub.s32 %v2557, %v2559
    %v2561 = vrot.slane %v2547, %v2560
    %v2562 = vcombine.low %v2538, %v2554
    %v2563 = vcombine.high %v2538, %v2554
    %v2564 = vcombine.low %v2545, %v2561
    %v2565 = vcombine.high %v2545, %v2561
    %v2566 = vcombine.low %v2470, %v2477
    %v2568 = vunpack.c.l.s4 1983009808
    %v2569 = vunpack.c.0.s8 %v2568
    %v2570 = vlaneseq
    %v2571 = vshrl.u32 %v2570, 7
    %v2572 = vsub.s32 %v2569, %v2571
    %v2573 = vrot.slane %v2566, %v2572
    %v2574 = vcombine.low %v2494, %v2495
    %v2576 = vunpack.c.l.s4 1983009808
    %v2577 = vunpack.c.0.s8 %v2576
    %v2578 = vlaneseq
    %v2579 = vshrl.u32 %v2578, 7
    %v2580 = vsub.s32 %v2577, %v2579
    %v2581 = vrot.slane %v2574, %v2580
    %v2582 = vcombine.low %v2486, %v2493
    %v2584 = vunpack.c.l.s4 1983009808
    %v2585 = vunpack.c.0.s8 %v2584
    %v2586 = vlaneseq
    %v2587 = vshrl.u32 %v2586, 7
    %v2588 = vsub.s32 %v2585, %v2587
    %v2589 = vrot.slane %v2582, %v2588
    %v2590 = vcombine.low %v2496, %v2497
    %v2592 = vunpack.c.l.s4 1983009808
    %v2593 = vunpack.c.0.s8 %v2592
    %v2594 = vlaneseq
    %v2595 = vshrl.u32 %v2594, 7
    %v2596 = vsub.s32 %v2593, %v2595
    %v2597 = vrot.slane %v2590, %v2596
    %v2598 = vcombine.low %v2573, %v2581
    %v2599 = vcombine.high %v2573, %v2581
    %v2601 = vunpack.c.l.s4 1934713408
    %v2602 = vunpack.c.0.s8 %v2601
    %v2603 = vlaneseq
    %v2604 = vshrl.u32 %v2603, 7
    %v2605 = vsub.s32 %v2602, %v2604
    %v2606 = vrot.slane %v2598, %v2605
    %v2608 = vunpack.c.l.s4 1934713408
    %v2609 = vunpack.c.0.s8 %v2608
    %v2610 = vlaneseq
    %v2611 = vshrl.u32 %v2610, 7
    %v2612 = vsub.s32 %v2609, %v2611
    %v2613 = vrot.slane %v2599, %v2612
    %v2614 = vcombine.low %v2589, %v2597
    %v2615 = vcombine.high %v2589, %v2597
    %v2617 = vunpack.c.l.s4 1934713408
    %v2618 = vunpack.c.0.s8 %v2617
    %v2619 = vlaneseq
    %v2620 = vshrl.u32 %v2619, 7
    %v2621 = vsub.s32 %v2618, %v2620
    %v2622 = vrot.slane %v2614, %v2621
    %v2624 = vunpack.c.l.s4 1934713408
    %v2625 = vunpack.c.0.s8 %v2624
    %v2626 = vlaneseq
    %v2627 = vshrl.u32 %v2626, 7
    %v2628 = vsub.s32 %v2625, %v2627
    %v2629 = vrot.slane %v2615, %v2628
    %v2630 = vcombine.low %v2606, %v2622
    %v2631 = vcombine.high %v2606, %v2622
    %v2632 = vcombine.low %v2613, %v2629
    %v2633 = vcombine.high %v2613, %v2629
    %2636 = vrot.lane.b32.xlu0 %v2563, 8
    %v2637 = vpop.permute.xlu0 %2636
    %2638 = vrot.lane.b32.xlu0 %v2631, 8
    %v2639 = vpop.permute.xlu0 %2638
    %2644 = vrot.lane.b32.xlu0 %v2564, 16
    %v2645 = vpop.permute.xlu0 %2644
    %2646 = vrot.lane.b32.xlu0 %v2632, 16
    %v2647 = vpop.permute.xlu0 %2646
    %2652 = vrot.lane.b32.xlu0 %v2565, 24
    %v2653 = vpop.permute.xlu0 %2652
    %2654 = vrot.lane.b32.xlu0 %v2633, 24
    %v2655 = vpop.permute.xlu0 %2654
    %v2658 = vsel %vm1057, %v2562, %v2637
    %v2659 = vsel %vm1057, %v2630, %v2639
    %vm2660 = vcmask 130048
    %v2661 = vsel %vm2660, %v2658, %v2645
    %v2662 = vsel %vm2660, %v2659, %v2647
    %vm2663 = vcmask 195584
    %v2664 = vsel %vm2663, %v2661, %v2653
    %v2665 = vsel %vm2663, %v2662, %v2655
    %v2666 = vld [vmem:[#allocation7] sm:$0xff]
    %v2667 = vld [vmem:[#allocation7 + $0x8] sm:$0xff]
    %v2668 = vld [vmem:[#allocation7 + $0x10] sm:$0xff]
    %v2669 = vld [vmem:[#allocation7 + $0x18] sm:$0xff]
    %v2670 = vld [vmem:[%s4] sm:$0x1]
    %v2672 = vlaneseq
    %v2673 = vshrl.u32 %v2672, 7
    %v2674 = vsub.s32 0, %v2673
    %v2675 = vrot.slane %v2670, %v2674
    %v2678 = vsel %vm75, %v2664, 0
    %v2681 = vsel %vm75, %v2665, 0
    %2683 = vmatprep.subr.mxu0 0.0
    %2684 = vmatpush1.msra.mxu0 0.0
    %2685 = vmatprep.subr.mxu0 0.0
    %2686 = vmatpush1.msra.mxu0 0.0
    %2687 = vmatprep.subr.mxu0 0.0
    %2688 = vmatpush1.msra.mxu0 0.0
    %2689 = vmatprep.subr.mxu0 0.0
    %2690 = vmatpush1.msra.mxu0 0.0
    %2691 = vmatprep.subr.mxu0 0.0
    %2692 = vmatpush1.msra.mxu0 0.0
    %2693 = vmatprep.subr.mxu0 0.0
    %2694 = vmatpush1.msra.mxu0 0.0
    %2695 = vmatprep.subr.mxu0 0.0
    %2696 = vmatpush1.msra.mxu0 0.0
    %2697 = vmatprep.subr.mxu0 0.0
    %2698 = vmatpush1.msra.mxu0 0.0
    %2699 = vmatprep.subr.mxu0 0.0
    %2700 = vmatpush1.msra.mxu0 0.0
    %2701 = vmatprep.subr.mxu0 0.0
    %2702 = vmatpush1.msra.mxu0 0.0
    %2703 = vmatprep.subr.mxu0 0.0
    %2704 = vmatpush1.msra.mxu0 0.0
    %2705 = vmatprep.subr.mxu0 0.0
    %2706 = vmatpush1.msra.mxu0 0.0
    %2707 = vmatprep.subr.mxu0 0.0
    %2708 = vmatpush1.msra.mxu0 %v2669
    %2709 = vmatprep.subr.mxu0 0.0
    %2710 = vmatpush1.msra.mxu0 %v2668
    %2711 = vmatprep.subr.mxu0 0.0
    %2712 = vmatpush1.msra.mxu0 %v2667
    %2713 = vmatprep.subr.mxu0 0.0
    %2714 = vmatpush1.msra.mxu0 %v2666
    %2715 = vmatprep.subr.mxu0 0.0
    %2716 = vmatpush2.msra.mxu0 0.0
    %2717 = vmatprep.subr.mxu0 0.0
    %2718 = vmatpush2.msra.mxu0 0.0
    %2719 = vmatprep.subr.mxu0 0.0
    %2720 = vmatpush2.msra.mxu0 0.0
    %2721 = vmatprep.subr.mxu0 0.0
    %2722 = vmatpush2.msra.mxu0 0.0
    %2723 = vmatprep.subr.mxu0 0.0
    %2724 = vmatpush2.msra.mxu0 0.0
    %2725 = vmatprep.subr.mxu0 0.0
    %2726 = vmatpush2.msra.mxu0 0.0
    %2727 = vmatprep.subr.mxu0 0.0
    %2728 = vmatpush2.msra.mxu0 0.0
    %2729 = vmatprep.subr.mxu0 0.0
    %2730 = vmatpush2.msra.mxu0 0.0
    %2731 = vmatprep.subr.mxu0 0.0
    %2732 = vmatpush2.msra.mxu0 0.0
    %2733 = vmatprep.subr.mxu0 0.0
    %2734 = vmatpush2.msra.mxu0 0.0
    %2735 = vmatprep.subr.mxu0 0.0
    %2736 = vmatpush2.msra.mxu0 0.0
    %2737 = vmatprep.subr.mxu0 0.0
    %2738 = vmatpush2.msra.mxu0 0.0
    %2739 = vmatprep.subr.mxu0 0.0
    %2740 = vmatpush2.msra.mxu0 0.0
    %2741 = vmatprep.subr.mxu0 0.0
    %2742 = vmatpush2.msra.mxu0 0.0
    %2743 = vmatprep.subr.mxu0 0.0
    %2744 = vmatpush2.msra.mxu0 0.0
    %2745 = vmatprep.subr.mxu0 0.0
    %2746 = vmatpush2.msra.mxu0 0.0
    %2747 = vmatprep.mubr.f32.mxu0 0.0
    %2748 = vmatmul.mubr.f32.gmra.mxu0 %v2678
    %v2749 = vpop.f32.mrf.mxu0
    %v2750 = vadd.f32 %v2675, %v2749
    %v2751 = vpop.f32.mrf.mxu0
    %2752 = vmatprep.mubr.f32.mxu0 0.0
    %2753 = vmatmul.mubr.f32.gmra.mxu0 %v2681
    %v2754 = vpop.f32.mrf.mxu0
    %v2755 = vadd.f32 %v2675, %v2754
    %v2756 = vpop.f32.mrf.mxu0
    %2757 = vdwg.mxu0
    %2758 = vst.msk [vmem:[#allocation8] sm:$0xff] %vm75, %v2750
    %2759 = vst.msk [vmem:[#allocation8 + $0x8] sm:$0xff] %vm75, %v2755
    // Predicated region
    $region34: #{tpu_custom_call.1} parent=1 // pred_check
      _
    $region35: #{tpu_custom_call.1} parent=1 // pred_check_branch
      %2761 = sbr.rel (0) target = $region37
    $region36: #{tpu_custom_call.1} parent=1 // pred_region
      %s2763 = ssub.s32 256, 256
      %2764 = vsyncadd [#allocation4], %s2763
      %s2765 = sshll.u32 [#allocation8], 4
      %s2766 = int_to_ptr.vmem [resolvable:$true] %s2765
      %2771 = dma.vmem_to_hbm [thread:$0]  %s2766, 256, %s5, [#allocation4], 128, 128, 8
    $region37: #{tpu_custom_call.1} parent=1 // pred_fallthru
      _
    // Predicated region
    $region38: #{tpu_custom_call.1} parent=1 // pred_check
      _
    $region39: #{tpu_custom_call.1} parent=1 // pred_check_branch
      %2773 = sbr.rel (0) target = $region41
    $region40: #{tpu_custom_call.1} parent=1 // pred_region
      %2774 = dma.done [#allocation4], 256
    $region41: #{tpu_custom_call.1} parent=1 // pred_fallthru
      _
    %2775 = vsyncpa [#allocation3], 1
    %2776 = vsyncpa [#allocation6], 1
    %2777 = vsyncpa [#allocation4], 1

</llo_original>
